<compile_context>
chip_gen: v5e
topology: v5e:2x2
jax: 0.10.0
libtpu: 0.0.40
codegen_flags: <defaults>
</compile_context>

<pallas_src>
import functools

import jax
import jax.numpy as jnp
from jax.experimental import pallas as pl
from jax.experimental.pallas import tpu as pltpu

LANES = 128
TILE_M = 1024
VMEM_LIMIT = 32 * 1024 * 1024   # safe on v5e/v6e (128 MiB) and v7x (64 MiB physical)
BN_EPS = 1e-5


def _round_up(x, m):
    return (x + m - 1) // m * m


# ----------------------------- Pallas kernels -------------------------------

def _conv_bias_lrelu_kernel(p_ref, w_ref, b_ref, o_ref):
    """One M-tile: patches @ weights + bias, LeakyReLU(0.2)."""
    y = jnp.dot(p_ref[...], w_ref[...], preferred_element_type=jnp.float32)
    y = y + b_ref[...]
    o_ref[...] = jnp.where(y > 0.0, y, 0.2 * y).astype(o_ref.dtype)


def _conv_bn_lrelu_kernel(p_ref, w_ref, g_ref, b_ref, o_ref, *, eps):
    """Whole layer in one block: matmul + train-mode BatchNorm + LeakyReLU."""
    y = jnp.dot(p_ref[...], w_ref[...], preferred_element_type=jnp.float32)
    mean = jnp.mean(y, axis=0, keepdims=True)
    d = y - mean
    var = jnp.mean(d * d, axis=0, keepdims=True)            # biased, mean-subtracted
    yhat = d * (g_ref[...] * jax.lax.rsqrt(var + eps)) + b_ref[...]
    o_ref[...] = jnp.where(yhat > 0.0, yhat, 0.2 * yhat).astype(o_ref.dtype)


def _conv_bn_lrelu_head_kernel(p_ref, w_ref, g_ref, b_ref, w5_ref, b5_ref,
                               o_ref, *, eps, n_img, hw):
    """Layer 4 (conv + BN + LeakyReLU) fused with the final 4x4 conv + sigmoid."""
    y = jnp.dot(p_ref[...], w_ref[...], preferred_element_type=jnp.float32)
    mean = jnp.mean(y, axis=0, keepdims=True)
    d = y - mean
    var = jnp.mean(d * d, axis=0, keepdims=True)
    a = d * (g_ref[...] * jax.lax.rsqrt(var + eps)) + b_ref[...]
    a = jnp.where(a > 0.0, a, 0.2 * a)                       # (n_img*hw, C4) f32
    # Final 4x4/s2/p0 conv covers the whole 4x4 map -> per-image weighted sum.
    a3 = a.reshape(n_img, hw, a.shape[1])                    # rows are (n, oh, ow)
    t = jnp.sum(a3 * w5_ref[...], axis=1)                    # (n_img, C4)
    logit = jnp.sum(t, axis=1, keepdims=True) + b5_ref[...]  # (n_img, 1)
    o_ref[...] = 1.0 / (1.0 + jnp.exp(-logit))               # sigmoid in [0, 1]


# ------------------------------- JAX glue ------------------------------------

def im2col_nhwc(x, kh, kw, stride, pad, k_pad=None):
    """x (N,H,W,C) bf16 -> patches (N*Ho*Wo, kh*kw*C [zero-padded to k_pad]).

    K is ordered (i, j, c), matching the weight reshape below.
    """
    n, h, w, c = x.shape
    xp = jnp.pad(x, ((0, 0), (pad, pad), (pad, pad), (0, 0))) if pad else x
    ho = (h + 2 * pad - kh) // stride + 1
    wo = (w + 2 * pad - kw) // stride + 1
    cols = [xp[:, i:i + stride * ho:stride, j:j + stride * wo:stride, :]
            for i in range(kh) for j in range(kw)]
    patches = jnp.stack(cols, axis=3).reshape(n * ho * wo, kh * kw * c)
    if k_pad is not None and k_pad > kh * kw * c:
        patches = jnp.pad(patches, ((0, 0), (0, k_pad - kh * kw * c)))
    return patches, ho, wo


def _weights_2d(w4d, k_pad=None):
    """(Cout, Cin, kh, kw) -> (K, Cout) bf16, K ordered (i, j, c)."""
    cout, cin, kh, kw = w4d.shape
    w2d = w4d.transpose(2, 3, 1, 0).reshape(kh * kw * cin, cout).astype(jnp.bfloat16)
    if k_pad is not None and k_pad > w2d.shape[0]:
        w2d = jnp.pad(w2d, ((0, k_pad - w2d.shape[0]), (0, 0)))
    return w2d


def conv_bias_lrelu(x, w4d, bias):
    """Layer 1: conv(4,2,1) + bias + LeakyReLU(0.2), tiled over M."""
    n = x.shape[0]
    cout, cin, kh, kw = w4d.shape
    k_pad = _round_up(kh * kw * cin, LANES)                  # lane-align contraction dim
    patches, ho, wo = im2col_nhwc(x, kh, kw, 2, 1, k_pad=k_pad)
    m, k = patches.shape
    w2d = _weights_2d(w4d, k_pad=k_pad)
    b = bias.astype(jnp.float32).reshape(1, cout)
    tile_m = TILE_M if (m % TILE_M == 0 and m > TILE_M) else m
    grid_m = m // tile_m
    out = pl.pallas_call(
        _conv_bias_lrelu_kernel,
        out_shape=jax.ShapeDtypeStruct((m, cout), jnp.bfloat16),
        grid=(grid_m,),
        in_specs=[
            pl.BlockSpec((tile_m, k), lambda i: (i, 0)),
            pl.BlockSpec((k, cout), lambda i: (0, 0)),       # weights stay resident
            pl.BlockSpec((1, cout), lambda i: (0, 0)),
        ],
        out_specs=pl.BlockSpec((tile_m, cout), lambda i: (i, 0)),
        compiler_params=pltpu.CompilerParams(
            dimension_semantics=("parallel",),
            vmem_limit_bytes=VMEM_LIMIT),
        cost_estimate=pl.CostEstimate(
            flops=2 * m * k * cout + 2 * m * cout,
            transcendentals=0,
            bytes_accessed=m * k * 2 + k * cout * 2 + cout * 4 + m * cout * 2),
    )(patches, w2d, b)
    return out.reshape(n, ho, wo, cout)                      # NHWC, true channel count


def conv_bn_lrelu(x, w4d, gamma, beta):
    """gen_block: conv(4,2,1,bias=False) + BatchNorm(batch stats) + LeakyReLU(0.2)."""
    n = x.shape[0]
    cout, cin, kh, kw = w4d.shape
    patches, ho, wo = im2col_nhwc(x, kh, kw, 2, 1)           # K = 16*Cin, multiple of 128
    m, k = patches.shape
    w2d = _weights_2d(w4d)
    g = gamma.astype(jnp.float32).reshape(1, cout)
    b = beta.astype(jnp.float32).reshape(1, cout)
    kernel = functools.partial(_conv_bn_lrelu_kernel, eps=BN_EPS)
    out = pl.pallas_call(
        kernel,
        out_shape=jax.ShapeDtypeStruct((m, cout), jnp.bfloat16),
        grid=(1,),                                           # whole layer = one block (M<=512)
        in_specs=[
            pl.BlockSpec((m, k), lambda i: (0, 0)),
            pl.BlockSpec((k, cout), lambda i: (0, 0)),
            pl.BlockSpec((1, cout), lambda i: (0, 0)),
            pl.BlockSpec((1, cout), lambda i: (0, 0)),
        ],
        out_specs=pl.BlockSpec((m, cout), lambda i: (0, 0)),
        compiler_params=pltpu.CompilerParams(
            dimension_semantics=("arbitrary",),
            vmem_limit_bytes=VMEM_LIMIT),
        cost_estimate=pl.CostEstimate(
            flops=2 * m * k * cout + 8 * m * cout,
            transcendentals=cout,
            bytes_accessed=m * k * 2 + k * cout * 2 + 2 * cout * 4 + m * cout * 2),
    )(patches, w2d, g, b)
    return out.reshape(n, ho, wo, cout)                      # NHWC, true channel count


def conv_bn_lrelu_head(x, w4d, gamma, beta, w5, b5):
    """Layer 4 gen_block fused with the final conv(4,2,0) + bias + sigmoid."""
    n = x.shape[0]
    cout, cin, kh, kw = w4d.shape
    patches, ho, wo = im2col_nhwc(x, kh, kw, 2, 1)
    m, k = patches.shape
    hw = ho * wo                                             # must be 4*4: head covers the map
    assert ho == 4 and wo == 4, "final 4x4/s2/p0 conv expects a 4x4 feature map"
    w2d = _weights_2d(w4d)
    g = gamma.astype(jnp.float32).reshape(1, cout)
    b = beta.astype(jnp.float32).reshape(1, cout)
    # Head weight (1, C4, 4, 4) -> (hw, C4) in (i, j, c) row order, matching y's rows.
    w5_2d = w5[0].transpose(1, 2, 0).reshape(hw, cout).astype(jnp.float32)
    b5_2d = b5.astype(jnp.float32).reshape(1, 1)
    kernel = functools.partial(_conv_bn_lrelu_head_kernel, eps=BN_EPS, n_img=n, hw=hw)
    out = pl.pallas_call(
        kernel,
        out_shape=jax.ShapeDtypeStruct((n, 1), jnp.float32),
        grid=(1,),
        in_specs=[
            pl.BlockSpec((m, k), lambda i: (0, 0)),
            pl.BlockSpec((k, cout), lambda i: (0, 0)),
            pl.BlockSpec((1, cout), lambda i: (0, 0)),
            pl.BlockSpec((1, cout), lambda i: (0, 0)),
            pl.BlockSpec((hw, cout), lambda i: (0, 0)),
            pl.BlockSpec((1, 1), lambda i: (0, 0)),
        ],
        out_specs=pl.BlockSpec((n, 1), lambda i: (0, 0)),
        compiler_params=pltpu.CompilerParams(
            dimension_semantics=("arbitrary",),
            vmem_limit_bytes=VMEM_LIMIT),
        cost_estimate=pl.CostEstimate(
            flops=2 * m * k * cout + 10 * m * cout,
            transcendentals=cout + n,
            bytes_accessed=m * k * 2 + k * cout * 2 + (2 * cout + hw * cout + 1 + n) * 4),
    )(patches, w2d, g, b, w5_2d, b5_2d)
    return out                                               # (N, 1) probabilities


def discriminator_forward(x_nchw, p):
    # TODO(synk): im2col/patch extraction still runs in XLA between layers.
    x = x_nchw.transpose(0, 2, 3, 1).astype(jnp.bfloat16)    # NCHW -> NHWC + bf16, once
    h = conv_bias_lrelu(x, p["w1"], p["b1"])                 # 64 -> 32
    h = conv_bn_lrelu(h, p["w2"], p["g2"], p["be2"])         # 32 -> 16
    h = conv_bn_lrelu(h, p["w3"], p["g3"], p["be3"])         # 16 -> 8
    out = conv_bn_lrelu_head(h, p["w4"], p["g4"], p["be4"],  # 8 -> 4 -> head -> (N, 1)
                             p["w5"], p["b5"])
    return out.reshape(-1)                                   # (N,)


# --------------------------------- main --------------------------------------

if __name__ == "__main__":
    key = jax.random.PRNGKey(0)
    N, C, H, W = 2, 3, 64, 64   # spatial 64 is required by the final 4x4/s2/p0 conv
    fd = 8                      # feature_d

    ks = jax.random.split(key, 16)

    def wconv(k, cout, cin):
        return 0.05 * jax.random.normal(k, (cout, cin, 4, 4), jnp.float32)

    params = {
        "w1": wconv(ks[0], fd, C),
        "b1": 0.01 * jax.random.normal(ks[1], (fd,), jnp.float32),
        "w2": wconv(ks[2], fd * 2, fd),
        "g2": 1.0 + 0.05 * jax.random.normal(ks[3], (fd * 2,), jnp.float32),
        "be2": 0.01 * jax.random.normal(ks[4], (fd * 2,), jnp.float32),
        "w3": wconv(ks[5], fd * 4, fd * 2),
        "g3": 1.0 + 0.05 * jax.random.normal(ks[6], (fd * 4,), jnp.float32),
        "be3": 0.01 * jax.random.normal(ks[7], (fd * 4,), jnp.float32),
        "w4": wconv(ks[8], fd * 8, fd * 4),
        "g4": 1.0 + 0.05 * jax.random.normal(ks[9], (fd * 8,), jnp.float32),
        "be4": 0.01 * jax.random.normal(ks[10], (fd * 8,), jnp.float32),
        "w5": wconv(ks[11], 1, fd * 8),
        "b5": 0.01 * jax.random.normal(ks[12], (1,), jnp.float32),
    }

    x = jax.random.normal(ks[15], (N, C, H, W), jnp.float32)

    out = jax.jit(discriminator_forward)(x, params)
    out = jax.block_until_ready(out)
    assert out.shape == (N,)
    assert bool(jnp.all(jnp.isfinite(out)))
    assert bool(jnp.all((out >= 0.0) & (out <= 1.0)))  # sigmoid output range
    print("KERNEL_OK")
</pallas_src>

<mosaic_0001>
module attributes {stable_mosaic.version = 11 : i64} {
  func.func @_conv_bias_lrelu_kernel(%arg0: i32, %arg1: memref<1024x128xbf16, #tpu.memory_space<vmem>>, %arg2: memref<128x8xbf16, #tpu.memory_space<vmem>>, %arg3: memref<1x8xf32, #tpu.memory_space<vmem>>, %arg4: memref<1024x8xbf16, #tpu.memory_space<vmem>>) attributes {dimension_semantics = [#tpu.dimension_semantics<parallel>], iteration_bounds = array<i64: 2>, scalar_prefetch = 0 : i64, scratch_operands = 0 : i64, tpu.core_type = #tpu.core_type<tc>, window_params = [{transform_indices = @transform_0, window_bounds = array<i64: 1024, 128>}, {pipeline_mode = #tpu.pipeline_mode<synchronous>, transform_indices = @transform_1, window_bounds = array<i64: 128, 8>}, {pipeline_mode = #tpu.pipeline_mode<synchronous>, transform_indices = @transform_2, window_bounds = array<i64: 1, 8>}, {transform_indices = @transform_3, window_bounds = array<i64: 1024, 8>}]} {
    %c0 = arith.constant 0 : index
    %c0_0 = arith.constant 0 : index
    %0 = vector.load %arg1[%c0, %c0_0] : memref<1024x128xbf16, #tpu.memory_space<vmem>>, vector<1024x128xbf16>
    %c0_1 = arith.constant 0 : index
    %c0_2 = arith.constant 0 : index
    %1 = vector.load %arg2[%c0_1, %c0_2] : memref<128x8xbf16, #tpu.memory_space<vmem>>, vector<128x8xbf16>
    %cst = arith.constant dense<0.000000e+00> : vector<1024x8xf32>
    %2 = tpu.matmul %0, %1, %cst {dimension_numbers = #tpu.dot_dimension_numbers<[1], [0], [0], [1], [0, 0, 1, 1], [], []>} : vector<1024x128xbf16>, vector<128x8xbf16>, vector<1024x8xf32> -> vector<1024x8xf32>
    %c0_3 = arith.constant 0 : index
    %c0_4 = arith.constant 0 : index
    %3 = vector.load %arg3[%c0_3, %c0_4] : memref<1x8xf32, #tpu.memory_space<vmem>>, vector<1x8xf32>
    %4 = vector.broadcast %3 : vector<1x8xf32> to vector<1024x8xf32>
    %5 = arith.addf %2, %4 : vector<1024x8xf32>
    %cst_5 = arith.constant 0.000000e+00 : f32
    %6 = vector.broadcast %cst_5 : f32 to vector<1024x8xf32>
    %7 = arith.cmpf ogt, %5, %6 : vector<1024x8xf32>
    %cst_6 = arith.constant 2.000000e-01 : f32
    %8 = vector.broadcast %cst_6 : f32 to vector<1024x8xf32>
    %9 = arith.mulf %8, %5 : vector<1024x8xf32>
    %10 = arith.select %7, %5, %9 : vector<1024x8xi1>, vector<1024x8xf32>
    %11 = arith.truncf %10 : vector<1024x8xf32> to vector<1024x8xbf16>
    %c0_7 = arith.constant 0 : index
    %c0_8 = arith.constant 0 : index
    %12 = vector.load %arg4[%c0_7, %c0_8] : memref<1024x8xbf16, #tpu.memory_space<vmem>>, vector<1024x8xbf16>
    tpu.vector_store %arg4[%c0_7, %c0_8], %11 {strides = array<i32>} : memref<1024x8xbf16, #tpu.memory_space<vmem>>, vector<1024x8xbf16>,
    return
  }
  func.func @transform_0(%arg0: i32) -> (i32, i32) {
    %c0_i32 = arith.constant 0 : i32
    %c0_i32_0 = arith.constant 0 : i32
    return %arg0, %c0_i32 : i32, i32
  }
  func.func @transform_1(%arg0: i32) -> (i32, i32) {
    %c0_i32 = arith.constant 0 : i32
    %c0_i32_0 = arith.constant 0 : i32
    %c0_i32_1 = arith.constant 0 : i32
    return %c0_i32, %c0_i32_0 : i32, i32
  }
  func.func @transform_2(%arg0: i32) -> (i32, i32) {
    %c0_i32 = arith.constant 0 : i32
    %c0_i32_0 = arith.constant 0 : i32
    %c0_i32_1 = arith.constant 0 : i32
    return %c0_i32, %c0_i32_0 : i32, i32
  }
  func.func @transform_3(%arg0: i32) -> (i32, i32) {
    %c0_i32 = arith.constant 0 : i32
    %c0_i32_0 = arith.constant 0 : i32
    return %arg0, %c0_i32 : i32, i32
  }
}

module attributes {stable_mosaic.version = 11 : i64} {
  func.func @_conv_bn_lrelu_kernel(%arg0: i32, %arg1: memref<512x128xbf16, #tpu.memory_space<vmem>>, %arg2: memref<128x16xbf16, #tpu.memory_space<vmem>>, %arg3: memref<1x16xf32, #tpu.memory_space<vmem>>, %arg4: memref<1x16xf32, #tpu.memory_space<vmem>>, %arg5: memref<512x16xbf16, #tpu.memory_space<vmem>>) attributes {dimension_semantics = [#tpu.dimension_semantics<arbitrary>], iteration_bounds = array<i64: 1>, scalar_prefetch = 0 : i64, scratch_operands = 0 : i64, tpu.core_type = #tpu.core_type<tc>, window_params = [{pipeline_mode = #tpu.pipeline_mode<synchronous>, transform_indices = @transform_0, window_bounds = array<i64: 512, 128>}, {pipeline_mode = #tpu.pipeline_mode<synchronous>, transform_indices = @transform_1, window_bounds = array<i64: 128, 16>}, {pipeline_mode = #tpu.pipeline_mode<synchronous>, transform_indices = @transform_2, window_bounds = array<i64: 1, 16>}, {pipeline_mode = #tpu.pipeline_mode<synchronous>, transform_indices = @transform_3, window_bounds = array<i64: 1, 16>}, {pipeline_mode = #tpu.pipeline_mode<synchronous>, transform_indices = @transform_4, window_bounds = array<i64: 512, 16>}]} {
    %c0 = arith.constant 0 : index
    %c0_0 = arith.constant 0 : index
    %0 = vector.load %arg1[%c0, %c0_0] : memref<512x128xbf16, #tpu.memory_space<vmem>>, vector<512x128xbf16>
    %c0_1 = arith.constant 0 : index
    %c0_2 = arith.constant 0 : index
    %1 = vector.load %arg2[%c0_1, %c0_2] : memref<128x16xbf16, #tpu.memory_space<vmem>>, vector<128x16xbf16>
    %cst = arith.constant dense<0.000000e+00> : vector<512x16xf32>
    %2 = tpu.matmul %0, %1, %cst {dimension_numbers = #tpu.dot_dimension_numbers<[1], [0], [0], [1], [0, 0, 1, 1], [], []>} : vector<512x128xbf16>, vector<128x16xbf16>, vector<512x16xf32> -> vector<512x16xf32>
    %cst_3 = arith.constant dense<0.000000e+00> : vector<16xf32>
    %3 = vector.multi_reduction <add>, %2, %cst_3 [0] : vector<512x16xf32> to vector<16xf32>
    %4 = vector.shape_cast %3 : vector<16xf32> to vector<1x16xf32>
    %cst_4 = arith.constant 5.120000e+02 : f32
    %5 = vector.broadcast %cst_4 : f32 to vector<1x16xf32>
    %6 = arith.divf %4, %5 : vector<1x16xf32>
    %7 = vector.broadcast %6 : vector<1x16xf32> to vector<512x16xf32>
    %8 = arith.subf %2, %7 : vector<512x16xf32>
    %9 = arith.mulf %8, %8 : vector<512x16xf32>
    %cst_5 = arith.constant dense<0.000000e+00> : vector<16xf32>
    %10 = vector.multi_reduction <add>, %9, %cst_5 [0] : vector<512x16xf32> to vector<16xf32>
    %11 = vector.shape_cast %10 : vector<16xf32> to vector<1x16xf32>
    %cst_6 = arith.constant 5.120000e+02 : f32
    %12 = vector.broadcast %cst_6 : f32 to vector<1x16xf32>
    %13 = arith.divf %11, %12 : vector<1x16xf32>
    %c0_7 = arith.constant 0 : index
    %c0_8 = arith.constant 0 : index
    %14 = vector.load %arg3[%c0_7, %c0_8] : memref<1x16xf32, #tpu.memory_space<vmem>>, vector<1x16xf32>
    %cst_9 = arith.constant 9.99999974E-6 : f32
    %15 = vector.broadcast %cst_9 : f32 to vector<1x16xf32>
    %16 = arith.addf %13, %15 : vector<1x16xf32>
    %17 = math.rsqrt %16 : vector<1x16xf32>
    %18 = arith.mulf %14, %17 : vector<1x16xf32>
    %19 = vector.broadcast %18 : vector<1x16xf32> to vector<512x16xf32>
    %20 = arith.mulf %8, %19 : vector<512x16xf32>
    %c0_10 = arith.constant 0 : index
    %c0_11 = arith.constant 0 : index
    %21 = vector.load %arg4[%c0_10, %c0_11] : memref<1x16xf32, #tpu.memory_space<vmem>>, vector<1x16xf32>
    %22 = vector.broadcast %21 : vector<1x16xf32> to vector<512x16xf32>
    %23 = arith.addf %20, %22 : vector<512x16xf32>
    %cst_12 = arith.constant 0.000000e+00 : f32
    %24 = vector.broadcast %cst_12 : f32 to vector<512x16xf32>
    %25 = arith.cmpf ogt, %23, %24 : vector<512x16xf32>
    %cst_13 = arith.constant 2.000000e-01 : f32
    %26 = vector.broadcast %cst_13 : f32 to vector<512x16xf32>
    %27 = arith.mulf %26, %23 : vector<512x16xf32>
    %28 = arith.select %25, %23, %27 : vector<512x16xi1>, vector<512x16xf32>
    %29 = arith.truncf %28 : vector<512x16xf32> to vector<512x16xbf16>
    %c0_14 = arith.constant 0 : index
    %c0_15 = arith.constant 0 : index
    %30 = vector.load %arg5[%c0_14, %c0_15] : memref<512x16xbf16, #tpu.memory_space<vmem>>, vector<512x16xbf16>
    tpu.vector_store %arg5[%c0_14, %c0_15], %29 {strides = array<i32>} : memref<512x16xbf16, #tpu.memory_space<vmem>>, vector<512x16xbf16>,
    return
  }
  func.func @transform_0(%arg0: i32) -> (i32, i32) {
    %c0_i32 = arith.constant 0 : i32
    %c0_i32_0 = arith.constant 0 : i32
    %c0_i32_1 = arith.constant 0 : i32
    return %c0_i32, %c0_i32_0 : i32, i32
  }
  func.func @transform_1(%arg0: i32) -> (i32, i32) {
    %c0_i32 = arith.constant 0 : i32
    %c0_i32_0 = arith.constant 0 : i32
    %c0_i32_1 = arith.constant 0 : i32
    return %c0_i32, %c0_i32_0 : i32, i32
  }
  func.func @transform_2(%arg0: i32) -> (i32, i32) {
    %c0_i32 = arith.constant 0 : i32
    %c0_i32_0 = arith.constant 0 : i32
    %c0_i32_1 = arith.constant 0 : i32
    return %c0_i32, %c0_i32_0 : i32, i32
  }
  func.func @transform_3(%arg0: i32) -> (i32, i32) {
    %c0_i32 = arith.constant 0 : i32
    %c0_i32_0 = arith.constant 0 : i32
    %c0_i32_1 = arith.constant 0 : i32
    return %c0_i32, %c0_i32_0 : i32, i32
  }
  func.func @transform_4(%arg0: i32) -> (i32, i32) {
    %c0_i32 = arith.constant 0 : i32
    %c0_i32_0 = arith.constant 0 : i32
    %c0_i32_1 = arith.constant 0 : i32
    return %c0_i32, %c0_i32_0 : i32, i32
  }
}

module attributes {stable_mosaic.version = 11 : i64} {
  func.func @_conv_bn_lrelu_kernel(%arg0: i32, %arg1: memref<128x256xbf16, #tpu.memory_space<vmem>>, %arg2: memref<256x32xbf16, #tpu.memory_space<vmem>>, %arg3: memref<1x32xf32, #tpu.memory_space<vmem>>, %arg4: memref<1x32xf32, #tpu.memory_space<vmem>>, %arg5: memref<128x32xbf16, #tpu.memory_space<vmem>>) attributes {dimension_semantics = [#tpu.dimension_semantics<arbitrary>], iteration_bounds = array<i64: 1>, scalar_prefetch = 0 : i64, scratch_operands = 0 : i64, tpu.core_type = #tpu.core_type<tc>, window_params = [{pipeline_mode = #tpu.pipeline_mode<synchronous>, transform_indices = @transform_0, window_bounds = array<i64: 128, 256>}, {pipeline_mode = #tpu.pipeline_mode<synchronous>, transform_indices = @transform_1, window_bounds = array<i64: 256, 32>}, {pipeline_mode = #tpu.pipeline_mode<synchronous>, transform_indices = @transform_2, window_bounds = array<i64: 1, 32>}, {pipeline_mode = #tpu.pipeline_mode<synchronous>, transform_indices = @transform_3, window_bounds = array<i64: 1, 32>}, {pipeline_mode = #tpu.pipeline_mode<synchronous>, transform_indices = @transform_4, window_bounds = array<i64: 128, 32>}]} {
    %c0 = arith.constant 0 : index
    %c0_0 = arith.constant 0 : index
    %0 = vector.load %arg1[%c0, %c0_0] : memref<128x256xbf16, #tpu.memory_space<vmem>>, vector<128x256xbf16>
    %c0_1 = arith.constant 0 : index
    %c0_2 = arith.constant 0 : index
    %1 = vector.load %arg2[%c0_1, %c0_2] : memref<256x32xbf16, #tpu.memory_space<vmem>>, vector<256x32xbf16>
    %cst = arith.constant dense<0.000000e+00> : vector<128x32xf32>
    %2 = tpu.matmul %0, %1, %cst {dimension_numbers = #tpu.dot_dimension_numbers<[1], [0], [0], [1], [0, 0, 1, 1], [], []>} : vector<128x256xbf16>, vector<256x32xbf16>, vector<128x32xf32> -> vector<128x32xf32>
    %cst_3 = arith.constant dense<0.000000e+00> : vector<32xf32>
    %3 = vector.multi_reduction <add>, %2, %cst_3 [0] : vector<128x32xf32> to vector<32xf32>
    %4 = vector.shape_cast %3 : vector<32xf32> to vector<1x32xf32>
    %cst_4 = arith.constant 1.280000e+02 : f32
    %5 = vector.broadcast %cst_4 : f32 to vector<1x32xf32>
    %6 = arith.divf %4, %5 : vector<1x32xf32>
    %7 = vector.broadcast %6 : vector<1x32xf32> to vector<128x32xf32>
    %8 = arith.subf %2, %7 : vector<128x32xf32>
    %9 = arith.mulf %8, %8 : vector<128x32xf32>
    %cst_5 = arith.constant dense<0.000000e+00> : vector<32xf32>
    %10 = vector.multi_reduction <add>, %9, %cst_5 [0] : vector<128x32xf32> to vector<32xf32>
    %11 = vector.shape_cast %10 : vector<32xf32> to vector<1x32xf32>
    %cst_6 = arith.constant 1.280000e+02 : f32
    %12 = vector.broadcast %cst_6 : f32 to vector<1x32xf32>
    %13 = arith.divf %11, %12 : vector<1x32xf32>
    %c0_7 = arith.constant 0 : index
    %c0_8 = arith.constant 0 : index
    %14 = vector.load %arg3[%c0_7, %c0_8] : memref<1x32xf32, #tpu.memory_space<vmem>>, vector<1x32xf32>
    %cst_9 = arith.constant 9.99999974E-6 : f32
    %15 = vector.broadcast %cst_9 : f32 to vector<1x32xf32>
    %16 = arith.addf %13, %15 : vector<1x32xf32>
    %17 = math.rsqrt %16 : vector<1x32xf32>
    %18 = arith.mulf %14, %17 : vector<1x32xf32>
    %19 = vector.broadcast %18 : vector<1x32xf32> to vector<128x32xf32>
    %20 = arith.mulf %8, %19 : vector<128x32xf32>
    %c0_10 = arith.constant 0 : index
    %c0_11 = arith.constant 0 : index
    %21 = vector.load %arg4[%c0_10, %c0_11] : memref<1x32xf32, #tpu.memory_space<vmem>>, vector<1x32xf32>
    %22 = vector.broadcast %21 : vector<1x32xf32> to vector<128x32xf32>
    %23 = arith.addf %20, %22 : vector<128x32xf32>
    %cst_12 = arith.constant 0.000000e+00 : f32
    %24 = vector.broadcast %cst_12 : f32 to vector<128x32xf32>
    %25 = arith.cmpf ogt, %23, %24 : vector<128x32xf32>
    %cst_13 = arith.constant 2.000000e-01 : f32
    %26 = vector.broadcast %cst_13 : f32 to vector<128x32xf32>
    %27 = arith.mulf %26, %23 : vector<128x32xf32>
    %28 = arith.select %25, %23, %27 : vector<128x32xi1>, vector<128x32xf32>
    %29 = arith.truncf %28 : vector<128x32xf32> to vector<128x32xbf16>
    %c0_14 = arith.constant 0 : index
    %c0_15 = arith.constant 0 : index
    %30 = vector.load %arg5[%c0_14, %c0_15] : memref<128x32xbf16, #tpu.memory_space<vmem>>, vector<128x32xbf16>
    tpu.vector_store %arg5[%c0_14, %c0_15], %29 {strides = array<i32>} : memref<128x32xbf16, #tpu.memory_space<vmem>>, vector<128x32xbf16>,
    return
  }
  func.func @transform_0(%arg0: i32) -> (i32, i32) {
    %c0_i32 = arith.constant 0 : i32
    %c0_i32_0 = arith.constant 0 : i32
    %c0_i32_1 = arith.constant 0 : i32
    return %c0_i32, %c0_i32_0 : i32, i32
  }
  func.func @transform_1(%arg0: i32) -> (i32, i32) {
    %c0_i32 = arith.constant 0 : i32
    %c0_i32_0 = arith.constant 0 : i32
    %c0_i32_1 = arith.constant 0 : i32
    return %c0_i32, %c0_i32_0 : i32, i32
  }
  func.func @transform_2(%arg0: i32) -> (i32, i32) {
    %c0_i32 = arith.constant 0 : i32
    %c0_i32_0 = arith.constant 0 : i32
    %c0_i32_1 = arith.constant 0 : i32
    return %c0_i32, %c0_i32_0 : i32, i32
  }
  func.func @transform_3(%arg0: i32) -> (i32, i32) {
    %c0_i32 = arith.constant 0 : i32
    %c0_i32_0 = arith.constant 0 : i32
    %c0_i32_1 = arith.constant 0 : i32
    return %c0_i32, %c0_i32_0 : i32, i32
  }
  func.func @transform_4(%arg0: i32) -> (i32, i32) {
    %c0_i32 = arith.constant 0 : i32
    %c0_i32_0 = arith.constant 0 : i32
    %c0_i32_1 = arith.constant 0 : i32
    return %c0_i32, %c0_i32_0 : i32, i32
  }
}

module attributes {stable_mosaic.version = 11 : i64} {
  func.func @_conv_bn_lrelu_head_kernel(%arg0: i32, %arg1: memref<32x512xbf16, #tpu.memory_space<vmem>>, %arg2: memref<512x64xbf16, #tpu.memory_space<vmem>>, %arg3: memref<1x64xf32, #tpu.memory_space<vmem>>, %arg4: memref<1x64xf32, #tpu.memory_space<vmem>>, %arg5: memref<16x64xf32, #tpu.memory_space<vmem>>, %arg6: memref<1x1xf32, #tpu.memory_space<vmem>>, %arg7: memref<2x1xf32, #tpu.memory_space<vmem>>) attributes {dimension_semantics = [#tpu.dimension_semantics<arbitrary>], iteration_bounds = array<i64: 1>, scalar_prefetch = 0 : i64, scratch_operands = 0 : i64, tpu.core_type = #tpu.core_type<tc>, window_params = [{pipeline_mode = #tpu.pipeline_mode<synchronous>, transform_indices = @transform_0, window_bounds = array<i64: 32, 512>}, {pipeline_mode = #tpu.pipeline_mode<synchronous>, transform_indices = @transform_1, window_bounds = array<i64: 512, 64>}, {pipeline_mode = #tpu.pipeline_mode<synchronous>, transform_indices = @transform_2, window_bounds = array<i64: 1, 64>}, {pipeline_mode = #tpu.pipeline_mode<synchronous>, transform_indices = @transform_3, window_bounds = array<i64: 1, 64>}, {pipeline_mode = #tpu.pipeline_mode<synchronous>, transform_indices = @transform_4, window_bounds = array<i64: 16, 64>}, {pipeline_mode = #tpu.pipeline_mode<synchronous>, transform_indices = @transform_5, window_bounds = array<i64: 1, 1>}, {pipeline_mode = #tpu.pipeline_mode<synchronous>, transform_indices = @transform_6, window_bounds = array<i64: 2, 1>}]} {
    %c0 = arith.constant 0 : index
    %c0_0 = arith.constant 0 : index
    %0 = vector.load %arg1[%c0, %c0_0] : memref<32x512xbf16, #tpu.memory_space<vmem>>, vector<32x512xbf16>
    %c0_1 = arith.constant 0 : index
    %c0_2 = arith.constant 0 : index
    %1 = vector.load %arg2[%c0_1, %c0_2] : memref<512x64xbf16, #tpu.memory_space<vmem>>, vector<512x64xbf16>
    %cst = arith.constant dense<0.000000e+00> : vector<32x64xf32>
    %2 = tpu.matmul %0, %1, %cst {dimension_numbers = #tpu.dot_dimension_numbers<[1], [0], [0], [1], [0, 0, 1, 1], [], []>} : vector<32x512xbf16>, vector<512x64xbf16>, vector<32x64xf32> -> vector<32x64xf32>
    %cst_3 = arith.constant dense<0.000000e+00> : vector<64xf32>
    %3 = vector.multi_reduction <add>, %2, %cst_3 [0] : vector<32x64xf32> to vector<64xf32>
    %4 = vector.shape_cast %3 : vector<64xf32> to vector<1x64xf32>
    %cst_4 = arith.constant 3.200000e+01 : f32
    %5 = vector.broadcast %cst_4 : f32 to vector<1x64xf32>
    %6 = arith.divf %4, %5 : vector<1x64xf32>
    %7 = vector.broadcast %6 : vector<1x64xf32> to vector<32x64xf32>
    %8 = arith.subf %2, %7 : vector<32x64xf32>
    %9 = arith.mulf %8, %8 : vector<32x64xf32>
    %cst_5 = arith.constant dense<0.000000e+00> : vector<64xf32>
    %10 = vector.multi_reduction <add>, %9, %cst_5 [0] : vector<32x64xf32> to vector<64xf32>
    %11 = vector.shape_cast %10 : vector<64xf32> to vector<1x64xf32>
    %cst_6 = arith.constant 3.200000e+01 : f32
    %12 = vector.broadcast %cst_6 : f32 to vector<1x64xf32>
    %13 = arith.divf %11, %12 : vector<1x64xf32>
    %c0_7 = arith.constant 0 : index
    %c0_8 = arith.constant 0 : index
    %14 = vector.load %arg3[%c0_7, %c0_8] : memref<1x64xf32, #tpu.memory_space<vmem>>, vector<1x64xf32>
    %cst_9 = arith.constant 9.99999974E-6 : f32
    %15 = vector.broadcast %cst_9 : f32 to vector<1x64xf32>
    %16 = arith.addf %13, %15 : vector<1x64xf32>
    %17 = math.rsqrt %16 : vector<1x64xf32>
    %18 = arith.mulf %14, %17 : vector<1x64xf32>
    %19 = vector.broadcast %18 : vector<1x64xf32> to vector<32x64xf32>
    %20 = arith.mulf %8, %19 : vector<32x64xf32>
    %c0_10 = arith.constant 0 : index
    %c0_11 = arith.constant 0 : index
    %21 = vector.load %arg4[%c0_10, %c0_11] : memref<1x64xf32, #tpu.memory_space<vmem>>, vector<1x64xf32>
    %22 = vector.broadcast %21 : vector<1x64xf32> to vector<32x64xf32>
    %23 = arith.addf %20, %22 : vector<32x64xf32>
    %cst_12 = arith.constant 0.000000e+00 : f32
    %24 = vector.broadcast %cst_12 : f32 to vector<32x64xf32>
    %25 = arith.cmpf ogt, %23, %24 : vector<32x64xf32>
    %cst_13 = arith.constant 2.000000e-01 : f32
    %26 = vector.broadcast %cst_13 : f32 to vector<32x64xf32>
    %27 = arith.mulf %26, %23 : vector<32x64xf32>
    %28 = arith.select %25, %23, %27 : vector<32x64xi1>, vector<32x64xf32>
    %29 = vector.shape_cast %28 : vector<32x64xf32> to vector<2x16x64xf32>
    %c0_14 = arith.constant 0 : index
    %c0_15 = arith.constant 0 : index
    %30 = vector.load %arg5[%c0_14, %c0_15] : memref<16x64xf32, #tpu.memory_space<vmem>>, vector<16x64xf32>
    %31 = vector.shape_cast %30 : vector<16x64xf32> to vector<1x16x64xf32>
    %32 = vector.broadcast %31 : vector<1x16x64xf32> to vector<2x16x64xf32>
    %33 = arith.mulf %29, %32 : vector<2x16x64xf32>
    %cst_16 = arith.constant dense<0.000000e+00> : vector<2x64xf32>
    %34 = vector.multi_reduction <add>, %33, %cst_16 [1] : vector<2x16x64xf32> to vector<2x64xf32>
    %cst_17 = arith.constant dense<0.000000e+00> : vector<2xf32>
    %35 = vector.multi_reduction <add>, %34, %cst_17 [1] : vector<2x64xf32> to vector<2xf32>
    %36 = vector.shape_cast %35 : vector<2xf32> to vector<2x1xf32>
    %c0_18 = arith.constant 0 : index
    %c0_19 = arith.constant 0 : index
    %37 = vector.load %arg6[%c0_18, %c0_19] : memref<1x1xf32, #tpu.memory_space<vmem>>, vector<1x1xf32>
    %38 = vector.broadcast %37 : vector<1x1xf32> to vector<2x1xf32>
    %39 = arith.addf %36, %38 : vector<2x1xf32>
    %cst_20 = arith.constant 0.000000e+00 : f32
    %40 = vector.broadcast %cst_20 : f32 to vector<2x1xf32>
    %41 = arith.subf %40, %39 : vector<2x1xf32>
    %42 = math.exp %41 : vector<2x1xf32>
    %cst_21 = arith.constant 1.000000e+00 : f32
    %43 = vector.broadcast %cst_21 : f32 to vector<2x1xf32>
    %44 = arith.addf %43, %42 : vector<2x1xf32>
    %cst_22 = arith.constant 1.000000e+00 : f32
    %45 = vector.broadcast %cst_22 : f32 to vector<2x1xf32>
    %46 = arith.divf %45, %44 : vector<2x1xf32>
    %c0_23 = arith.constant 0 : index
    %c0_24 = arith.constant 0 : index
    %47 = vector.load %arg7[%c0_23, %c0_24] : memref<2x1xf32, #tpu.memory_space<vmem>>, vector<2x1xf32>
    tpu.vector_store %arg7[%c0_23, %c0_24], %46 {strides = array<i32>} : memref<2x1xf32, #tpu.memory_space<vmem>>, vector<2x1xf32>,
    return
  }
  func.func @transform_0(%arg0: i32) -> (i32, i32) {
    %c0_i32 = arith.constant 0 : i32
    %c0_i32_0 = arith.constant 0 : i32
    %c0_i32_1 = arith.constant 0 : i32
    return %c0_i32, %c0_i32_0 : i32, i32
  }
  func.func @transform_1(%arg0: i32) -> (i32, i32) {
    %c0_i32 = arith.constant 0 : i32
    %c0_i32_0 = arith.constant 0 : i32
    %c0_i32_1 = arith.constant 0 : i32
    return %c0_i32, %c0_i32_0 : i32, i32
  }
  func.func @transform_2(%arg0: i32) -> (i32, i32) {
    %c0_i32 = arith.constant 0 : i32
    %c0_i32_0 = arith.constant 0 : i32
    %c0_i32_1 = arith.constant 0 : i32
    return %c0_i32, %c0_i32_0 : i32, i32
  }
  func.func @transform_3(%arg0: i32) -> (i32, i32) {
    %c0_i32 = arith.constant 0 : i32
    %c0_i32_0 = arith.constant 0 : i32
    %c0_i32_1 = arith.constant 0 : i32
    return %c0_i32, %c0_i32_0 : i32, i32
  }
  func.func @transform_4(%arg0: i32) -> (i32, i32) {
    %c0_i32 = arith.constant 0 : i32
    %c0_i32_0 = arith.constant 0 : i32
    %c0_i32_1 = arith.constant 0 : i32
    return %c0_i32, %c0_i32_0 : i32, i32
  }
  func.func @transform_5(%arg0: i32) -> (i32, i32) {
    %c0_i32 = arith.constant 0 : i32
    %c0_i32_0 = arith.constant 0 : i32
    %c0_i32_1 = arith.constant 0 : i32
    return %c0_i32, %c0_i32_0 : i32, i32
  }
  func.func @transform_6(%arg0: i32) -> (i32, i32) {
    %c0_i32 = arith.constant 0 : i32
    %c0_i32_0 = arith.constant 0 : i32
    %c0_i32_1 = arith.constant 0 : i32
    return %c0_i32, %c0_i32_0 : i32, i32
  }
}

</mosaic_0001>

<llo_original>
// kernel: discriminator_forward.4
$region0: #{discriminator_forward.4}
  #allocation0 [shape = 'u32[]', space=smem, size = 0x4, offset = 0x4, fixed_abs, tag = 'smem constant byte address 0x4 - core index']
  #allocation1 [shape = 'u32[72,128]{1,0:T(1,128)}', space=vmem, size = 0x9000, scoped, tag = 'internal scratch']
  %s0 = inlined_call_operand.vmem [shape: bf16[2048,128], index: 0, kind: input, shape index: {}]
  %s1 = inlined_call_operand.vmem [shape: bf16[128,8], index: 1, kind: input, shape index: {}]
  %s2 = inlined_call_operand.vmem [shape: f32[1,8], index: 2, kind: input, shape index: {}]
  %s3 = inlined_call_operand.vmem [shape: bf16[2048,8], index: 3, kind: output, shape index: {}]
  %s4 = sld [smem:[#allocation0]]
  $region45: #{discriminator_forward.4} parent=0
    _
  %s6 = ssub.s32 1, %s4
  %s7 = scalar_select 0, %s6, %s4
  loop: start=0, step=1, limit=4
  $region2: #{discriminator_forward.4} parent=0 // loop_pre_header
    _
  $region3: #{discriminator_forward.4} parent=0 // loop_header
    %s9 = sphi 0, %s13
    %p10 = scmp.ge.s32.totalorder %s9, 4
    %s19 = sphi 0, %s21
    %s22 = sphi 0, %s19
    %s23 = sphi 0, %s22
    %s39 = sphi 0, %s23
    %s43 = sphi 0, %s43
    %s45 = sphi 0, %s43
    %s46 = sphi 0, %s45
    %s60 = sphi 0, %s46
    %s64 = sphi 0, %s64
    %s66 = sphi 0, %s64
    %s67 = sphi 0, %s66
    %s81 = sphi 0, %s67
    %s87 = sphi 0, %s89
    %s90 = sphi 0, %s87
    %s91 = sphi 0, %s90
    %s107 = sphi 0, %s91
  $region4: #{discriminator_forward.4} parent=0 // loop_header_branch
    %12 = sbr.rel (%p10) target = $region8
  $region5: #{discriminator_forward.4} parent=0 // loop_body
    %s14 = ssub.s32 %s9, 1
    %s15 = ssub.s32 %s9, 2
    %s16 = sadd.s32 %s9, 1
    %s17 = ssub.s32 %s9, %s16
    %p18 = scmp.eq.s32.totalorder %s17, 0
    %s20 = sadd.s32 %s19, 1
    %s21 = scalar_select %p18, %s19, %s20
    %p24 = pneg %p18
    %p25 = scmp.eq.s32.totalorder %s9, 1
    %p26 = por %p24, %p25
    %p27 = scmp.ne.s32.totalorder %s19, %s22
    %p28 = scmp.eq.s32.totalorder %s9, 0
    %p29 = por %p27, %p28
    %p30 = scmp.ne.s32.totalorder %s19, %s22
    %p31 = scmp.eq.s32.totalorder %s14, 1
    %p32 = por %p30, %p31
    %p33 = scmp.ne.s32.totalorder %s22, %s23
    %p34 = scmp.eq.s32.totalorder %s14, 0
    %p35 = por %p33, %p34
    %p36 = scmp.ne.s32.totalorder %s22, %s23
    %p37 = scmp.eq.s32.totalorder %s15, 1
    %p38 = por %p36, %p37
    %p40 = scmp.ne.s32.totalorder %s23, %s39
    %p41 = scmp.eq.s32.totalorder %s15, 0
    %p42 = por %p40, %p41
    %s44 = sadd.s32 %s43, 1
    %p47 = scmp.eq.s32.totalorder %s9, 1
    %p48 = scmp.ne.s32.totalorder %s43, %s45
    %p49 = scmp.eq.s32.totalorder %s9, 0
    %p50 = por %p48, %p49
    %p51 = scmp.ne.s32.totalorder %s43, %s45
    %p52 = scmp.eq.s32.totalorder %s14, 1
    %p53 = por %p51, %p52
    %p54 = scmp.ne.s32.totalorder %s45, %s46
    %p55 = scmp.eq.s32.totalorder %s14, 0
    %p56 = por %p54, %p55
    %p57 = scmp.ne.s32.totalorder %s45, %s46
    %p58 = scmp.eq.s32.totalorder %s15, 1
    %p59 = por %p57, %p58
    %p61 = scmp.ne.s32.totalorder %s46, %s60
    %p62 = scmp.eq.s32.totalorder %s15, 0
    %p63 = por %p61, %p62
    %s65 = sadd.s32 %s64, 1
    %p68 = scmp.eq.s32.totalorder %s9, 1
    %p69 = scmp.ne.s32.totalorder %s64, %s66
    %p70 = scmp.eq.s32.totalorder %s9, 0
    %p71 = por %p69, %p70
    %p72 = scmp.ne.s32.totalorder %s64, %s66
    %p73 = scmp.eq.s32.totalorder %s14, 1
    %p74 = por %p72, %p73
    %p75 = scmp.ne.s32.totalorder %s66, %s67
    %p76 = scmp.eq.s32.totalorder %s14, 0
    %p77 = por %p75, %p76
    %p78 = scmp.ne.s32.totalorder %s66, %s67
    %p79 = scmp.eq.s32.totalorder %s15, 1
    %p80 = por %p78, %p79
    %p82 = scmp.ne.s32.totalorder %s67, %s81
    %p83 = scmp.eq.s32.totalorder %s15, 0
    %p84 = por %p82, %p83
    %s85 = ssub.s32 %s9, %s16
    %p86 = scmp.eq.s32.totalorder %s85, 0
    %s88 = sadd.s32 %s87, 1
    %s89 = scalar_select %p86, %s87, %s88
    %p92 = pneg %p86
    %p93 = scmp.eq.s32.totalorder %s9, 1
    %p94 = por %p92, %p93
    %p95 = scmp.ne.s32.totalorder %s87, %s90
    %p96 = scmp.eq.s32.totalorder %s9, 0
    %p97 = por %p95, %p96
    %p98 = scmp.ne.s32.totalorder %s87, %s90
    %p99 = scmp.eq.s32.totalorder %s14, 1
    %p100 = por %p98, %p99
    %p101 = scmp.ne.s32.totalorder %s90, %s91
    %p102 = scmp.eq.s32.totalorder %s14, 0
    %p103 = por %p101, %p102
    %p104 = scmp.ne.s32.totalorder %s90, %s91
    %p105 = scmp.eq.s32.totalorder %s15, 1
    %p106 = por %p104, %p105
    %p108 = scmp.ne.s32.totalorder %s91, %s107
    %p109 = scmp.eq.s32.totalorder %s15, 0
    %p110 = por %p108, %p109
    %p111 = scmp.le.s32.totalorder 1, %s9
    %p112 = scmp.lt.s32.totalorder %s9, 3
    %p113 = pnand %p111, %p112
    %p114 = pneg %p113
    // Predicated region
    $region9: #{discriminator_forward.4} parent=5 // pred_check
      _
    $region10: #{discriminator_forward.4} parent=5 // pred_check_branch
      %116 = sbr.rel (%p113) target = $region12
    $region11: #{discriminator_forward.4} parent=5 // pred_region
      %s117 = ssub.s32 %s9, 1
      // Predicated region
      $region13: #{discriminator_forward.4} parent=11 // pred_check
        %p118 = pneg %p56
      $region14: #{discriminator_forward.4} parent=11 // pred_check_branch
        %120 = sbr.rel (%p118) target = $region16
      $region15: #{discriminator_forward.4} parent=11 // pred_region
        _
      $region16: #{discriminator_forward.4} parent=11 // pred_fallthru
        _
      // Predicated region
      $region17: #{discriminator_forward.4} parent=11 // pred_check
        %p121 = pneg %p77
      $region18: #{discriminator_forward.4} parent=11 // pred_check_branch
        %123 = sbr.rel (%p121) target = $region20
      $region19: #{discriminator_forward.4} parent=11 // pred_region
        _
      $region20: #{discriminator_forward.4} parent=11 // pred_fallthru
        _
    $region12: #{discriminator_forward.4} parent=5 // pred_fallthru
      _
    %p124 = scmp.lt.s32.totalorder %s9, 2
    // Predicated region
    $region21: #{discriminator_forward.4} parent=5 // pred_check
      %p125 = pneg %p124
    $region22: #{discriminator_forward.4} parent=5 // pred_check_branch
      %127 = sbr.rel (%p125) target = $region24
    $region23: #{discriminator_forward.4} parent=5 // pred_region
      // Predicated region
      $region25: #{discriminator_forward.4} parent=23 // pred_check
        %p128 = pneg %p29
      $region26: #{discriminator_forward.4} parent=23 // pred_check_branch
        %130 = sbr.rel (%p128) target = $region28
      $region27: #{discriminator_forward.4} parent=23 // pred_region
        %s131 = smul.u32 128, %s9
        %p132 = scmp.lt.s32.totalorder %s131, 255
        %s133 = scalar_select %p132, %s131, 255
        %s134 = smul.addr %s133, 4
        %s135 = scalar_lea.vmem %s0, %s134
        %s136 = smul.u32 128, %s9
      $region28: #{discriminator_forward.4} parent=23 // pred_fallthru
        _
    $region24: #{discriminator_forward.4} parent=5 // pred_fallthru
      _
    %p137 = scmp.le.s32.totalorder 1, %s9
    %p138 = scmp.lt.s32.totalorder %s9, 3
    %p139 = pnand %p137, %p138
    %p140 = pneg %p139
    // Predicated region
    $region29: #{discriminator_forward.4} parent=5 // pred_check
      _
    $region30: #{discriminator_forward.4} parent=5 // pred_check_branch
      %142 = sbr.rel (%p139) target = $region32
    $region31: #{discriminator_forward.4} parent=5 // pred_region
      %s143 = ssub.s32 %s9, 1
      %s144 = smul.u32 128, %s14
      %p145 = scmp.lt.s32.totalorder %s144, 255
      %s146 = scalar_select %p145, %s144, 255
      %s147 = smul.addr %s146, 4
      %s148 = scalar_lea.vmem %s0, %s147
      %p149 = pneg %p35
      %p150 = pneg %p32
      %p151 = pneg %p56
      %p152 = pneg %p53
      %p153 = pneg %p77
      %p154 = pneg %p74
      %p155 = pneg %p103
      %p156 = pneg %p100
      %s157 = smul.u32 128, %s14
      %p158 = scmp.lt.s32.totalorder %s157, 255
      %s159 = scalar_select %p158, %s157, 255
      %s160 = smul.addr %s159, 4
      %s161 = scalar_lea.vmem %s3, %s160
      %s162 = smul.u32 128, %s14
      %p163 = scmp.lt.s32.totalorder %s162, 255
      %s164 = scalar_select %p163, %s162, 255
      %s165 = smul.addr %s164, 4
      %s166 = scalar_lea.vmem %s0, %s165
      %s167 = smul.u32 128, %s14
      %s168 = smul.u32 128, %s14
      %p169 = scmp.lt.s32.totalorder %s168, 255
      %s170 = scalar_select %p169, %s168, 255
      %s171 = smul.addr %s170, 4
      %s172 = scalar_lea.vmem %s3, %s171
      %s173 = smul.u32 128, %s14
      %v174 = vld [vmem:[%s166] sm:$0xf]
      %v175 = vld [vmem:[%s166 + $0x4] sm:$0xf]
      %v176 = vld [vmem:[%s166 + $0x8] sm:$0xf]
      %v177 = vld [vmem:[%s166 + $0xc] sm:$0xf]
      %v178 = vld [vmem:[%s166 + $0x10] sm:$0xf]
      %v179 = vld [vmem:[%s166 + $0x14] sm:$0xf]
      %v180 = vld [vmem:[%s166 + $0x18] sm:$0xf]
      %v181 = vld [vmem:[%s166 + $0x1c] sm:$0xf]
      %v182 = vld [vmem:[%s166 + $0x20] sm:$0xf]
      %v183 = vld [vmem:[%s166 + $0x24] sm:$0xf]
      %v184 = vld [vmem:[%s166 + $0x28] sm:$0xf]
      %v185 = vld [vmem:[%s166 + $0x2c] sm:$0xf]
      %v186 = vld [vmem:[%s166 + $0x30] sm:$0xf]
      %v187 = vld [vmem:[%s166 + $0x34] sm:$0xf]
      %v188 = vld [vmem:[%s166 + $0x38] sm:$0xf]
      %v189 = vld [vmem:[%s166 + $0x3c] sm:$0xf]
      %v190 = vld [vmem:[%s166 + $0x40] sm:$0xf]
      %v191 = vld [vmem:[%s166 + $0x44] sm:$0xf]
      %v192 = vld [vmem:[%s166 + $0x48] sm:$0xf]
      %v193 = vld [vmem:[%s166 + $0x4c] sm:$0xf]
      %v194 = vld [vmem:[%s166 + $0x50] sm:$0xf]
      %v195 = vld [vmem:[%s166 + $0x54] sm:$0xf]
      %v196 = vld [vmem:[%s166 + $0x58] sm:$0xf]
      %v197 = vld [vmem:[%s166 + $0x5c] sm:$0xf]
      %v198 = vld [vmem:[%s166 + $0x60] sm:$0xf]
      %v199 = vld [vmem:[%s166 + $0x64] sm:$0xf]
      %v200 = vld [vmem:[%s166 + $0x68] sm:$0xf]
      %v201 = vld [vmem:[%s166 + $0x6c] sm:$0xf]
      %v202 = vld [vmem:[%s166 + $0x70] sm:$0xf]
      %v203 = vld [vmem:[%s166 + $0x74] sm:$0xf]
      %v204 = vld [vmem:[%s166 + $0x78] sm:$0xf]
      %v205 = vld [vmem:[%s166 + $0x7c] sm:$0xf]
      %v206 = vld [vmem:[%s166 + $0x80] sm:$0xf]
      %v207 = vld [vmem:[%s166 + $0x84] sm:$0xf]
      %v208 = vld [vmem:[%s166 + $0x88] sm:$0xf]
      %v209 = vld [vmem:[%s166 + $0x8c] sm:$0xf]
      %v210 = vld [vmem:[%s166 + $0x90] sm:$0xf]
      %v211 = vld [vmem:[%s166 + $0x94] sm:$0xf]
      %v212 = vld [vmem:[%s166 + $0x98] sm:$0xf]
      %v213 = vld [vmem:[%s166 + $0x9c] sm:$0xf]
      %v214 = vld [vmem:[%s166 + $0xa0] sm:$0xf]
      %v215 = vld [vmem:[%s166 + $0xa4] sm:$0xf]
      %v216 = vld [vmem:[%s166 + $0xa8] sm:$0xf]
      %v217 = vld [vmem:[%s166 + $0xac] sm:$0xf]
      %v218 = vld [vmem:[%s166 + $0xb0] sm:$0xf]
      %v219 = vld [vmem:[%s166 + $0xb4] sm:$0xf]
      %v220 = vld [vmem:[%s166 + $0xb8] sm:$0xf]
      %v221 = vld [vmem:[%s166 + $0xbc] sm:$0xf]
      %v222 = vld [vmem:[%s166 + $0xc0] sm:$0xf]
      %v223 = vld [vmem:[%s166 + $0xc4] sm:$0xf]
      %v224 = vld [vmem:[%s166 + $0xc8] sm:$0xf]
      %v225 = vld [vmem:[%s166 + $0xcc] sm:$0xf]
      %v226 = vld [vmem:[%s166 + $0xd0] sm:$0xf]
      %v227 = vld [vmem:[%s166 + $0xd4] sm:$0xf]
      %v228 = vld [vmem:[%s166 + $0xd8] sm:$0xf]
      %v229 = vld [vmem:[%s166 + $0xdc] sm:$0xf]
      %v230 = vld [vmem:[%s166 + $0xe0] sm:$0xf]
      %v231 = vld [vmem:[%s166 + $0xe4] sm:$0xf]
      %v232 = vld [vmem:[%s166 + $0xe8] sm:$0xf]
      %v233 = vld [vmem:[%s166 + $0xec] sm:$0xf]
      %v234 = vld [vmem:[%s166 + $0xf0] sm:$0xf]
      %v235 = vld [vmem:[%s166 + $0xf4] sm:$0xf]
      %v236 = vld [vmem:[%s166 + $0xf8] sm:$0xf]
      %v237 = vld [vmem:[%s166 + $0xfc] sm:$0xf]
      %v238 = vld [vmem:[%s166 + $0x100] sm:$0xf]
      %v239 = vld [vmem:[%s166 + $0x104] sm:$0xf]
      %v240 = vld [vmem:[%s166 + $0x108] sm:$0xf]
      %v241 = vld [vmem:[%s166 + $0x10c] sm:$0xf]
      %v242 = vld [vmem:[%s166 + $0x110] sm:$0xf]
      %v243 = vld [vmem:[%s166 + $0x114] sm:$0xf]
      %v244 = vld [vmem:[%s166 + $0x118] sm:$0xf]
      %v245 = vld [vmem:[%s166 + $0x11c] sm:$0xf]
      %v246 = vld [vmem:[%s166 + $0x120] sm:$0xf]
      %v247 = vld [vmem:[%s166 + $0x124] sm:$0xf]
      %v248 = vld [vmem:[%s166 + $0x128] sm:$0xf]
      %v249 = vld [vmem:[%s166 + $0x12c] sm:$0xf]
      %v250 = vld [vmem:[%s166 + $0x130] sm:$0xf]
      %v251 = vld [vmem:[%s166 + $0x134] sm:$0xf]
      %v252 = vld [vmem:[%s166 + $0x138] sm:$0xf]
      %v253 = vld [vmem:[%s166 + $0x13c] sm:$0xf]
      %v254 = vld [vmem:[%s166 + $0x140] sm:$0xf]
      %v255 = vld [vmem:[%s166 + $0x144] sm:$0xf]
      %v256 = vld [vmem:[%s166 + $0x148] sm:$0xf]
      %v257 = vld [vmem:[%s166 + $0x14c] sm:$0xf]
      %v258 = vld [vmem:[%s166 + $0x150] sm:$0xf]
      %v259 = vld [vmem:[%s166 + $0x154] sm:$0xf]
      %v260 = vld [vmem:[%s166 + $0x158] sm:$0xf]
      %v261 = vld [vmem:[%s166 + $0x15c] sm:$0xf]
      %v262 = vld [vmem:[%s166 + $0x160] sm:$0xf]
      %v263 = vld [vmem:[%s166 + $0x164] sm:$0xf]
      %v264 = vld [vmem:[%s166 + $0x168] sm:$0xf]
      %v265 = vld [vmem:[%s166 + $0x16c] sm:$0xf]
      %v266 = vld [vmem:[%s166 + $0x170] sm:$0xf]
      %v267 = vld [vmem:[%s166 + $0x174] sm:$0xf]
      %v268 = vld [vmem:[%s166 + $0x178] sm:$0xf]
      %v269 = vld [vmem:[%s166 + $0x17c] sm:$0xf]
      %v270 = vld [vmem:[%s166 + $0x180] sm:$0xf]
      %v271 = vld [vmem:[%s166 + $0x184] sm:$0xf]
      %v272 = vld [vmem:[%s166 + $0x188] sm:$0xf]
      %v273 = vld [vmem:[%s166 + $0x18c] sm:$0xf]
      %v274 = vld [vmem:[%s166 + $0x190] sm:$0xf]
      %v275 = vld [vmem:[%s166 + $0x194] sm:$0xf]
      %v276 = vld [vmem:[%s166 + $0x198] sm:$0xf]
      %v277 = vld [vmem:[%s166 + $0x19c] sm:$0xf]
      %v278 = vld [vmem:[%s166 + $0x1a0] sm:$0xf]
      %v279 = vld [vmem:[%s166 + $0x1a4] sm:$0xf]
      %v280 = vld [vmem:[%s166 + $0x1a8] sm:$0xf]
      %v281 = vld [vmem:[%s166 + $0x1ac] sm:$0xf]
      %v282 = vld [vmem:[%s166 + $0x1b0] sm:$0xf]
      %v283 = vld [vmem:[%s166 + $0x1b4] sm:$0xf]
      %v284 = vld [vmem:[%s166 + $0x1b8] sm:$0xf]
      %v285 = vld [vmem:[%s166 + $0x1bc] sm:$0xf]
      %v286 = vld [vmem:[%s166 + $0x1c0] sm:$0xf]
      %v287 = vld [vmem:[%s166 + $0x1c4] sm:$0xf]
      %v288 = vld [vmem:[%s166 + $0x1c8] sm:$0xf]
      %v289 = vld [vmem:[%s166 + $0x1cc] sm:$0xf]
      %v290 = vld [vmem:[%s166 + $0x1d0] sm:$0xf]
      %v291 = vld [vmem:[%s166 + $0x1d4] sm:$0xf]
      %v292 = vld [vmem:[%s166 + $0x1d8] sm:$0xf]
      %v293 = vld [vmem:[%s166 + $0x1dc] sm:$0xf]
      %v294 = vld [vmem:[%s166 + $0x1e0] sm:$0xf]
      %v295 = vld [vmem:[%s166 + $0x1e4] sm:$0xf]
      %v296 = vld [vmem:[%s166 + $0x1e8] sm:$0xf]
      %v297 = vld [vmem:[%s166 + $0x1ec] sm:$0xf]
      %v298 = vld [vmem:[%s166 + $0x1f0] sm:$0xf]
      %v299 = vld [vmem:[%s166 + $0x1f4] sm:$0xf]
      %v300 = vld [vmem:[%s166 + $0x1f8] sm:$0xf]
      %v301 = vld [vmem:[%s166 + $0x1fc] sm:$0xf]
      %v302 = vld [vmem:[%s1] sm:$0xf]
      %v303 = vld [vmem:[%s1 + $0x4] sm:$0xf]
      %v304 = vld [vmem:[%s1 + $0x8] sm:$0xf]
      %v305 = vld [vmem:[%s1 + $0xc] sm:$0xf]
      %v306 = vld [vmem:[%s1 + $0x10] sm:$0xf]
      %v307 = vld [vmem:[%s1 + $0x14] sm:$0xf]
      %v308 = vld [vmem:[%s1 + $0x18] sm:$0xf]
      %v309 = vld [vmem:[%s1 + $0x1c] sm:$0xf]
      %v310 = vld [vmem:[%s1 + $0x20] sm:$0xf]
      %v311 = vld [vmem:[%s1 + $0x24] sm:$0xf]
      %v312 = vld [vmem:[%s1 + $0x28] sm:$0xf]
      %v313 = vld [vmem:[%s1 + $0x2c] sm:$0xf]
      %v314 = vld [vmem:[%s1 + $0x30] sm:$0xf]
      %v315 = vld [vmem:[%s1 + $0x34] sm:$0xf]
      %v316 = vld [vmem:[%s1 + $0x38] sm:$0xf]
      %v317 = vld [vmem:[%s1 + $0x3c] sm:$0xf]
      %v318 = vld [vmem:[%s2] sm:$0x1]
      %v320 = vperm.slane %v318, 0
      %v450 = vunpack.c.l.b16 %v174
      %v451 = vunpack.c.l.b16 %v175
      %v452 = vunpack.c.l.b16 %v176
      %v453 = vunpack.c.l.b16 %v177
      %v454 = vunpack.c.l.b16 %v178
      %v455 = vunpack.c.l.b16 %v179
      %v456 = vunpack.c.l.b16 %v180
      %v457 = vunpack.c.l.b16 %v181
      %v458 = vunpack.c.l.b16 %v182
      %v459 = vunpack.c.l.b16 %v183
      %v460 = vunpack.c.l.b16 %v184
      %v461 = vunpack.c.l.b16 %v185
      %v462 = vunpack.c.l.b16 %v186
      %v463 = vunpack.c.l.b16 %v187
      %v464 = vunpack.c.l.b16 %v188
      %v465 = vunpack.c.l.b16 %v189
      %v466 = vunpack.c.l.b16 %v190
      %v467 = vunpack.c.l.b16 %v191
      %v468 = vunpack.c.l.b16 %v192
      %v469 = vunpack.c.l.b16 %v193
      %v470 = vunpack.c.l.b16 %v194
      %v471 = vunpack.c.l.b16 %v195
      %v472 = vunpack.c.l.b16 %v196
      %v473 = vunpack.c.l.b16 %v197
      %v474 = vunpack.c.l.b16 %v198
      %v475 = vunpack.c.l.b16 %v199
      %v476 = vunpack.c.l.b16 %v200
      %v477 = vunpack.c.l.b16 %v201
      %v478 = vunpack.c.l.b16 %v202
      %v479 = vunpack.c.l.b16 %v203
      %v480 = vunpack.c.l.b16 %v204
      %v481 = vunpack.c.l.b16 %v205
      %v482 = vunpack.c.l.b16 %v206
      %v483 = vunpack.c.l.b16 %v207
      %v484 = vunpack.c.l.b16 %v208
      %v485 = vunpack.c.l.b16 %v209
      %v486 = vunpack.c.l.b16 %v210
      %v487 = vunpack.c.l.b16 %v211
      %v488 = vunpack.c.l.b16 %v212
      %v489 = vunpack.c.l.b16 %v213
      %v490 = vunpack.c.l.b16 %v214
      %v491 = vunpack.c.l.b16 %v215
      %v492 = vunpack.c.l.b16 %v216
      %v493 = vunpack.c.l.b16 %v217
      %v494 = vunpack.c.l.b16 %v218
      %v495 = vunpack.c.l.b16 %v219
      %v496 = vunpack.c.l.b16 %v220
      %v497 = vunpack.c.l.b16 %v221
      %v498 = vunpack.c.l.b16 %v222
      %v499 = vunpack.c.l.b16 %v223
      %v500 = vunpack.c.l.b16 %v224
      %v501 = vunpack.c.l.b16 %v225
      %v502 = vunpack.c.l.b16 %v226
      %v503 = vunpack.c.l.b16 %v227
      %v504 = vunpack.c.l.b16 %v228
      %v505 = vunpack.c.l.b16 %v229
      %v506 = vunpack.c.l.b16 %v230
      %v507 = vunpack.c.l.b16 %v231
      %v508 = vunpack.c.l.b16 %v232
      %v509 = vunpack.c.l.b16 %v233
      %v510 = vunpack.c.l.b16 %v234
      %v511 = vunpack.c.l.b16 %v235
      %v512 = vunpack.c.l.b16 %v236
      %v513 = vunpack.c.l.b16 %v237
      %v514 = vunpack.c.l.b16 %v238
      %v515 = vunpack.c.l.b16 %v239
      %v516 = vunpack.c.l.b16 %v240
      %v517 = vunpack.c.l.b16 %v241
      %v518 = vunpack.c.l.b16 %v242
      %v519 = vunpack.c.l.b16 %v243
      %v520 = vunpack.c.l.b16 %v244
      %v521 = vunpack.c.l.b16 %v245
      %v522 = vunpack.c.l.b16 %v246
      %v523 = vunpack.c.l.b16 %v247
      %v524 = vunpack.c.l.b16 %v248
      %v525 = vunpack.c.l.b16 %v249
      %v526 = vunpack.c.l.b16 %v250
      %v527 = vunpack.c.l.b16 %v251
      %v528 = vunpack.c.l.b16 %v252
      %v529 = vunpack.c.l.b16 %v253
      %v530 = vunpack.c.l.b16 %v254
      %v531 = vunpack.c.l.b16 %v255
      %v532 = vunpack.c.l.b16 %v256
      %v533 = vunpack.c.l.b16 %v257
      %v534 = vunpack.c.l.b16 %v258
      %v535 = vunpack.c.l.b16 %v259
      %v536 = vunpack.c.l.b16 %v260
      %v537 = vunpack.c.l.b16 %v261
      %v538 = vunpack.c.l.b16 %v262
      %v539 = vunpack.c.l.b16 %v263
      %v540 = vunpack.c.l.b16 %v264
      %v541 = vunpack.c.l.b16 %v265
      %v542 = vunpack.c.l.b16 %v266
      %v543 = vunpack.c.l.b16 %v267
      %v544 = vunpack.c.l.b16 %v268
      %v545 = vunpack.c.l.b16 %v269
      %v546 = vunpack.c.l.b16 %v270
      %v547 = vunpack.c.l.b16 %v271
      %v548 = vunpack.c.l.b16 %v272
      %v549 = vunpack.c.l.b16 %v273
      %v550 = vunpack.c.l.b16 %v274
      %v551 = vunpack.c.l.b16 %v275
      %v552 = vunpack.c.l.b16 %v276
      %v553 = vunpack.c.l.b16 %v277
      %v554 = vunpack.c.l.b16 %v278
      %v555 = vunpack.c.l.b16 %v279
      %v556 = vunpack.c.l.b16 %v280
      %v557 = vunpack.c.l.b16 %v281
      %v558 = vunpack.c.l.b16 %v282
      %v559 = vunpack.c.l.b16 %v283
      %v560 = vunpack.c.l.b16 %v284
      %v561 = vunpack.c.l.b16 %v285
      %v562 = vunpack.c.l.b16 %v286
      %v563 = vunpack.c.l.b16 %v287
      %v564 = vunpack.c.l.b16 %v288
      %v565 = vunpack.c.l.b16 %v289
      %v566 = vunpack.c.l.b16 %v290
      %v567 = vunpack.c.l.b16 %v291
      %v568 = vunpack.c.l.b16 %v292
      %v569 = vunpack.c.l.b16 %v293
      %v570 = vunpack.c.l.b16 %v294
      %v571 = vunpack.c.l.b16 %v295
      %v572 = vunpack.c.l.b16 %v296
      %v573 = vunpack.c.l.b16 %v297
      %v574 = vunpack.c.l.b16 %v298
      %v575 = vunpack.c.l.b16 %v299
      %v576 = vunpack.c.l.b16 %v300
      %v577 = vunpack.c.l.b16 %v301
      %v578 = vpack.c.b16 %v451, %v450
      %v579 = vpack.c.b16 %v453, %v452
      %v580 = vpack.c.b16 %v455, %v454
      %v581 = vpack.c.b16 %v457, %v456
      %v582 = vpack.c.b16 %v459, %v458
      %v583 = vpack.c.b16 %v461, %v460
      %v584 = vpack.c.b16 %v463, %v462
      %v585 = vpack.c.b16 %v465, %v464
      %v586 = vpack.c.b16 %v467, %v466
      %v587 = vpack.c.b16 %v469, %v468
      %v588 = vpack.c.b16 %v471, %v470
      %v589 = vpack.c.b16 %v473, %v472
      %v590 = vpack.c.b16 %v475, %v474
      %v591 = vpack.c.b16 %v477, %v476
      %v592 = vpack.c.b16 %v479, %v478
      %v593 = vpack.c.b16 %v481, %v480
      %v594 = vpack.c.b16 %v483, %v482
      %v595 = vpack.c.b16 %v485, %v484
      %v596 = vpack.c.b16 %v487, %v486
      %v597 = vpack.c.b16 %v489, %v488
      %v598 = vpack.c.b16 %v491, %v490
      %v599 = vpack.c.b16 %v493, %v492
      %v600 = vpack.c.b16 %v495, %v494
      %v601 = vpack.c.b16 %v497, %v496
      %v602 = vpack.c.b16 %v499, %v498
      %v603 = vpack.c.b16 %v501, %v500
      %v604 = vpack.c.b16 %v503, %v502
      %v605 = vpack.c.b16 %v505, %v504
      %v606 = vpack.c.b16 %v507, %v506
      %v607 = vpack.c.b16 %v509, %v508
      %v608 = vpack.c.b16 %v511, %v510
      %v609 = vpack.c.b16 %v513, %v512
      %v610 = vpack.c.b16 %v515, %v514
      %v611 = vpack.c.b16 %v517, %v516
      %v612 = vpack.c.b16 %v519, %v518
      %v613 = vpack.c.b16 %v521, %v520
      %v614 = vpack.c.b16 %v523, %v522
      %v615 = vpack.c.b16 %v525, %v524
      %v616 = vpack.c.b16 %v527, %v526
      %v617 = vpack.c.b16 %v529, %v528
      %v618 = vpack.c.b16 %v531, %v530
      %v619 = vpack.c.b16 %v533, %v532
      %v620 = vpack.c.b16 %v535, %v534
      %v621 = vpack.c.b16 %v537, %v536
      %v622 = vpack.c.b16 %v539, %v538
      %v623 = vpack.c.b16 %v541, %v540
      %v624 = vpack.c.b16 %v543, %v542
      %v625 = vpack.c.b16 %v545, %v544
      %v626 = vpack.c.b16 %v547, %v546
      %v627 = vpack.c.b16 %v549, %v548
      %v628 = vpack.c.b16 %v551, %v550
      %v629 = vpack.c.b16 %v553, %v552
      %v630 = vpack.c.b16 %v555, %v554
      %v631 = vpack.c.b16 %v557, %v556
      %v632 = vpack.c.b16 %v559, %v558
      %v633 = vpack.c.b16 %v561, %v560
      %v634 = vpack.c.b16 %v563, %v562
      %v635 = vpack.c.b16 %v565, %v564
      %v636 = vpack.c.b16 %v567, %v566
      %v637 = vpack.c.b16 %v569, %v568
      %v638 = vpack.c.b16 %v571, %v570
      %v639 = vpack.c.b16 %v573, %v572
      %v640 = vpack.c.b16 %v575, %v574
      %v641 = vpack.c.b16 %v577, %v576
      %v722 = vunpack.c.l.b16 %v302
      %v723 = vunpack.c.l.b16 %v303
      %v724 = vunpack.c.l.b16 %v304
      %v725 = vunpack.c.l.b16 %v305
      %v726 = vunpack.c.l.b16 %v306
      %v727 = vunpack.c.l.b16 %v307
      %v728 = vunpack.c.l.b16 %v308
      %v729 = vunpack.c.l.b16 %v309
      %v730 = vunpack.c.l.b16 %v310
      %v731 = vunpack.c.l.b16 %v311
      %v732 = vunpack.c.l.b16 %v312
      %v733 = vunpack.c.l.b16 %v313
      %v734 = vunpack.c.l.b16 %v314
      %v735 = vunpack.c.l.b16 %v315
      %v736 = vunpack.c.l.b16 %v316
      %v737 = vunpack.c.l.b16 %v317
      %v738 = vpack.c.b16 %v723, %v722
      %v739 = vpack.c.b16 %v725, %v724
      %v740 = vpack.c.b16 %v727, %v726
      %v741 = vpack.c.b16 %v729, %v728
      %v742 = vpack.c.b16 %v731, %v730
      %v743 = vpack.c.b16 %v733, %v732
      %v744 = vpack.c.b16 %v735, %v734
      %v745 = vpack.c.b16 %v737, %v736
      %754 = vmatpush.bf16.msra.mxu0 %v745
      %755 = vmatpush.bf16.msra.mxu0 %v744
      %756 = vmatpush.bf16.msra.mxu0 %v743
      %757 = vmatpush.bf16.msra.mxu0 %v742
      %758 = vmatpush.bf16.msra.mxu0 %v741
      %759 = vmatpush.bf16.msra.mxu0 %v740
      %760 = vmatpush.bf16.msra.mxu0 %v739
      %761 = vmatpush.bf16.msra.mxu0 %v738
      %762 = vmatmul.bf16.gmra.mxu0 %v578
      %v763 = vpop.f32.mrf.mxu0
      %v764 = vadd.f32 %v320, %v763
      %v765 = vpop.f32.mrf.mxu0
      %v766 = vadd.f32 %v320, %v765
      %767 = vmatmul.bf16.gmra.mxu0 %v579
      %v768 = vpop.f32.mrf.mxu0
      %v769 = vadd.f32 %v320, %v768
      %v770 = vpop.f32.mrf.mxu0
      %v771 = vadd.f32 %v320, %v770
      %772 = vmatmul.bf16.gmra.mxu0 %v580
      %v773 = vpop.f32.mrf.mxu0
      %v774 = vadd.f32 %v320, %v773
      %v775 = vpop.f32.mrf.mxu0
      %v776 = vadd.f32 %v320, %v775
      %777 = vmatmul.bf16.gmra.mxu0 %v581
      %v778 = vpop.f32.mrf.mxu0
      %v779 = vadd.f32 %v320, %v778
      %v780 = vpop.f32.mrf.mxu0
      %v781 = vadd.f32 %v320, %v780
      %782 = vmatmul.bf16.gmra.mxu0 %v582
      %v783 = vpop.f32.mrf.mxu0
      %v784 = vadd.f32 %v320, %v783
      %v785 = vpop.f32.mrf.mxu0
      %v786 = vadd.f32 %v320, %v785
      %787 = vmatmul.bf16.gmra.mxu0 %v583
      %v788 = vpop.f32.mrf.mxu0
      %v789 = vadd.f32 %v320, %v788
      %v790 = vpop.f32.mrf.mxu0
      %v791 = vadd.f32 %v320, %v790
      %792 = vmatmul.bf16.gmra.mxu0 %v584
      %v793 = vpop.f32.mrf.mxu0
      %v794 = vadd.f32 %v320, %v793
      %v795 = vpop.f32.mrf.mxu0
      %v796 = vadd.f32 %v320, %v795
      %797 = vmatmul.bf16.gmra.mxu0 %v585
      %v798 = vpop.f32.mrf.mxu0
      %v799 = vadd.f32 %v320, %v798
      %v800 = vpop.f32.mrf.mxu0
      %v801 = vadd.f32 %v320, %v800
      %802 = vmatmul.bf16.gmra.mxu0 %v586
      %v803 = vpop.f32.mrf.mxu0
      %v804 = vadd.f32 %v320, %v803
      %v805 = vpop.f32.mrf.mxu0
      %v806 = vadd.f32 %v320, %v805
      %807 = vmatmul.bf16.gmra.mxu0 %v587
      %v808 = vpop.f32.mrf.mxu0
      %v809 = vadd.f32 %v320, %v808
      %v810 = vpop.f32.mrf.mxu0
      %v811 = vadd.f32 %v320, %v810
      %812 = vmatmul.bf16.gmra.mxu0 %v588
      %v813 = vpop.f32.mrf.mxu0
      %v814 = vadd.f32 %v320, %v813
      %v815 = vpop.f32.mrf.mxu0
      %v816 = vadd.f32 %v320, %v815
      %817 = vmatmul.bf16.gmra.mxu0 %v589
      %v818 = vpop.f32.mrf.mxu0
      %v819 = vadd.f32 %v320, %v818
      %v820 = vpop.f32.mrf.mxu0
      %v821 = vadd.f32 %v320, %v820
      %822 = vmatmul.bf16.gmra.mxu0 %v590
      %v823 = vpop.f32.mrf.mxu0
      %v824 = vadd.f32 %v320, %v823
      %v825 = vpop.f32.mrf.mxu0
      %v826 = vadd.f32 %v320, %v825
      %827 = vmatmul.bf16.gmra.mxu0 %v591
      %v828 = vpop.f32.mrf.mxu0
      %v829 = vadd.f32 %v320, %v828
      %v830 = vpop.f32.mrf.mxu0
      %v831 = vadd.f32 %v320, %v830
      %832 = vmatmul.bf16.gmra.mxu0 %v592
      %v833 = vpop.f32.mrf.mxu0
      %v834 = vadd.f32 %v320, %v833
      %v835 = vpop.f32.mrf.mxu0
      %v836 = vadd.f32 %v320, %v835
      %837 = vmatmul.bf16.gmra.mxu0 %v593
      %v838 = vpop.f32.mrf.mxu0
      %v839 = vadd.f32 %v320, %v838
      %v840 = vpop.f32.mrf.mxu0
      %v841 = vadd.f32 %v320, %v840
      %842 = vmatmul.bf16.gmra.mxu0 %v594
      %v843 = vpop.f32.mrf.mxu0
      %v844 = vadd.f32 %v320, %v843
      %v845 = vpop.f32.mrf.mxu0
      %v846 = vadd.f32 %v320, %v845
      %847 = vmatmul.bf16.gmra.mxu0 %v595
      %v848 = vpop.f32.mrf.mxu0
      %v849 = vadd.f32 %v320, %v848
      %v850 = vpop.f32.mrf.mxu0
      %v851 = vadd.f32 %v320, %v850
      %852 = vmatmul.bf16.gmra.mxu0 %v596
      %v853 = vpop.f32.mrf.mxu0
      %v854 = vadd.f32 %v320, %v853
      %v855 = vpop.f32.mrf.mxu0
      %v856 = vadd.f32 %v320, %v855
      %857 = vmatmul.bf16.gmra.mxu0 %v597
      %v858 = vpop.f32.mrf.mxu0
      %v859 = vadd.f32 %v320, %v858
      %v860 = vpop.f32.mrf.mxu0
      %v861 = vadd.f32 %v320, %v860
      %862 = vmatmul.bf16.gmra.mxu0 %v598
      %v863 = vpop.f32.mrf.mxu0
      %v864 = vadd.f32 %v320, %v863
      %v865 = vpop.f32.mrf.mxu0
      %v866 = vadd.f32 %v320, %v865
      %867 = vmatmul.bf16.gmra.mxu0 %v599
      %v868 = vpop.f32.mrf.mxu0
      %v869 = vadd.f32 %v320, %v868
      %v870 = vpop.f32.mrf.mxu0
      %v871 = vadd.f32 %v320, %v870
      %872 = vmatmul.bf16.gmra.mxu0 %v600
      %v873 = vpop.f32.mrf.mxu0
      %v874 = vadd.f32 %v320, %v873
      %v875 = vpop.f32.mrf.mxu0
      %v876 = vadd.f32 %v320, %v875
      %877 = vmatmul.bf16.gmra.mxu0 %v601
      %v878 = vpop.f32.mrf.mxu0
      %v879 = vadd.f32 %v320, %v878
      %v880 = vpop.f32.mrf.mxu0
      %v881 = vadd.f32 %v320, %v880
      %882 = vmatmul.bf16.gmra.mxu0 %v602
      %v883 = vpop.f32.mrf.mxu0
      %v884 = vadd.f32 %v320, %v883
      %v885 = vpop.f32.mrf.mxu0
      %v886 = vadd.f32 %v320, %v885
      %887 = vmatmul.bf16.gmra.mxu0 %v603
      %v888 = vpop.f32.mrf.mxu0
      %v889 = vadd.f32 %v320, %v888
      %v890 = vpop.f32.mrf.mxu0
      %v891 = vadd.f32 %v320, %v890
      %892 = vmatmul.bf16.gmra.mxu0 %v604
      %v893 = vpop.f32.mrf.mxu0
      %v894 = vadd.f32 %v320, %v893
      %v895 = vpop.f32.mrf.mxu0
      %v896 = vadd.f32 %v320, %v895
      %897 = vmatmul.bf16.gmra.mxu0 %v605
      %v898 = vpop.f32.mrf.mxu0
      %v899 = vadd.f32 %v320, %v898
      %v900 = vpop.f32.mrf.mxu0
      %v901 = vadd.f32 %v320, %v900
      %902 = vmatmul.bf16.gmra.mxu0 %v606
      %v903 = vpop.f32.mrf.mxu0
      %v904 = vadd.f32 %v320, %v903
      %v905 = vpop.f32.mrf.mxu0
      %v906 = vadd.f32 %v320, %v905
      %907 = vmatmul.bf16.gmra.mxu0 %v607
      %v908 = vpop.f32.mrf.mxu0
      %v909 = vadd.f32 %v320, %v908
      %v910 = vpop.f32.mrf.mxu0
      %v911 = vadd.f32 %v320, %v910
      %912 = vmatmul.bf16.gmra.mxu0 %v608
      %v913 = vpop.f32.mrf.mxu0
      %v914 = vadd.f32 %v320, %v913
      %v915 = vpop.f32.mrf.mxu0
      %v916 = vadd.f32 %v320, %v915
      %917 = vmatmul.bf16.gmra.mxu0 %v609
      %v918 = vpop.f32.mrf.mxu0
      %v919 = vadd.f32 %v320, %v918
      %v920 = vpop.f32.mrf.mxu0
      %v921 = vadd.f32 %v320, %v920
      %922 = vmatmul.bf16.gmra.mxu0 %v610
      %v923 = vpop.f32.mrf.mxu0
      %v924 = vadd.f32 %v320, %v923
      %v925 = vpop.f32.mrf.mxu0
      %v926 = vadd.f32 %v320, %v925
      %927 = vmatmul.bf16.gmra.mxu0 %v611
      %v928 = vpop.f32.mrf.mxu0
      %v929 = vadd.f32 %v320, %v928
      %v930 = vpop.f32.mrf.mxu0
      %v931 = vadd.f32 %v320, %v930
      %932 = vmatmul.bf16.gmra.mxu0 %v612
      %v933 = vpop.f32.mrf.mxu0
      %v934 = vadd.f32 %v320, %v933
      %v935 = vpop.f32.mrf.mxu0
      %v936 = vadd.f32 %v320, %v935
      %937 = vmatmul.bf16.gmra.mxu0 %v613
      %v938 = vpop.f32.mrf.mxu0
      %v939 = vadd.f32 %v320, %v938
      %v940 = vpop.f32.mrf.mxu0
      %v941 = vadd.f32 %v320, %v940
      %942 = vmatmul.bf16.gmra.mxu0 %v614
      %v943 = vpop.f32.mrf.mxu0
      %v944 = vadd.f32 %v320, %v943
      %v945 = vpop.f32.mrf.mxu0
      %v946 = vadd.f32 %v320, %v945
      %947 = vmatmul.bf16.gmra.mxu0 %v615
      %v948 = vpop.f32.mrf.mxu0
      %v949 = vadd.f32 %v320, %v948
      %v950 = vpop.f32.mrf.mxu0
      %v951 = vadd.f32 %v320, %v950
      %952 = vmatmul.bf16.gmra.mxu0 %v616
      %v953 = vpop.f32.mrf.mxu0
      %v954 = vadd.f32 %v320, %v953
      %v955 = vpop.f32.mrf.mxu0
      %v956 = vadd.f32 %v320, %v955
      %957 = vmatmul.bf16.gmra.mxu0 %v617
      %v958 = vpop.f32.mrf.mxu0
      %v959 = vadd.f32 %v320, %v958
      %v960 = vpop.f32.mrf.mxu0
      %v961 = vadd.f32 %v320, %v960
      %962 = vmatmul.bf16.gmra.mxu0 %v618
      %v963 = vpop.f32.mrf.mxu0
      %v964 = vadd.f32 %v320, %v963
      %v965 = vpop.f32.mrf.mxu0
      %v966 = vadd.f32 %v320, %v965
      %967 = vmatmul.bf16.gmra.mxu0 %v619
      %v968 = vpop.f32.mrf.mxu0
      %v969 = vadd.f32 %v320, %v968
      %v970 = vpop.f32.mrf.mxu0
      %v971 = vadd.f32 %v320, %v970
      %972 = vmatmul.bf16.gmra.mxu0 %v620
      %v973 = vpop.f32.mrf.mxu0
      %v974 = vadd.f32 %v320, %v973
      %v975 = vpop.f32.mrf.mxu0
      %v976 = vadd.f32 %v320, %v975
      %977 = vmatmul.bf16.gmra.mxu0 %v621
      %v978 = vpop.f32.mrf.mxu0
      %v979 = vadd.f32 %v320, %v978
      %v980 = vpop.f32.mrf.mxu0
      %v981 = vadd.f32 %v320, %v980
      %982 = vmatmul.bf16.gmra.mxu0 %v622
      %v983 = vpop.f32.mrf.mxu0
      %v984 = vadd.f32 %v320, %v983
      %v985 = vpop.f32.mrf.mxu0
      %v986 = vadd.f32 %v320, %v985
      %987 = vmatmul.bf16.gmra.mxu0 %v623
      %v988 = vpop.f32.mrf.mxu0
      %v989 = vadd.f32 %v320, %v988
      %v990 = vpop.f32.mrf.mxu0
      %v991 = vadd.f32 %v320, %v990
      %992 = vmatmul.bf16.gmra.mxu0 %v624
      %v993 = vpop.f32.mrf.mxu0
      %v994 = vadd.f32 %v320, %v993
      %v995 = vpop.f32.mrf.mxu0
      %v996 = vadd.f32 %v320, %v995
      %997 = vmatmul.bf16.gmra.mxu0 %v625
      %v998 = vpop.f32.mrf.mxu0
      %v999 = vadd.f32 %v320, %v998
      %v1000 = vpop.f32.mrf.mxu0
      %v1001 = vadd.f32 %v320, %v1000
      %1002 = vmatmul.bf16.gmra.mxu0 %v626
      %v1003 = vpop.f32.mrf.mxu0
      %v1004 = vadd.f32 %v320, %v1003
      %v1005 = vpop.f32.mrf.mxu0
      %v1006 = vadd.f32 %v320, %v1005
      %1007 = vmatmul.bf16.gmra.mxu0 %v627
      %v1008 = vpop.f32.mrf.mxu0
      %v1009 = vadd.f32 %v320, %v1008
      %v1010 = vpop.f32.mrf.mxu0
      %v1011 = vadd.f32 %v320, %v1010
      %1012 = vmatmul.bf16.gmra.mxu0 %v628
      %v1013 = vpop.f32.mrf.mxu0
      %v1014 = vadd.f32 %v320, %v1013
      %v1015 = vpop.f32.mrf.mxu0
      %v1016 = vadd.f32 %v320, %v1015
      %1017 = vmatmul.bf16.gmra.mxu0 %v629
      %v1018 = vpop.f32.mrf.mxu0
      %v1019 = vadd.f32 %v320, %v1018
      %v1020 = vpop.f32.mrf.mxu0
      %v1021 = vadd.f32 %v320, %v1020
      %1022 = vmatmul.bf16.gmra.mxu0 %v630
      %v1023 = vpop.f32.mrf.mxu0
      %v1024 = vadd.f32 %v320, %v1023
      %v1025 = vpop.f32.mrf.mxu0
      %v1026 = vadd.f32 %v320, %v1025
      %1027 = vmatmul.bf16.gmra.mxu0 %v631
      %v1028 = vpop.f32.mrf.mxu0
      %v1029 = vadd.f32 %v320, %v1028
      %v1030 = vpop.f32.mrf.mxu0
      %v1031 = vadd.f32 %v320, %v1030
      %1032 = vmatmul.bf16.gmra.mxu0 %v632
      %v1033 = vpop.f32.mrf.mxu0
      %v1034 = vadd.f32 %v320, %v1033
      %v1035 = vpop.f32.mrf.mxu0
      %v1036 = vadd.f32 %v320, %v1035
      %1037 = vmatmul.bf16.gmra.mxu0 %v633
      %v1038 = vpop.f32.mrf.mxu0
      %v1039 = vadd.f32 %v320, %v1038
      %v1040 = vpop.f32.mrf.mxu0
      %v1041 = vadd.f32 %v320, %v1040
      %1042 = vmatmul.bf16.gmra.mxu0 %v634
      %v1043 = vpop.f32.mrf.mxu0
      %v1044 = vadd.f32 %v320, %v1043
      %v1045 = vpop.f32.mrf.mxu0
      %v1046 = vadd.f32 %v320, %v1045
      %1047 = vmatmul.bf16.gmra.mxu0 %v635
      %v1048 = vpop.f32.mrf.mxu0
      %v1049 = vadd.f32 %v320, %v1048
      %v1050 = vpop.f32.mrf.mxu0
      %v1051 = vadd.f32 %v320, %v1050
      %1052 = vmatmul.bf16.gmra.mxu0 %v636
      %v1053 = vpop.f32.mrf.mxu0
      %v1054 = vadd.f32 %v320, %v1053
      %v1055 = vpop.f32.mrf.mxu0
      %v1056 = vadd.f32 %v320, %v1055
      %1057 = vmatmul.bf16.gmra.mxu0 %v637
      %v1058 = vpop.f32.mrf.mxu0
      %v1059 = vadd.f32 %v320, %v1058
      %v1060 = vpop.f32.mrf.mxu0
      %v1061 = vadd.f32 %v320, %v1060
      %1062 = vmatmul.bf16.gmra.mxu0 %v638
      %v1063 = vpop.f32.mrf.mxu0
      %v1064 = vadd.f32 %v320, %v1063
      %v1065 = vpop.f32.mrf.mxu0
      %v1066 = vadd.f32 %v320, %v1065
      %1067 = vmatmul.bf16.gmra.mxu0 %v639
      %v1068 = vpop.f32.mrf.mxu0
      %v1069 = vadd.f32 %v320, %v1068
      %v1070 = vpop.f32.mrf.mxu0
      %v1071 = vadd.f32 %v320, %v1070
      %1072 = vmatmul.bf16.gmra.mxu0 %v640
      %v1073 = vpop.f32.mrf.mxu0
      %v1074 = vadd.f32 %v320, %v1073
      %v1075 = vpop.f32.mrf.mxu0
      %v1076 = vadd.f32 %v320, %v1075
      %1077 = vmatmul.bf16.gmra.mxu0 %v641
      %v1078 = vpop.f32.mrf.mxu0
      %v1079 = vadd.f32 %v320, %v1078
      %v1080 = vpop.f32.mrf.mxu0
      %v1081 = vadd.f32 %v320, %v1080
      %1082 = vdwg.mxu0
      %vm1083 = vcmp.gt.f32.partialorder %v764, 0.0
      %vm1084 = vcmp.gt.f32.partialorder %v766, 0.0
      %vm1085 = vcmp.gt.f32.partialorder %v769, 0.0
      %vm1086 = vcmp.gt.f32.partialorder %v771, 0.0
      %vm1087 = vcmp.gt.f32.partialorder %v774, 0.0
      %vm1088 = vcmp.gt.f32.partialorder %v776, 0.0
      %vm1089 = vcmp.gt.f32.partialorder %v779, 0.0
      %vm1090 = vcmp.gt.f32.partialorder %v781, 0.0
      %vm1091 = vcmp.gt.f32.partialorder %v784, 0.0
      %vm1092 = vcmp.gt.f32.partialorder %v786, 0.0
      %vm1093 = vcmp.gt.f32.partialorder %v789, 0.0
      %vm1094 = vcmp.gt.f32.partialorder %v791, 0.0
      %vm1095 = vcmp.gt.f32.partialorder %v794, 0.0
      %vm1096 = vcmp.gt.f32.partialorder %v796, 0.0
      %vm1097 = vcmp.gt.f32.partialorder %v799, 0.0
      %vm1098 = vcmp.gt.f32.partialorder %v801, 0.0
      %vm1099 = vcmp.gt.f32.partialorder %v804, 0.0
      %vm1100 = vcmp.gt.f32.partialorder %v806, 0.0
      %vm1101 = vcmp.gt.f32.partialorder %v809, 0.0
      %vm1102 = vcmp.gt.f32.partialorder %v811, 0.0
      %vm1103 = vcmp.gt.f32.partialorder %v814, 0.0
      %vm1104 = vcmp.gt.f32.partialorder %v816, 0.0
      %vm1105 = vcmp.gt.f32.partialorder %v819, 0.0
      %vm1106 = vcmp.gt.f32.partialorder %v821, 0.0
      %vm1107 = vcmp.gt.f32.partialorder %v824, 0.0
      %vm1108 = vcmp.gt.f32.partialorder %v826, 0.0
      %vm1109 = vcmp.gt.f32.partialorder %v829, 0.0
      %vm1110 = vcmp.gt.f32.partialorder %v831, 0.0
      %vm1111 = vcmp.gt.f32.partialorder %v834, 0.0
      %vm1112 = vcmp.gt.f32.partialorder %v836, 0.0
      %vm1113 = vcmp.gt.f32.partialorder %v839, 0.0
      %vm1114 = vcmp.gt.f32.partialorder %v841, 0.0
      %vm1115 = vcmp.gt.f32.partialorder %v844, 0.0
      %vm1116 = vcmp.gt.f32.partialorder %v846, 0.0
      %vm1117 = vcmp.gt.f32.partialorder %v849, 0.0
      %vm1118 = vcmp.gt.f32.partialorder %v851, 0.0
      %vm1119 = vcmp.gt.f32.partialorder %v854, 0.0
      %vm1120 = vcmp.gt.f32.partialorder %v856, 0.0
      %vm1121 = vcmp.gt.f32.partialorder %v859, 0.0
      %vm1122 = vcmp.gt.f32.partialorder %v861, 0.0
      %vm1123 = vcmp.gt.f32.partialorder %v864, 0.0
      %vm1124 = vcmp.gt.f32.partialorder %v866, 0.0
      %vm1125 = vcmp.gt.f32.partialorder %v869, 0.0
      %vm1126 = vcmp.gt.f32.partialorder %v871, 0.0
      %vm1127 = vcmp.gt.f32.partialorder %v874, 0.0
      %vm1128 = vcmp.gt.f32.partialorder %v876, 0.0
      %vm1129 = vcmp.gt.f32.partialorder %v879, 0.0
      %vm1130 = vcmp.gt.f32.partialorder %v881, 0.0
      %vm1131 = vcmp.gt.f32.partialorder %v884, 0.0
      %vm1132 = vcmp.gt.f32.partialorder %v886, 0.0
      %vm1133 = vcmp.gt.f32.partialorder %v889, 0.0
      %vm1134 = vcmp.gt.f32.partialorder %v891, 0.0
      %vm1135 = vcmp.gt.f32.partialorder %v894, 0.0
      %vm1136 = vcmp.gt.f32.partialorder %v896, 0.0
      %vm1137 = vcmp.gt.f32.partialorder %v899, 0.0
      %vm1138 = vcmp.gt.f32.partialorder %v901, 0.0
      %vm1139 = vcmp.gt.f32.partialorder %v904, 0.0
      %vm1140 = vcmp.gt.f32.partialorder %v906, 0.0
      %vm1141 = vcmp.gt.f32.partialorder %v909, 0.0
      %vm1142 = vcmp.gt.f32.partialorder %v911, 0.0
      %vm1143 = vcmp.gt.f32.partialorder %v914, 0.0
      %vm1144 = vcmp.gt.f32.partialorder %v916, 0.0
      %vm1145 = vcmp.gt.f32.partialorder %v919, 0.0
      %vm1146 = vcmp.gt.f32.partialorder %v921, 0.0
      %vm1147 = vcmp.gt.f32.partialorder %v924, 0.0
      %vm1148 = vcmp.gt.f32.partialorder %v926, 0.0
      %vm1149 = vcmp.gt.f32.partialorder %v929, 0.0
      %vm1150 = vcmp.gt.f32.partialorder %v931, 0.0
      %vm1151 = vcmp.gt.f32.partialorder %v934, 0.0
      %vm1152 = vcmp.gt.f32.partialorder %v936, 0.0
      %vm1153 = vcmp.gt.f32.partialorder %v939, 0.0
      %vm1154 = vcmp.gt.f32.partialorder %v941, 0.0
      %vm1155 = vcmp.gt.f32.partialorder %v944, 0.0
      %vm1156 = vcmp.gt.f32.partialorder %v946, 0.0
      %vm1157 = vcmp.gt.f32.partialorder %v949, 0.0
      %vm1158 = vcmp.gt.f32.partialorder %v951, 0.0
      %vm1159 = vcmp.gt.f32.partialorder %v954, 0.0
      %vm1160 = vcmp.gt.f32.partialorder %v956, 0.0
      %vm1161 = vcmp.gt.f32.partialorder %v959, 0.0
      %vm1162 = vcmp.gt.f32.partialorder %v961, 0.0
      %vm1163 = vcmp.gt.f32.partialorder %v964, 0.0
      %vm1164 = vcmp.gt.f32.partialorder %v966, 0.0
      %vm1165 = vcmp.gt.f32.partialorder %v969, 0.0
      %vm1166 = vcmp.gt.f32.partialorder %v971, 0.0
      %vm1167 = vcmp.gt.f32.partialorder %v974, 0.0
      %vm1168 = vcmp.gt.f32.partialorder %v976, 0.0
      %vm1169 = vcmp.gt.f32.partialorder %v979, 0.0
      %vm1170 = vcmp.gt.f32.partialorder %v981, 0.0
      %vm1171 = vcmp.gt.f32.partialorder %v984, 0.0
      %vm1172 = vcmp.gt.f32.partialorder %v986, 0.0
      %vm1173 = vcmp.gt.f32.partialorder %v989, 0.0
      %vm1174 = vcmp.gt.f32.partialorder %v991, 0.0
      %vm1175 = vcmp.gt.f32.partialorder %v994, 0.0
      %vm1176 = vcmp.gt.f32.partialorder %v996, 0.0
      %vm1177 = vcmp.gt.f32.partialorder %v999, 0.0
      %vm1178 = vcmp.gt.f32.partialorder %v1001, 0.0
      %vm1179 = vcmp.gt.f32.partialorder %v1004, 0.0
      %vm1180 = vcmp.gt.f32.partialorder %v1006, 0.0
      %vm1181 = vcmp.gt.f32.partialorder %v1009, 0.0
      %vm1182 = vcmp.gt.f32.partialorder %v1011, 0.0
      %vm1183 = vcmp.gt.f32.partialorder %v1014, 0.0
      %vm1184 = vcmp.gt.f32.partialorder %v1016, 0.0
      %vm1185 = vcmp.gt.f32.partialorder %v1019, 0.0
      %vm1186 = vcmp.gt.f32.partialorder %v1021, 0.0
      %vm1187 = vcmp.gt.f32.partialorder %v1024, 0.0
      %vm1188 = vcmp.gt.f32.partialorder %v1026, 0.0
      %vm1189 = vcmp.gt.f32.partialorder %v1029, 0.0
      %vm1190 = vcmp.gt.f32.partialorder %v1031, 0.0
      %vm1191 = vcmp.gt.f32.partialorder %v1034, 0.0
      %vm1192 = vcmp.gt.f32.partialorder %v1036, 0.0
      %vm1193 = vcmp.gt.f32.partialorder %v1039, 0.0
      %vm1194 = vcmp.gt.f32.partialorder %v1041, 0.0
      %vm1195 = vcmp.gt.f32.partialorder %v1044, 0.0
      %vm1196 = vcmp.gt.f32.partialorder %v1046, 0.0
      %vm1197 = vcmp.gt.f32.partialorder %v1049, 0.0
      %vm1198 = vcmp.gt.f32.partialorder %v1051, 0.0
      %vm1199 = vcmp.gt.f32.partialorder %v1054, 0.0
      %vm1200 = vcmp.gt.f32.partialorder %v1056, 0.0
      %vm1201 = vcmp.gt.f32.partialorder %v1059, 0.0
      %vm1202 = vcmp.gt.f32.partialorder %v1061, 0.0
      %vm1203 = vcmp.gt.f32.partialorder %v1064, 0.0
      %vm1204 = vcmp.gt.f32.partialorder %v1066, 0.0
      %vm1205 = vcmp.gt.f32.partialorder %v1069, 0.0
      %vm1206 = vcmp.gt.f32.partialorder %v1071, 0.0
      %vm1207 = vcmp.gt.f32.partialorder %v1074, 0.0
      %vm1208 = vcmp.gt.f32.partialorder %v1076, 0.0
      %vm1209 = vcmp.gt.f32.partialorder %v1079, 0.0
      %vm1210 = vcmp.gt.f32.partialorder %v1081, 0.0
      %v1211 = vmul.f32 %v764, 0.2
      %v1212 = vmul.f32 %v766, 0.2
      %v1213 = vmul.f32 %v769, 0.2
      %v1214 = vmul.f32 %v771, 0.2
      %v1215 = vmul.f32 %v774, 0.2
      %v1216 = vmul.f32 %v776, 0.2
      %v1217 = vmul.f32 %v779, 0.2
      %v1218 = vmul.f32 %v781, 0.2
      %v1219 = vmul.f32 %v784, 0.2
      %v1220 = vmul.f32 %v786, 0.2
      %v1221 = vmul.f32 %v789, 0.2
      %v1222 = vmul.f32 %v791, 0.2
      %v1223 = vmul.f32 %v794, 0.2
      %v1224 = vmul.f32 %v796, 0.2
      %v1225 = vmul.f32 %v799, 0.2
      %v1226 = vmul.f32 %v801, 0.2
      %v1227 = vmul.f32 %v804, 0.2
      %v1228 = vmul.f32 %v806, 0.2
      %v1229 = vmul.f32 %v809, 0.2
      %v1230 = vmul.f32 %v811, 0.2
      %v1231 = vmul.f32 %v814, 0.2
      %v1232 = vmul.f32 %v816, 0.2
      %v1233 = vmul.f32 %v819, 0.2
      %v1234 = vmul.f32 %v821, 0.2
      %v1235 = vmul.f32 %v824, 0.2
      %v1236 = vmul.f32 %v826, 0.2
      %v1237 = vmul.f32 %v829, 0.2
      %v1238 = vmul.f32 %v831, 0.2
      %v1239 = vmul.f32 %v834, 0.2
      %v1240 = vmul.f32 %v836, 0.2
      %v1241 = vmul.f32 %v839, 0.2
      %v1242 = vmul.f32 %v841, 0.2
      %v1243 = vmul.f32 %v844, 0.2
      %v1244 = vmul.f32 %v846, 0.2
      %v1245 = vmul.f32 %v849, 0.2
      %v1246 = vmul.f32 %v851, 0.2
      %v1247 = vmul.f32 %v854, 0.2
      %v1248 = vmul.f32 %v856, 0.2
      %v1249 = vmul.f32 %v859, 0.2
      %v1250 = vmul.f32 %v861, 0.2
      %v1251 = vmul.f32 %v864, 0.2
      %v1252 = vmul.f32 %v866, 0.2
      %v1253 = vmul.f32 %v869, 0.2
      %v1254 = vmul.f32 %v871, 0.2
      %v1255 = vmul.f32 %v874, 0.2
      %v1256 = vmul.f32 %v876, 0.2
      %v1257 = vmul.f32 %v879, 0.2
      %v1258 = vmul.f32 %v881, 0.2
      %v1259 = vmul.f32 %v884, 0.2
      %v1260 = vmul.f32 %v886, 0.2
      %v1261 = vmul.f32 %v889, 0.2
      %v1262 = vmul.f32 %v891, 0.2
      %v1263 = vmul.f32 %v894, 0.2
      %v1264 = vmul.f32 %v896, 0.2
      %v1265 = vmul.f32 %v899, 0.2
      %v1266 = vmul.f32 %v901, 0.2
      %v1267 = vmul.f32 %v904, 0.2
      %v1268 = vmul.f32 %v906, 0.2
      %v1269 = vmul.f32 %v909, 0.2
      %v1270 = vmul.f32 %v911, 0.2
      %v1271 = vmul.f32 %v914, 0.2
      %v1272 = vmul.f32 %v916, 0.2
      %v1273 = vmul.f32 %v919, 0.2
      %v1274 = vmul.f32 %v921, 0.2
      %v1275 = vmul.f32 %v924, 0.2
      %v1276 = vmul.f32 %v926, 0.2
      %v1277 = vmul.f32 %v929, 0.2
      %v1278 = vmul.f32 %v931, 0.2
      %v1279 = vmul.f32 %v934, 0.2
      %v1280 = vmul.f32 %v936, 0.2
      %v1281 = vmul.f32 %v939, 0.2
      %v1282 = vmul.f32 %v941, 0.2
      %v1283 = vmul.f32 %v944, 0.2
      %v1284 = vmul.f32 %v946, 0.2
      %v1285 = vmul.f32 %v949, 0.2
      %v1286 = vmul.f32 %v951, 0.2
      %v1287 = vmul.f32 %v954, 0.2
      %v1288 = vmul.f32 %v956, 0.2
      %v1289 = vmul.f32 %v959, 0.2
      %v1290 = vmul.f32 %v961, 0.2
      %v1291 = vmul.f32 %v964, 0.2
      %v1292 = vmul.f32 %v966, 0.2
      %v1293 = vmul.f32 %v969, 0.2
      %v1294 = vmul.f32 %v971, 0.2
      %v1295 = vmul.f32 %v974, 0.2
      %v1296 = vmul.f32 %v976, 0.2
      %v1297 = vmul.f32 %v979, 0.2
      %v1298 = vmul.f32 %v981, 0.2
      %v1299 = vmul.f32 %v984, 0.2
      %v1300 = vmul.f32 %v986, 0.2
      %v1301 = vmul.f32 %v989, 0.2
      %v1302 = vmul.f32 %v991, 0.2
      %v1303 = vmul.f32 %v994, 0.2
      %v1304 = vmul.f32 %v996, 0.2
      %v1305 = vmul.f32 %v999, 0.2
      %v1306 = vmul.f32 %v1001, 0.2
      %v1307 = vmul.f32 %v1004, 0.2
      %v1308 = vmul.f32 %v1006, 0.2
      %v1309 = vmul.f32 %v1009, 0.2
      %v1310 = vmul.f32 %v1011, 0.2
      %v1311 = vmul.f32 %v1014, 0.2
      %v1312 = vmul.f32 %v1016, 0.2
      %v1313 = vmul.f32 %v1019, 0.2
      %v1314 = vmul.f32 %v1021, 0.2
      %v1315 = vmul.f32 %v1024, 0.2
      %v1316 = vmul.f32 %v1026, 0.2
      %v1317 = vmul.f32 %v1029, 0.2
      %v1318 = vmul.f32 %v1031, 0.2
      %v1319 = vmul.f32 %v1034, 0.2
      %v1320 = vmul.f32 %v1036, 0.2
      %v1321 = vmul.f32 %v1039, 0.2
      %v1322 = vmul.f32 %v1041, 0.2
      %v1323 = vmul.f32 %v1044, 0.2
      %v1324 = vmul.f32 %v1046, 0.2
      %v1325 = vmul.f32 %v1049, 0.2
      %v1326 = vmul.f32 %v1051, 0.2
      %v1327 = vmul.f32 %v1054, 0.2
      %v1328 = vmul.f32 %v1056, 0.2
      %v1329 = vmul.f32 %v1059, 0.2
      %v1330 = vmul.f32 %v1061, 0.2
      %v1331 = vmul.f32 %v1064, 0.2
      %v1332 = vmul.f32 %v1066, 0.2
      %v1333 = vmul.f32 %v1069, 0.2
      %v1334 = vmul.f32 %v1071, 0.2
      %v1335 = vmul.f32 %v1074, 0.2
      %v1336 = vmul.f32 %v1076, 0.2
      %v1337 = vmul.f32 %v1079, 0.2
      %v1338 = vmul.f32 %v1081, 0.2
      %v1339 = vsel %vm1083, %v764, %v1211
      %v1340 = vsel %vm1084, %v766, %v1212
      %v1341 = vsel %vm1085, %v769, %v1213
      %v1342 = vsel %vm1086, %v771, %v1214
      %v1343 = vsel %vm1087, %v774, %v1215
      %v1344 = vsel %vm1088, %v776, %v1216
      %v1345 = vsel %vm1089, %v779, %v1217
      %v1346 = vsel %vm1090, %v781, %v1218
      %v1347 = vsel %vm1091, %v784, %v1219
      %v1348 = vsel %vm1092, %v786, %v1220
      %v1349 = vsel %vm1093, %v789, %v1221
      %v1350 = vsel %vm1094, %v791, %v1222
      %v1351 = vsel %vm1095, %v794, %v1223
      %v1352 = vsel %vm1096, %v796, %v1224
      %v1353 = vsel %vm1097, %v799, %v1225
      %v1354 = vsel %vm1098, %v801, %v1226
      %v1355 = vsel %vm1099, %v804, %v1227
      %v1356 = vsel %vm1100, %v806, %v1228
      %v1357 = vsel %vm1101, %v809, %v1229
      %v1358 = vsel %vm1102, %v811, %v1230
      %v1359 = vsel %vm1103, %v814, %v1231
      %v1360 = vsel %vm1104, %v816, %v1232
      %v1361 = vsel %vm1105, %v819, %v1233
      %v1362 = vsel %vm1106, %v821, %v1234
      %v1363 = vsel %vm1107, %v824, %v1235
      %v1364 = vsel %vm1108, %v826, %v1236
      %v1365 = vsel %vm1109, %v829, %v1237
      %v1366 = vsel %vm1110, %v831, %v1238
      %v1367 = vsel %vm1111, %v834, %v1239
      %v1368 = vsel %vm1112, %v836, %v1240
      %v1369 = vsel %vm1113, %v839, %v1241
      %v1370 = vsel %vm1114, %v841, %v1242
      %v1371 = vsel %vm1115, %v844, %v1243
      %v1372 = vsel %vm1116, %v846, %v1244
      %v1373 = vsel %vm1117, %v849, %v1245
      %v1374 = vsel %vm1118, %v851, %v1246
      %v1375 = vsel %vm1119, %v854, %v1247
      %v1376 = vsel %vm1120, %v856, %v1248
      %v1377 = vsel %vm1121, %v859, %v1249
      %v1378 = vsel %vm1122, %v861, %v1250
      %v1379 = vsel %vm1123, %v864, %v1251
      %v1380 = vsel %vm1124, %v866, %v1252
      %v1381 = vsel %vm1125, %v869, %v1253
      %v1382 = vsel %vm1126, %v871, %v1254
      %v1383 = vsel %vm1127, %v874, %v1255
      %v1384 = vsel %vm1128, %v876, %v1256
      %v1385 = vsel %vm1129, %v879, %v1257
      %v1386 = vsel %vm1130, %v881, %v1258
      %v1387 = vsel %vm1131, %v884, %v1259
      %v1388 = vsel %vm1132, %v886, %v1260
      %v1389 = vsel %vm1133, %v889, %v1261
      %v1390 = vsel %vm1134, %v891, %v1262
      %v1391 = vsel %vm1135, %v894, %v1263
      %v1392 = vsel %vm1136, %v896, %v1264
      %v1393 = vsel %vm1137, %v899, %v1265
      %v1394 = vsel %vm1138, %v901, %v1266
      %v1395 = vsel %vm1139, %v904, %v1267
      %v1396 = vsel %vm1140, %v906, %v1268
      %v1397 = vsel %vm1141, %v909, %v1269
      %v1398 = vsel %vm1142, %v911, %v1270
      %v1399 = vsel %vm1143, %v914, %v1271
      %v1400 = vsel %vm1144, %v916, %v1272
      %v1401 = vsel %vm1145, %v919, %v1273
      %v1402 = vsel %vm1146, %v921, %v1274
      %v1403 = vsel %vm1147, %v924, %v1275
      %v1404 = vsel %vm1148, %v926, %v1276
      %v1405 = vsel %vm1149, %v929, %v1277
      %v1406 = vsel %vm1150, %v931, %v1278
      %v1407 = vsel %vm1151, %v934, %v1279
      %v1408 = vsel %vm1152, %v936, %v1280
      %v1409 = vsel %vm1153, %v939, %v1281
      %v1410 = vsel %vm1154, %v941, %v1282
      %v1411 = vsel %vm1155, %v944, %v1283
      %v1412 = vsel %vm1156, %v946, %v1284
      %v1413 = vsel %vm1157, %v949, %v1285
      %v1414 = vsel %vm1158, %v951, %v1286
      %v1415 = vsel %vm1159, %v954, %v1287
      %v1416 = vsel %vm1160, %v956, %v1288
      %v1417 = vsel %vm1161, %v959, %v1289
      %v1418 = vsel %vm1162, %v961, %v1290
      %v1419 = vsel %vm1163, %v964, %v1291
      %v1420 = vsel %vm1164, %v966, %v1292
      %v1421 = vsel %vm1165, %v969, %v1293
      %v1422 = vsel %vm1166, %v971, %v1294
      %v1423 = vsel %vm1167, %v974, %v1295
      %v1424 = vsel %vm1168, %v976, %v1296
      %v1425 = vsel %vm1169, %v979, %v1297
      %v1426 = vsel %vm1170, %v981, %v1298
      %v1427 = vsel %vm1171, %v984, %v1299
      %v1428 = vsel %vm1172, %v986, %v1300
      %v1429 = vsel %vm1173, %v989, %v1301
      %v1430 = vsel %vm1174, %v991, %v1302
      %v1431 = vsel %vm1175, %v994, %v1303
      %v1432 = vsel %vm1176, %v996, %v1304
      %v1433 = vsel %vm1177, %v999, %v1305
      %v1434 = vsel %vm1178, %v1001, %v1306
      %v1435 = vsel %vm1179, %v1004, %v1307
      %v1436 = vsel %vm1180, %v1006, %v1308
      %v1437 = vsel %vm1181, %v1009, %v1309
      %v1438 = vsel %vm1182, %v1011, %v1310
      %v1439 = vsel %vm1183, %v1014, %v1311
      %v1440 = vsel %vm1184, %v1016, %v1312
      %v1441 = vsel %vm1185, %v1019, %v1313
      %v1442 = vsel %vm1186, %v1021, %v1314
      %v1443 = vsel %vm1187, %v1024, %v1315
      %v1444 = vsel %vm1188, %v1026, %v1316
      %v1445 = vsel %vm1189, %v1029, %v1317
      %v1446 = vsel %vm1190, %v1031, %v1318
      %v1447 = vsel %vm1191, %v1034, %v1319
      %v1448 = vsel %vm1192, %v1036, %v1320
      %v1449 = vsel %vm1193, %v1039, %v1321
      %v1450 = vsel %vm1194, %v1041, %v1322
      %v1451 = vsel %vm1195, %v1044, %v1323
      %v1452 = vsel %vm1196, %v1046, %v1324
      %v1453 = vsel %vm1197, %v1049, %v1325
      %v1454 = vsel %vm1198, %v1051, %v1326
      %v1455 = vsel %vm1199, %v1054, %v1327
      %v1456 = vsel %vm1200, %v1056, %v1328
      %v1457 = vsel %vm1201, %v1059, %v1329
      %v1458 = vsel %vm1202, %v1061, %v1330
      %v1459 = vsel %vm1203, %v1064, %v1331
      %v1460 = vsel %vm1204, %v1066, %v1332
      %v1461 = vsel %vm1205, %v1069, %v1333
      %v1462 = vsel %vm1206, %v1071, %v1334
      %v1463 = vsel %vm1207, %v1074, %v1335
      %v1464 = vsel %vm1208, %v1076, %v1336
      %v1465 = vsel %vm1209, %v1079, %v1337
      %v1466 = vsel %vm1210, %v1081, %v1338
      %v1467 = vpack.c.bf16 %v1339, %v1339
      %v1468 = vpack.c.bf16 %v1340, %v1340
      %v1469 = vpack.c.bf16 %v1341, %v1341
      %v1470 = vpack.c.bf16 %v1342, %v1342
      %v1471 = vpack.c.bf16 %v1343, %v1343
      %v1472 = vpack.c.bf16 %v1344, %v1344
      %v1473 = vpack.c.bf16 %v1345, %v1345
      %v1474 = vpack.c.bf16 %v1346, %v1346
      %v1475 = vpack.c.bf16 %v1347, %v1347
      %v1476 = vpack.c.bf16 %v1348, %v1348
      %v1477 = vpack.c.bf16 %v1349, %v1349
      %v1478 = vpack.c.bf16 %v1350, %v1350
      %v1479 = vpack.c.bf16 %v1351, %v1351
      %v1480 = vpack.c.bf16 %v1352, %v1352
      %v1481 = vpack.c.bf16 %v1353, %v1353
      %v1482 = vpack.c.bf16 %v1354, %v1354
      %v1483 = vpack.c.bf16 %v1355, %v1355
      %v1484 = vpack.c.bf16 %v1356, %v1356
      %v1485 = vpack.c.bf16 %v1357, %v1357
      %v1486 = vpack.c.bf16 %v1358, %v1358
      %v1487 = vpack.c.bf16 %v1359, %v1359
      %v1488 = vpack.c.bf16 %v1360, %v1360
      %v1489 = vpack.c.bf16 %v1361, %v1361
      %v1490 = vpack.c.bf16 %v1362, %v1362
      %v1491 = vpack.c.bf16 %v1363, %v1363
      %v1492 = vpack.c.bf16 %v1364, %v1364
      %v1493 = vpack.c.bf16 %v1365, %v1365
      %v1494 = vpack.c.bf16 %v1366, %v1366
      %v1495 = vpack.c.bf16 %v1367, %v1367
      %v1496 = vpack.c.bf16 %v1368, %v1368
      %v1497 = vpack.c.bf16 %v1369, %v1369
      %v1498 = vpack.c.bf16 %v1370, %v1370
      %v1499 = vpack.c.bf16 %v1371, %v1371
      %v1500 = vpack.c.bf16 %v1372, %v1372
      %v1501 = vpack.c.bf16 %v1373, %v1373
      %v1502 = vpack.c.bf16 %v1374, %v1374
      %v1503 = vpack.c.bf16 %v1375, %v1375
      %v1504 = vpack.c.bf16 %v1376, %v1376
      %v1505 = vpack.c.bf16 %v1377, %v1377
      %v1506 = vpack.c.bf16 %v1378, %v1378
      %v1507 = vpack.c.bf16 %v1379, %v1379
      %v1508 = vpack.c.bf16 %v1380, %v1380
      %v1509 = vpack.c.bf16 %v1381, %v1381
      %v1510 = vpack.c.bf16 %v1382, %v1382
      %v1511 = vpack.c.bf16 %v1383, %v1383
      %v1512 = vpack.c.bf16 %v1384, %v1384
      %v1513 = vpack.c.bf16 %v1385, %v1385
      %v1514 = vpack.c.bf16 %v1386, %v1386
      %v1515 = vpack.c.bf16 %v1387, %v1387
      %v1516 = vpack.c.bf16 %v1388, %v1388
      %v1517 = vpack.c.bf16 %v1389, %v1389
      %v1518 = vpack.c.bf16 %v1390, %v1390
      %v1519 = vpack.c.bf16 %v1391, %v1391
      %v1520 = vpack.c.bf16 %v1392, %v1392
      %v1521 = vpack.c.bf16 %v1393, %v1393
      %v1522 = vpack.c.bf16 %v1394, %v1394
      %v1523 = vpack.c.bf16 %v1395, %v1395
      %v1524 = vpack.c.bf16 %v1396, %v1396
      %v1525 = vpack.c.bf16 %v1397, %v1397
      %v1526 = vpack.c.bf16 %v1398, %v1398
      %v1527 = vpack.c.bf16 %v1399, %v1399
      %v1528 = vpack.c.bf16 %v1400, %v1400
      %v1529 = vpack.c.bf16 %v1401, %v1401
      %v1530 = vpack.c.bf16 %v1402, %v1402
      %v1531 = vpack.c.bf16 %v1403, %v1403
      %v1532 = vpack.c.bf16 %v1404, %v1404
      %v1533 = vpack.c.bf16 %v1405, %v1405
      %v1534 = vpack.c.bf16 %v1406, %v1406
      %v1535 = vpack.c.bf16 %v1407, %v1407
      %v1536 = vpack.c.bf16 %v1408, %v1408
      %v1537 = vpack.c.bf16 %v1409, %v1409
      %v1538 = vpack.c.bf16 %v1410, %v1410
      %v1539 = vpack.c.bf16 %v1411, %v1411
      %v1540 = vpack.c.bf16 %v1412, %v1412
      %v1541 = vpack.c.bf16 %v1413, %v1413
      %v1542 = vpack.c.bf16 %v1414, %v1414
      %v1543 = vpack.c.bf16 %v1415, %v1415
      %v1544 = vpack.c.bf16 %v1416, %v1416
      %v1545 = vpack.c.bf16 %v1417, %v1417
      %v1546 = vpack.c.bf16 %v1418, %v1418
      %v1547 = vpack.c.bf16 %v1419, %v1419
      %v1548 = vpack.c.bf16 %v1420, %v1420
      %v1549 = vpack.c.bf16 %v1421, %v1421
      %v1550 = vpack.c.bf16 %v1422, %v1422
      %v1551 = vpack.c.bf16 %v1423, %v1423
      %v1552 = vpack.c.bf16 %v1424, %v1424
      %v1553 = vpack.c.bf16 %v1425, %v1425
      %v1554 = vpack.c.bf16 %v1426, %v1426
      %v1555 = vpack.c.bf16 %v1427, %v1427
      %v1556 = vpack.c.bf16 %v1428, %v1428
      %v1557 = vpack.c.bf16 %v1429, %v1429
      %v1558 = vpack.c.bf16 %v1430, %v1430
      %v1559 = vpack.c.bf16 %v1431, %v1431
      %v1560 = vpack.c.bf16 %v1432, %v1432
      %v1561 = vpack.c.bf16 %v1433, %v1433
      %v1562 = vpack.c.bf16 %v1434, %v1434
      %v1563 = vpack.c.bf16 %v1435, %v1435
      %v1564 = vpack.c.bf16 %v1436, %v1436
      %v1565 = vpack.c.bf16 %v1437, %v1437
      %v1566 = vpack.c.bf16 %v1438, %v1438
      %v1567 = vpack.c.bf16 %v1439, %v1439
      %v1568 = vpack.c.bf16 %v1440, %v1440
      %v1569 = vpack.c.bf16 %v1441, %v1441
      %v1570 = vpack.c.bf16 %v1442, %v1442
      %v1571 = vpack.c.bf16 %v1443, %v1443
      %v1572 = vpack.c.bf16 %v1444, %v1444
      %v1573 = vpack.c.bf16 %v1445, %v1445
      %v1574 = vpack.c.bf16 %v1446, %v1446
      %v1575 = vpack.c.bf16 %v1447, %v1447
      %v1576 = vpack.c.bf16 %v1448, %v1448
      %v1577 = vpack.c.bf16 %v1449, %v1449
      %v1578 = vpack.c.bf16 %v1450, %v1450
      %v1579 = vpack.c.bf16 %v1451, %v1451
      %v1580 = vpack.c.bf16 %v1452, %v1452
      %v1581 = vpack.c.bf16 %v1453, %v1453
      %v1582 = vpack.c.bf16 %v1454, %v1454
      %v1583 = vpack.c.bf16 %v1455, %v1455
      %v1584 = vpack.c.bf16 %v1456, %v1456
      %v1585 = vpack.c.bf16 %v1457, %v1457
      %v1586 = vpack.c.bf16 %v1458, %v1458
      %v1587 = vpack.c.bf16 %v1459, %v1459
      %v1588 = vpack.c.bf16 %v1460, %v1460
      %v1589 = vpack.c.bf16 %v1461, %v1461
      %v1590 = vpack.c.bf16 %v1462, %v1462
      %v1591 = vpack.c.bf16 %v1463, %v1463
      %v1592 = vpack.c.bf16 %v1464, %v1464
      %v1593 = vpack.c.bf16 %v1465, %v1465
      %v1594 = vpack.c.bf16 %v1466, %v1466
      %vm1595 = vcmask 60416
      %1596 = vst.msk [vmem:[%s172] sm:$0xf] %vm1595, %v1467
      %1597 = vst.msk [vmem:[%s172 + $0x4] sm:$0xf] %vm1595, %v1468
      %1598 = vst.msk [vmem:[%s172 + $0x8] sm:$0xf] %vm1595, %v1469
      %1599 = vst.msk [vmem:[%s172 + $0xc] sm:$0xf] %vm1595, %v1470
      %1600 = vst.msk [vmem:[%s172 + $0x10] sm:$0xf] %vm1595, %v1471
      %1601 = vst.msk [vmem:[%s172 + $0x14] sm:$0xf] %vm1595, %v1472
      %1602 = vst.msk [vmem:[%s172 + $0x18] sm:$0xf] %vm1595, %v1473
      %1603 = vst.msk [vmem:[%s172 + $0x1c] sm:$0xf] %vm1595, %v1474
      %1604 = vst.msk [vmem:[%s172 + $0x20] sm:$0xf] %vm1595, %v1475
      %1605 = vst.msk [vmem:[%s172 + $0x24] sm:$0xf] %vm1595, %v1476
      %1606 = vst.msk [vmem:[%s172 + $0x28] sm:$0xf] %vm1595, %v1477
      %1607 = vst.msk [vmem:[%s172 + $0x2c] sm:$0xf] %vm1595, %v1478
      %1608 = vst.msk [vmem:[%s172 + $0x30] sm:$0xf] %vm1595, %v1479
      %1609 = vst.msk [vmem:[%s172 + $0x34] sm:$0xf] %vm1595, %v1480
      %1610 = vst.msk [vmem:[%s172 + $0x38] sm:$0xf] %vm1595, %v1481
      %1611 = vst.msk [vmem:[%s172 + $0x3c] sm:$0xf] %vm1595, %v1482
      %1612 = vst.msk [vmem:[%s172 + $0x40] sm:$0xf] %vm1595, %v1483
      %1613 = vst.msk [vmem:[%s172 + $0x44] sm:$0xf] %vm1595, %v1484
      %1614 = vst.msk [vmem:[%s172 + $0x48] sm:$0xf] %vm1595, %v1485
      %1615 = vst.msk [vmem:[%s172 + $0x4c] sm:$0xf] %vm1595, %v1486
      %1616 = vst.msk [vmem:[%s172 + $0x50] sm:$0xf] %vm1595, %v1487
      %1617 = vst.msk [vmem:[%s172 + $0x54] sm:$0xf] %vm1595, %v1488
      %1618 = vst.msk [vmem:[%s172 + $0x58] sm:$0xf] %vm1595, %v1489
      %1619 = vst.msk [vmem:[%s172 + $0x5c] sm:$0xf] %vm1595, %v1490
      %1620 = vst.msk [vmem:[%s172 + $0x60] sm:$0xf] %vm1595, %v1491
      %1621 = vst.msk [vmem:[%s172 + $0x64] sm:$0xf] %vm1595, %v1492
      %1622 = vst.msk [vmem:[%s172 + $0x68] sm:$0xf] %vm1595, %v1493
      %1623 = vst.msk [vmem:[%s172 + $0x6c] sm:$0xf] %vm1595, %v1494
      %1624 = vst.msk [vmem:[%s172 + $0x70] sm:$0xf] %vm1595, %v1495
      %1625 = vst.msk [vmem:[%s172 + $0x74] sm:$0xf] %vm1595, %v1496
      %1626 = vst.msk [vmem:[%s172 + $0x78] sm:$0xf] %vm1595, %v1497
      %1627 = vst.msk [vmem:[%s172 + $0x7c] sm:$0xf] %vm1595, %v1498
      %1628 = vst.msk [vmem:[%s172 + $0x80] sm:$0xf] %vm1595, %v1499
      %1629 = vst.msk [vmem:[%s172 + $0x84] sm:$0xf] %vm1595, %v1500
      %1630 = vst.msk [vmem:[%s172 + $0x88] sm:$0xf] %vm1595, %v1501
      %1631 = vst.msk [vmem:[%s172 + $0x8c] sm:$0xf] %vm1595, %v1502
      %1632 = vst.msk [vmem:[%s172 + $0x90] sm:$0xf] %vm1595, %v1503
      %1633 = vst.msk [vmem:[%s172 + $0x94] sm:$0xf] %vm1595, %v1504
      %1634 = vst.msk [vmem:[%s172 + $0x98] sm:$0xf] %vm1595, %v1505
      %1635 = vst.msk [vmem:[%s172 + $0x9c] sm:$0xf] %vm1595, %v1506
      %1636 = vst.msk [vmem:[%s172 + $0xa0] sm:$0xf] %vm1595, %v1507
      %1637 = vst.msk [vmem:[%s172 + $0xa4] sm:$0xf] %vm1595, %v1508
      %1638 = vst.msk [vmem:[%s172 + $0xa8] sm:$0xf] %vm1595, %v1509
      %1639 = vst.msk [vmem:[%s172 + $0xac] sm:$0xf] %vm1595, %v1510
      %1640 = vst.msk [vmem:[%s172 + $0xb0] sm:$0xf] %vm1595, %v1511
      %1641 = vst.msk [vmem:[%s172 + $0xb4] sm:$0xf] %vm1595, %v1512
      %1642 = vst.msk [vmem:[%s172 + $0xb8] sm:$0xf] %vm1595, %v1513
      %1643 = vst.msk [vmem:[%s172 + $0xbc] sm:$0xf] %vm1595, %v1514
      %1644 = vst.msk [vmem:[%s172 + $0xc0] sm:$0xf] %vm1595, %v1515
      %1645 = vst.msk [vmem:[%s172 + $0xc4] sm:$0xf] %vm1595, %v1516
      %1646 = vst.msk [vmem:[%s172 + $0xc8] sm:$0xf] %vm1595, %v1517
      %1647 = vst.msk [vmem:[%s172 + $0xcc] sm:$0xf] %vm1595, %v1518
      %1648 = vst.msk [vmem:[%s172 + $0xd0] sm:$0xf] %vm1595, %v1519
      %1649 = vst.msk [vmem:[%s172 + $0xd4] sm:$0xf] %vm1595, %v1520
      %1650 = vst.msk [vmem:[%s172 + $0xd8] sm:$0xf] %vm1595, %v1521
      %1651 = vst.msk [vmem:[%s172 + $0xdc] sm:$0xf] %vm1595, %v1522
      %1652 = vst.msk [vmem:[%s172 + $0xe0] sm:$0xf] %vm1595, %v1523
      %1653 = vst.msk [vmem:[%s172 + $0xe4] sm:$0xf] %vm1595, %v1524
      %1654 = vst.msk [vmem:[%s172 + $0xe8] sm:$0xf] %vm1595, %v1525
      %1655 = vst.msk [vmem:[%s172 + $0xec] sm:$0xf] %vm1595, %v1526
      %1656 = vst.msk [vmem:[%s172 + $0xf0] sm:$0xf] %vm1595, %v1527
      %1657 = vst.msk [vmem:[%s172 + $0xf4] sm:$0xf] %vm1595, %v1528
      %1658 = vst.msk [vmem:[%s172 + $0xf8] sm:$0xf] %vm1595, %v1529
      %1659 = vst.msk [vmem:[%s172 + $0xfc] sm:$0xf] %vm1595, %v1530
      %1660 = vst.msk [vmem:[%s172 + $0x100] sm:$0xf] %vm1595, %v1531
      %1661 = vst.msk [vmem:[%s172 + $0x104] sm:$0xf] %vm1595, %v1532
      %1662 = vst.msk [vmem:[%s172 + $0x108] sm:$0xf] %vm1595, %v1533
      %1663 = vst.msk [vmem:[%s172 + $0x10c] sm:$0xf] %vm1595, %v1534
      %1664 = vst.msk [vmem:[%s172 + $0x110] sm:$0xf] %vm1595, %v1535
      %1665 = vst.msk [vmem:[%s172 + $0x114] sm:$0xf] %vm1595, %v1536
      %1666 = vst.msk [vmem:[%s172 + $0x118] sm:$0xf] %vm1595, %v1537
      %1667 = vst.msk [vmem:[%s172 + $0x11c] sm:$0xf] %vm1595, %v1538
      %1668 = vst.msk [vmem:[%s172 + $0x120] sm:$0xf] %vm1595, %v1539
      %1669 = vst.msk [vmem:[%s172 + $0x124] sm:$0xf] %vm1595, %v1540
      %1670 = vst.msk [vmem:[%s172 + $0x128] sm:$0xf] %vm1595, %v1541
      %1671 = vst.msk [vmem:[%s172 + $0x12c] sm:$0xf] %vm1595, %v1542
      %1672 = vst.msk [vmem:[%s172 + $0x130] sm:$0xf] %vm1595, %v1543
      %1673 = vst.msk [vmem:[%s172 + $0x134] sm:$0xf] %vm1595, %v1544
      %1674 = vst.msk [vmem:[%s172 + $0x138] sm:$0xf] %vm1595, %v1545
      %1675 = vst.msk [vmem:[%s172 + $0x13c] sm:$0xf] %vm1595, %v1546
      %1676 = vst.msk [vmem:[%s172 + $0x140] sm:$0xf] %vm1595, %v1547
      %1677 = vst.msk [vmem:[%s172 + $0x144] sm:$0xf] %vm1595, %v1548
      %1678 = vst.msk [vmem:[%s172 + $0x148] sm:$0xf] %vm1595, %v1549
      %1679 = vst.msk [vmem:[%s172 + $0x14c] sm:$0xf] %vm1595, %v1550
      %1680 = vst.msk [vmem:[%s172 + $0x150] sm:$0xf] %vm1595, %v1551
      %1681 = vst.msk [vmem:[%s172 + $0x154] sm:$0xf] %vm1595, %v1552
      %1682 = vst.msk [vmem:[%s172 + $0x158] sm:$0xf] %vm1595, %v1553
      %1683 = vst.msk [vmem:[%s172 + $0x15c] sm:$0xf] %vm1595, %v1554
      %1684 = vst.msk [vmem:[%s172 + $0x160] sm:$0xf] %vm1595, %v1555
      %1685 = vst.msk [vmem:[%s172 + $0x164] sm:$0xf] %vm1595, %v1556
      %1686 = vst.msk [vmem:[%s172 + $0x168] sm:$0xf] %vm1595, %v1557
      %1687 = vst.msk [vmem:[%s172 + $0x16c] sm:$0xf] %vm1595, %v1558
      %1688 = vst.msk [vmem:[%s172 + $0x170] sm:$0xf] %vm1595, %v1559
      %1689 = vst.msk [vmem:[%s172 + $0x174] sm:$0xf] %vm1595, %v1560
      %1690 = vst.msk [vmem:[%s172 + $0x178] sm:$0xf] %vm1595, %v1561
      %1691 = vst.msk [vmem:[%s172 + $0x17c] sm:$0xf] %vm1595, %v1562
      %1692 = vst.msk [vmem:[%s172 + $0x180] sm:$0xf] %vm1595, %v1563
      %1693 = vst.msk [vmem:[%s172 + $0x184] sm:$0xf] %vm1595, %v1564
      %1694 = vst.msk [vmem:[%s172 + $0x188] sm:$0xf] %vm1595, %v1565
      %1695 = vst.msk [vmem:[%s172 + $0x18c] sm:$0xf] %vm1595, %v1566
      %1696 = vst.msk [vmem:[%s172 + $0x190] sm:$0xf] %vm1595, %v1567
      %1697 = vst.msk [vmem:[%s172 + $0x194] sm:$0xf] %vm1595, %v1568
      %1698 = vst.msk [vmem:[%s172 + $0x198] sm:$0xf] %vm1595, %v1569
      %1699 = vst.msk [vmem:[%s172 + $0x19c] sm:$0xf] %vm1595, %v1570
      %1700 = vst.msk [vmem:[%s172 + $0x1a0] sm:$0xf] %vm1595, %v1571
      %1701 = vst.msk [vmem:[%s172 + $0x1a4] sm:$0xf] %vm1595, %v1572
      %1702 = vst.msk [vmem:[%s172 + $0x1a8] sm:$0xf] %vm1595, %v1573
      %1703 = vst.msk [vmem:[%s172 + $0x1ac] sm:$0xf] %vm1595, %v1574
      %1704 = vst.msk [vmem:[%s172 + $0x1b0] sm:$0xf] %vm1595, %v1575
      %1705 = vst.msk [vmem:[%s172 + $0x1b4] sm:$0xf] %vm1595, %v1576
      %1706 = vst.msk [vmem:[%s172 + $0x1b8] sm:$0xf] %vm1595, %v1577
      %1707 = vst.msk [vmem:[%s172 + $0x1bc] sm:$0xf] %vm1595, %v1578
      %1708 = vst.msk [vmem:[%s172 + $0x1c0] sm:$0xf] %vm1595, %v1579
      %1709 = vst.msk [vmem:[%s172 + $0x1c4] sm:$0xf] %vm1595, %v1580
      %1710 = vst.msk [vmem:[%s172 + $0x1c8] sm:$0xf] %vm1595, %v1581
      %1711 = vst.msk [vmem:[%s172 + $0x1cc] sm:$0xf] %vm1595, %v1582
      %1712 = vst.msk [vmem:[%s172 + $0x1d0] sm:$0xf] %vm1595, %v1583
      %1713 = vst.msk [vmem:[%s172 + $0x1d4] sm:$0xf] %vm1595, %v1584
      %1714 = vst.msk [vmem:[%s172 + $0x1d8] sm:$0xf] %vm1595, %v1585
      %1715 = vst.msk [vmem:[%s172 + $0x1dc] sm:$0xf] %vm1595, %v1586
      %1716 = vst.msk [vmem:[%s172 + $0x1e0] sm:$0xf] %vm1595, %v1587
      %1717 = vst.msk [vmem:[%s172 + $0x1e4] sm:$0xf] %vm1595, %v1588
      %1718 = vst.msk [vmem:[%s172 + $0x1e8] sm:$0xf] %vm1595, %v1589
      %1719 = vst.msk [vmem:[%s172 + $0x1ec] sm:$0xf] %vm1595, %v1590
      %1720 = vst.msk [vmem:[%s172 + $0x1f0] sm:$0xf] %vm1595, %v1591
      %1721 = vst.msk [vmem:[%s172 + $0x1f4] sm:$0xf] %vm1595, %v1592
      %1722 = vst.msk [vmem:[%s172 + $0x1f8] sm:$0xf] %vm1595, %v1593
      %1723 = vst.msk [vmem:[%s172 + $0x1fc] sm:$0xf] %vm1595, %v1594
      %s1724 = smul.u32 128, %s14
      %p1725 = scmp.lt.s32.totalorder %s1724, 255
      %s1726 = scalar_select %p1725, %s1724, 255
      %s1727 = smul.addr %s1726, 4
      %s1728 = scalar_lea.vmem %s3, %s1727
      // Predicated region
      $region33: #{discriminator_forward.4} parent=31 // pred_check
        %p1729 = pneg %p100
      $region34: #{discriminator_forward.4} parent=31 // pred_check_branch
        %1731 = sbr.rel (%p1729) target = $region36
      $region35: #{discriminator_forward.4} parent=31 // pred_region
        %s1732 = smul.u32 128, %s14
      $region36: #{discriminator_forward.4} parent=31 // pred_fallthru
        _
    $region32: #{discriminator_forward.4} parent=5 // pred_fallthru
      _
    %p1733 = scmp.le.s32.totalorder 2, %s9
    // Predicated region
    $region37: #{discriminator_forward.4} parent=5 // pred_check
      %p1734 = pneg %p1733
    $region38: #{discriminator_forward.4} parent=5 // pred_check_branch
      %1736 = sbr.rel (%p1734) target = $region40
    $region39: #{discriminator_forward.4} parent=5 // pred_region
      %s1737 = ssub.s32 %s9, 2
      // Predicated region
      $region41: #{discriminator_forward.4} parent=39 // pred_check
        %p1738 = pneg %p106
      $region42: #{discriminator_forward.4} parent=39 // pred_check_branch
        %1740 = sbr.rel (%p1738) target = $region44
      $region43: #{discriminator_forward.4} parent=39 // pred_region
        %s1741 = smul.u32 128, %s15
        %p1742 = scmp.lt.s32.totalorder %s1741, 255
        %s1743 = scalar_select %p1742, %s1741, 255
        %s1744 = smul.addr %s1743, 4
        %s1745 = scalar_lea.vmem %s3, %s1744
      $region44: #{discriminator_forward.4} parent=39 // pred_fallthru
        _
    $region40: #{discriminator_forward.4} parent=5 // pred_fallthru
      _
  $region6: #{discriminator_forward.4} parent=0 // loop_footer
    %s13 = sadd.s32 1, %s9
  $region7: #{discriminator_forward.4} parent=0 // loop_footer_branch
    %8 = sbr.rel target = $region3
  $region8: #{discriminator_forward.4} parent=0 // loop_exit
    _

// kernel: discriminator_forward.5
$region0: #{discriminator_forward.5}
  #allocation0 [shape = 'u32[]', space=smem, size = 0x4, offset = 0x4, fixed_abs, tag = 'smem constant byte address 0x4 - core index']
  #allocation1 [shape = 'u32[72,128]{1,0:T(1,128)}', space=vmem, size = 0x9000, scoped, tag = 'internal scratch']
  %s0 = inlined_call_operand.vmem [shape: bf16[512,128], index: 0, kind: input, shape index: {}]
  %s1 = inlined_call_operand.vmem [shape: bf16[128,16], index: 1, kind: input, shape index: {}]
  %s2 = inlined_call_operand.vmem [shape: f32[1,16], index: 2, kind: input, shape index: {}]
  %s3 = inlined_call_operand.vmem [shape: f32[1,16], index: 3, kind: input, shape index: {}]
  %s4 = inlined_call_operand.vmem [shape: bf16[512,16], index: 4, kind: output, shape index: {}]
  %s5 = sld [smem:[#allocation0]]
  $region26: #{discriminator_forward.5} parent=0
    _
  %s7 = ssub.s32 1, %s5
  %s8 = scalar_select 0, %s7, %s5
  // Predicated region
  $region2: #{discriminator_forward.5} parent=0 // pred_check
    _
  $region3: #{discriminator_forward.5} parent=0 // pred_check_branch
    %10 = sbr.rel (0) target = $region5
  $region4: #{discriminator_forward.5} parent=0 // pred_region
    _
  $region5: #{discriminator_forward.5} parent=0 // pred_fallthru
    _
  // Predicated region
  $region6: #{discriminator_forward.5} parent=0 // pred_check
    _
  $region7: #{discriminator_forward.5} parent=0 // pred_check_branch
    %12 = sbr.rel (0) target = $region9
  $region8: #{discriminator_forward.5} parent=0 // pred_region
    _
  $region9: #{discriminator_forward.5} parent=0 // pred_fallthru
    _
  // Predicated region
  $region10: #{discriminator_forward.5} parent=0 // pred_check
    _
  $region11: #{discriminator_forward.5} parent=0 // pred_check_branch
    %14 = sbr.rel (0) target = $region13
  $region12: #{discriminator_forward.5} parent=0 // pred_region
    _
  $region13: #{discriminator_forward.5} parent=0 // pred_fallthru
    _
  // Predicated region
  $region14: #{discriminator_forward.5} parent=0 // pred_check
    _
  $region15: #{discriminator_forward.5} parent=0 // pred_check_branch
    %16 = sbr.rel (0) target = $region17
  $region16: #{discriminator_forward.5} parent=0 // pred_region
    _
  $region17: #{discriminator_forward.5} parent=0 // pred_fallthru
    _
  %v17 = vld [vmem:[%s0] sm:$0xf]
  %v18 = vld [vmem:[%s0 + $0x4] sm:$0xf]
  %v19 = vld [vmem:[%s0 + $0x8] sm:$0xf]
  %v20 = vld [vmem:[%s0 + $0xc] sm:$0xf]
  %v21 = vld [vmem:[%s0 + $0x10] sm:$0xf]
  %v22 = vld [vmem:[%s0 + $0x14] sm:$0xf]
  %v23 = vld [vmem:[%s0 + $0x18] sm:$0xf]
  %v24 = vld [vmem:[%s0 + $0x1c] sm:$0xf]
  %v25 = vld [vmem:[%s0 + $0x20] sm:$0xf]
  %v26 = vld [vmem:[%s0 + $0x24] sm:$0xf]
  %v27 = vld [vmem:[%s0 + $0x28] sm:$0xf]
  %v28 = vld [vmem:[%s0 + $0x2c] sm:$0xf]
  %v29 = vld [vmem:[%s0 + $0x30] sm:$0xf]
  %v30 = vld [vmem:[%s0 + $0x34] sm:$0xf]
  %v31 = vld [vmem:[%s0 + $0x38] sm:$0xf]
  %v32 = vld [vmem:[%s0 + $0x3c] sm:$0xf]
  %v33 = vld [vmem:[%s0 + $0x40] sm:$0xf]
  %v34 = vld [vmem:[%s0 + $0x44] sm:$0xf]
  %v35 = vld [vmem:[%s0 + $0x48] sm:$0xf]
  %v36 = vld [vmem:[%s0 + $0x4c] sm:$0xf]
  %v37 = vld [vmem:[%s0 + $0x50] sm:$0xf]
  %v38 = vld [vmem:[%s0 + $0x54] sm:$0xf]
  %v39 = vld [vmem:[%s0 + $0x58] sm:$0xf]
  %v40 = vld [vmem:[%s0 + $0x5c] sm:$0xf]
  %v41 = vld [vmem:[%s0 + $0x60] sm:$0xf]
  %v42 = vld [vmem:[%s0 + $0x64] sm:$0xf]
  %v43 = vld [vmem:[%s0 + $0x68] sm:$0xf]
  %v44 = vld [vmem:[%s0 + $0x6c] sm:$0xf]
  %v45 = vld [vmem:[%s0 + $0x70] sm:$0xf]
  %v46 = vld [vmem:[%s0 + $0x74] sm:$0xf]
  %v47 = vld [vmem:[%s0 + $0x78] sm:$0xf]
  %v48 = vld [vmem:[%s0 + $0x7c] sm:$0xf]
  %v49 = vld [vmem:[%s0 + $0x80] sm:$0xf]
  %v50 = vld [vmem:[%s0 + $0x84] sm:$0xf]
  %v51 = vld [vmem:[%s0 + $0x88] sm:$0xf]
  %v52 = vld [vmem:[%s0 + $0x8c] sm:$0xf]
  %v53 = vld [vmem:[%s0 + $0x90] sm:$0xf]
  %v54 = vld [vmem:[%s0 + $0x94] sm:$0xf]
  %v55 = vld [vmem:[%s0 + $0x98] sm:$0xf]
  %v56 = vld [vmem:[%s0 + $0x9c] sm:$0xf]
  %v57 = vld [vmem:[%s0 + $0xa0] sm:$0xf]
  %v58 = vld [vmem:[%s0 + $0xa4] sm:$0xf]
  %v59 = vld [vmem:[%s0 + $0xa8] sm:$0xf]
  %v60 = vld [vmem:[%s0 + $0xac] sm:$0xf]
  %v61 = vld [vmem:[%s0 + $0xb0] sm:$0xf]
  %v62 = vld [vmem:[%s0 + $0xb4] sm:$0xf]
  %v63 = vld [vmem:[%s0 + $0xb8] sm:$0xf]
  %v64 = vld [vmem:[%s0 + $0xbc] sm:$0xf]
  %v65 = vld [vmem:[%s0 + $0xc0] sm:$0xf]
  %v66 = vld [vmem:[%s0 + $0xc4] sm:$0xf]
  %v67 = vld [vmem:[%s0 + $0xc8] sm:$0xf]
  %v68 = vld [vmem:[%s0 + $0xcc] sm:$0xf]
  %v69 = vld [vmem:[%s0 + $0xd0] sm:$0xf]
  %v70 = vld [vmem:[%s0 + $0xd4] sm:$0xf]
  %v71 = vld [vmem:[%s0 + $0xd8] sm:$0xf]
  %v72 = vld [vmem:[%s0 + $0xdc] sm:$0xf]
  %v73 = vld [vmem:[%s0 + $0xe0] sm:$0xf]
  %v74 = vld [vmem:[%s0 + $0xe4] sm:$0xf]
  %v75 = vld [vmem:[%s0 + $0xe8] sm:$0xf]
  %v76 = vld [vmem:[%s0 + $0xec] sm:$0xf]
  %v77 = vld [vmem:[%s0 + $0xf0] sm:$0xf]
  %v78 = vld [vmem:[%s0 + $0xf4] sm:$0xf]
  %v79 = vld [vmem:[%s0 + $0xf8] sm:$0xf]
  %v80 = vld [vmem:[%s0 + $0xfc] sm:$0xf]
  %v81 = vld [vmem:[%s1] sm:$0xf]
  %v82 = vld [vmem:[%s1 + $0x4] sm:$0xf]
  %v83 = vld [vmem:[%s1 + $0x8] sm:$0xf]
  %v84 = vld [vmem:[%s1 + $0xc] sm:$0xf]
  %v85 = vld [vmem:[%s1 + $0x10] sm:$0xf]
  %v86 = vld [vmem:[%s1 + $0x14] sm:$0xf]
  %v87 = vld [vmem:[%s1 + $0x18] sm:$0xf]
  %v88 = vld [vmem:[%s1 + $0x1c] sm:$0xf]
  %v89 = vld [vmem:[%s1 + $0x20] sm:$0xf]
  %v90 = vld [vmem:[%s1 + $0x24] sm:$0xf]
  %v91 = vld [vmem:[%s1 + $0x28] sm:$0xf]
  %v92 = vld [vmem:[%s1 + $0x2c] sm:$0xf]
  %v93 = vld [vmem:[%s1 + $0x30] sm:$0xf]
  %v94 = vld [vmem:[%s1 + $0x34] sm:$0xf]
  %v95 = vld [vmem:[%s1 + $0x38] sm:$0xf]
  %v96 = vld [vmem:[%s1 + $0x3c] sm:$0xf]
  %v161 = vunpack.c.l.b16 %v17
  %v162 = vunpack.c.l.b16 %v18
  %v163 = vunpack.c.l.b16 %v19
  %v164 = vunpack.c.l.b16 %v20
  %v165 = vunpack.c.l.b16 %v21
  %v166 = vunpack.c.l.b16 %v22
  %v167 = vunpack.c.l.b16 %v23
  %v168 = vunpack.c.l.b16 %v24
  %v169 = vunpack.c.l.b16 %v25
  %v170 = vunpack.c.l.b16 %v26
  %v171 = vunpack.c.l.b16 %v27
  %v172 = vunpack.c.l.b16 %v28
  %v173 = vunpack.c.l.b16 %v29
  %v174 = vunpack.c.l.b16 %v30
  %v175 = vunpack.c.l.b16 %v31
  %v176 = vunpack.c.l.b16 %v32
  %v177 = vunpack.c.l.b16 %v33
  %v178 = vunpack.c.l.b16 %v34
  %v179 = vunpack.c.l.b16 %v35
  %v180 = vunpack.c.l.b16 %v36
  %v181 = vunpack.c.l.b16 %v37
  %v182 = vunpack.c.l.b16 %v38
  %v183 = vunpack.c.l.b16 %v39
  %v184 = vunpack.c.l.b16 %v40
  %v185 = vunpack.c.l.b16 %v41
  %v186 = vunpack.c.l.b16 %v42
  %v187 = vunpack.c.l.b16 %v43
  %v188 = vunpack.c.l.b16 %v44
  %v189 = vunpack.c.l.b16 %v45
  %v190 = vunpack.c.l.b16 %v46
  %v191 = vunpack.c.l.b16 %v47
  %v192 = vunpack.c.l.b16 %v48
  %v193 = vunpack.c.l.b16 %v49
  %v194 = vunpack.c.l.b16 %v50
  %v195 = vunpack.c.l.b16 %v51
  %v196 = vunpack.c.l.b16 %v52
  %v197 = vunpack.c.l.b16 %v53
  %v198 = vunpack.c.l.b16 %v54
  %v199 = vunpack.c.l.b16 %v55
  %v200 = vunpack.c.l.b16 %v56
  %v201 = vunpack.c.l.b16 %v57
  %v202 = vunpack.c.l.b16 %v58
  %v203 = vunpack.c.l.b16 %v59
  %v204 = vunpack.c.l.b16 %v60
  %v205 = vunpack.c.l.b16 %v61
  %v206 = vunpack.c.l.b16 %v62
  %v207 = vunpack.c.l.b16 %v63
  %v208 = vunpack.c.l.b16 %v64
  %v209 = vunpack.c.l.b16 %v65
  %v210 = vunpack.c.l.b16 %v66
  %v211 = vunpack.c.l.b16 %v67
  %v212 = vunpack.c.l.b16 %v68
  %v213 = vunpack.c.l.b16 %v69
  %v214 = vunpack.c.l.b16 %v70
  %v215 = vunpack.c.l.b16 %v71
  %v216 = vunpack.c.l.b16 %v72
  %v217 = vunpack.c.l.b16 %v73
  %v218 = vunpack.c.l.b16 %v74
  %v219 = vunpack.c.l.b16 %v75
  %v220 = vunpack.c.l.b16 %v76
  %v221 = vunpack.c.l.b16 %v77
  %v222 = vunpack.c.l.b16 %v78
  %v223 = vunpack.c.l.b16 %v79
  %v224 = vunpack.c.l.b16 %v80
  %v225 = vpack.c.b16 %v162, %v161
  %v226 = vpack.c.b16 %v164, %v163
  %v227 = vpack.c.b16 %v166, %v165
  %v228 = vpack.c.b16 %v168, %v167
  %v229 = vpack.c.b16 %v170, %v169
  %v230 = vpack.c.b16 %v172, %v171
  %v231 = vpack.c.b16 %v174, %v173
  %v232 = vpack.c.b16 %v176, %v175
  %v233 = vpack.c.b16 %v178, %v177
  %v234 = vpack.c.b16 %v180, %v179
  %v235 = vpack.c.b16 %v182, %v181
  %v236 = vpack.c.b16 %v184, %v183
  %v237 = vpack.c.b16 %v186, %v185
  %v238 = vpack.c.b16 %v188, %v187
  %v239 = vpack.c.b16 %v190, %v189
  %v240 = vpack.c.b16 %v192, %v191
  %v241 = vpack.c.b16 %v194, %v193
  %v242 = vpack.c.b16 %v196, %v195
  %v243 = vpack.c.b16 %v198, %v197
  %v244 = vpack.c.b16 %v200, %v199
  %v245 = vpack.c.b16 %v202, %v201
  %v246 = vpack.c.b16 %v204, %v203
  %v247 = vpack.c.b16 %v206, %v205
  %v248 = vpack.c.b16 %v208, %v207
  %v249 = vpack.c.b16 %v210, %v209
  %v250 = vpack.c.b16 %v212, %v211
  %v251 = vpack.c.b16 %v214, %v213
  %v252 = vpack.c.b16 %v216, %v215
  %v253 = vpack.c.b16 %v218, %v217
  %v254 = vpack.c.b16 %v220, %v219
  %v255 = vpack.c.b16 %v222, %v221
  %v256 = vpack.c.b16 %v224, %v223
  %v305 = vunpack.c.l.b16 %v81
  %v306 = vunpack.c.l.b16 %v82
  %v307 = vunpack.c.l.b16 %v83
  %v308 = vunpack.c.l.b16 %v84
  %v309 = vunpack.c.l.b16 %v85
  %v310 = vunpack.c.l.b16 %v86
  %v311 = vunpack.c.l.b16 %v87
  %v312 = vunpack.c.l.b16 %v88
  %v313 = vunpack.c.l.b16 %v89
  %v314 = vunpack.c.l.b16 %v90
  %v315 = vunpack.c.l.b16 %v91
  %v316 = vunpack.c.l.b16 %v92
  %v317 = vunpack.c.l.b16 %v93
  %v318 = vunpack.c.l.b16 %v94
  %v319 = vunpack.c.l.b16 %v95
  %v320 = vunpack.c.l.b16 %v96
  %v321 = vpack.c.b16 %v306, %v305
  %v322 = vpack.c.b16 %v308, %v307
  %v323 = vpack.c.b16 %v310, %v309
  %v324 = vpack.c.b16 %v312, %v311
  %v325 = vpack.c.b16 %v314, %v313
  %v326 = vpack.c.b16 %v316, %v315
  %v327 = vpack.c.b16 %v318, %v317
  %v328 = vpack.c.b16 %v320, %v319
  %337 = vmatpush.bf16.msra.mxu0 %v328
  %338 = vmatpush.bf16.msra.mxu0 %v327
  %339 = vmatpush.bf16.msra.mxu0 %v326
  %340 = vmatpush.bf16.msra.mxu0 %v325
  %341 = vmatpush.bf16.msra.mxu0 %v324
  %342 = vmatpush.bf16.msra.mxu0 %v323
  %343 = vmatpush.bf16.msra.mxu0 %v322
  %344 = vmatpush.bf16.msra.mxu0 %v321
  %345 = vmatmul.bf16.gmra.mxu0 %v225
  %v346 = vpop.f32.mrf.mxu0
  %v347 = vadd.f32 0.0, %v346
  %v348 = vpop.f32.mrf.mxu0
  %v349 = vadd.f32 0.0, %v348
  %350 = vmatmul.bf16.gmra.mxu0 %v226
  %v351 = vpop.f32.mrf.mxu0
  %v352 = vadd.f32 0.0, %v351
  %v353 = vpop.f32.mrf.mxu0
  %v354 = vadd.f32 0.0, %v353
  %355 = vmatmul.bf16.gmra.mxu0 %v227
  %v356 = vpop.f32.mrf.mxu0
  %v357 = vadd.f32 0.0, %v356
  %v358 = vpop.f32.mrf.mxu0
  %v359 = vadd.f32 0.0, %v358
  %360 = vmatmul.bf16.gmra.mxu0 %v228
  %v361 = vpop.f32.mrf.mxu0
  %v362 = vadd.f32 0.0, %v361
  %v363 = vpop.f32.mrf.mxu0
  %v364 = vadd.f32 0.0, %v363
  %365 = vmatmul.bf16.gmra.mxu0 %v229
  %v366 = vpop.f32.mrf.mxu0
  %v367 = vadd.f32 0.0, %v366
  %v368 = vpop.f32.mrf.mxu0
  %v369 = vadd.f32 0.0, %v368
  %370 = vmatmul.bf16.gmra.mxu0 %v230
  %v371 = vpop.f32.mrf.mxu0
  %v372 = vadd.f32 0.0, %v371
  %v373 = vpop.f32.mrf.mxu0
  %v374 = vadd.f32 0.0, %v373
  %375 = vmatmul.bf16.gmra.mxu0 %v231
  %v376 = vpop.f32.mrf.mxu0
  %v377 = vadd.f32 0.0, %v376
  %v378 = vpop.f32.mrf.mxu0
  %v379 = vadd.f32 0.0, %v378
  %380 = vmatmul.bf16.gmra.mxu0 %v232
  %v381 = vpop.f32.mrf.mxu0
  %v382 = vadd.f32 0.0, %v381
  %v383 = vpop.f32.mrf.mxu0
  %v384 = vadd.f32 0.0, %v383
  %385 = vmatmul.bf16.gmra.mxu0 %v233
  %v386 = vpop.f32.mrf.mxu0
  %v387 = vadd.f32 0.0, %v386
  %v388 = vpop.f32.mrf.mxu0
  %v389 = vadd.f32 0.0, %v388
  %390 = vmatmul.bf16.gmra.mxu0 %v234
  %v391 = vpop.f32.mrf.mxu0
  %v392 = vadd.f32 0.0, %v391
  %v393 = vpop.f32.mrf.mxu0
  %v394 = vadd.f32 0.0, %v393
  %395 = vmatmul.bf16.gmra.mxu0 %v235
  %v396 = vpop.f32.mrf.mxu0
  %v397 = vadd.f32 0.0, %v396
  %v398 = vpop.f32.mrf.mxu0
  %v399 = vadd.f32 0.0, %v398
  %400 = vmatmul.bf16.gmra.mxu0 %v236
  %v401 = vpop.f32.mrf.mxu0
  %v402 = vadd.f32 0.0, %v401
  %v403 = vpop.f32.mrf.mxu0
  %v404 = vadd.f32 0.0, %v403
  %405 = vmatmul.bf16.gmra.mxu0 %v237
  %v406 = vpop.f32.mrf.mxu0
  %v407 = vadd.f32 0.0, %v406
  %v408 = vpop.f32.mrf.mxu0
  %v409 = vadd.f32 0.0, %v408
  %410 = vmatmul.bf16.gmra.mxu0 %v238
  %v411 = vpop.f32.mrf.mxu0
  %v412 = vadd.f32 0.0, %v411
  %v413 = vpop.f32.mrf.mxu0
  %v414 = vadd.f32 0.0, %v413
  %415 = vmatmul.bf16.gmra.mxu0 %v239
  %v416 = vpop.f32.mrf.mxu0
  %v417 = vadd.f32 0.0, %v416
  %v418 = vpop.f32.mrf.mxu0
  %v419 = vadd.f32 0.0, %v418
  %420 = vmatmul.bf16.gmra.mxu0 %v240
  %v421 = vpop.f32.mrf.mxu0
  %v422 = vadd.f32 0.0, %v421
  %v423 = vpop.f32.mrf.mxu0
  %v424 = vadd.f32 0.0, %v423
  %425 = vmatmul.bf16.gmra.mxu0 %v241
  %v426 = vpop.f32.mrf.mxu0
  %v427 = vadd.f32 0.0, %v426
  %v428 = vpop.f32.mrf.mxu0
  %v429 = vadd.f32 0.0, %v428
  %430 = vmatmul.bf16.gmra.mxu0 %v242
  %v431 = vpop.f32.mrf.mxu0
  %v432 = vadd.f32 0.0, %v431
  %v433 = vpop.f32.mrf.mxu0
  %v434 = vadd.f32 0.0, %v433
  %435 = vmatmul.bf16.gmra.mxu0 %v243
  %v436 = vpop.f32.mrf.mxu0
  %v437 = vadd.f32 0.0, %v436
  %v438 = vpop.f32.mrf.mxu0
  %v439 = vadd.f32 0.0, %v438
  %440 = vmatmul.bf16.gmra.mxu0 %v244
  %v441 = vpop.f32.mrf.mxu0
  %v442 = vadd.f32 0.0, %v441
  %v443 = vpop.f32.mrf.mxu0
  %v444 = vadd.f32 0.0, %v443
  %445 = vmatmul.bf16.gmra.mxu0 %v245
  %v446 = vpop.f32.mrf.mxu0
  %v447 = vadd.f32 0.0, %v446
  %v448 = vpop.f32.mrf.mxu0
  %v449 = vadd.f32 0.0, %v448
  %450 = vmatmul.bf16.gmra.mxu0 %v246
  %v451 = vpop.f32.mrf.mxu0
  %v452 = vadd.f32 0.0, %v451
  %v453 = vpop.f32.mrf.mxu0
  %v454 = vadd.f32 0.0, %v453
  %455 = vmatmul.bf16.gmra.mxu0 %v247
  %v456 = vpop.f32.mrf.mxu0
  %v457 = vadd.f32 0.0, %v456
  %v458 = vpop.f32.mrf.mxu0
  %v459 = vadd.f32 0.0, %v458
  %460 = vmatmul.bf16.gmra.mxu0 %v248
  %v461 = vpop.f32.mrf.mxu0
  %v462 = vadd.f32 0.0, %v461
  %v463 = vpop.f32.mrf.mxu0
  %v464 = vadd.f32 0.0, %v463
  %465 = vmatmul.bf16.gmra.mxu0 %v249
  %v466 = vpop.f32.mrf.mxu0
  %v467 = vadd.f32 0.0, %v466
  %v468 = vpop.f32.mrf.mxu0
  %v469 = vadd.f32 0.0, %v468
  %470 = vmatmul.bf16.gmra.mxu0 %v250
  %v471 = vpop.f32.mrf.mxu0
  %v472 = vadd.f32 0.0, %v471
  %v473 = vpop.f32.mrf.mxu0
  %v474 = vadd.f32 0.0, %v473
  %475 = vmatmul.bf16.gmra.mxu0 %v251
  %v476 = vpop.f32.mrf.mxu0
  %v477 = vadd.f32 0.0, %v476
  %v478 = vpop.f32.mrf.mxu0
  %v479 = vadd.f32 0.0, %v478
  %480 = vmatmul.bf16.gmra.mxu0 %v252
  %v481 = vpop.f32.mrf.mxu0
  %v482 = vadd.f32 0.0, %v481
  %v483 = vpop.f32.mrf.mxu0
  %v484 = vadd.f32 0.0, %v483
  %485 = vmatmul.bf16.gmra.mxu0 %v253
  %v486 = vpop.f32.mrf.mxu0
  %v487 = vadd.f32 0.0, %v486
  %v488 = vpop.f32.mrf.mxu0
  %v489 = vadd.f32 0.0, %v488
  %490 = vmatmul.bf16.gmra.mxu0 %v254
  %v491 = vpop.f32.mrf.mxu0
  %v492 = vadd.f32 0.0, %v491
  %v493 = vpop.f32.mrf.mxu0
  %v494 = vadd.f32 0.0, %v493
  %495 = vmatmul.bf16.gmra.mxu0 %v255
  %v496 = vpop.f32.mrf.mxu0
  %v497 = vadd.f32 0.0, %v496
  %v498 = vpop.f32.mrf.mxu0
  %v499 = vadd.f32 0.0, %v498
  %500 = vmatmul.bf16.gmra.mxu0 %v256
  %v501 = vpop.f32.mrf.mxu0
  %v502 = vadd.f32 0.0, %v501
  %v503 = vpop.f32.mrf.mxu0
  %v504 = vadd.f32 0.0, %v503
  %505 = vdwg.mxu0
  %vm506 = vcmask 130048
  %v507 = vsel %vm506, %v347, 0.0
  %v508 = vsel %vm506, %v349, 0.0
  %v509 = vadd.f32 %v507, %v508
  %v510 = vsel %vm506, %v352, 0.0
  %v511 = vadd.f32 %v509, %v510
  %v512 = vsel %vm506, %v354, 0.0
  %v513 = vadd.f32 %v511, %v512
  %v514 = vsel %vm506, %v357, 0.0
  %v515 = vadd.f32 %v513, %v514
  %v516 = vsel %vm506, %v359, 0.0
  %v517 = vadd.f32 %v515, %v516
  %v518 = vsel %vm506, %v362, 0.0
  %v519 = vadd.f32 %v517, %v518
  %v520 = vsel %vm506, %v364, 0.0
  %v521 = vadd.f32 %v519, %v520
  %v522 = vsel %vm506, %v367, 0.0
  %v523 = vadd.f32 %v521, %v522
  %v524 = vsel %vm506, %v369, 0.0
  %v525 = vadd.f32 %v523, %v524
  %v526 = vsel %vm506, %v372, 0.0
  %v527 = vadd.f32 %v525, %v526
  %v528 = vsel %vm506, %v374, 0.0
  %v529 = vadd.f32 %v527, %v528
  %v530 = vsel %vm506, %v377, 0.0
  %v531 = vadd.f32 %v529, %v530
  %v532 = vsel %vm506, %v379, 0.0
  %v533 = vadd.f32 %v531, %v532
  %v534 = vsel %vm506, %v382, 0.0
  %v535 = vadd.f32 %v533, %v534
  %v536 = vsel %vm506, %v384, 0.0
  %v537 = vadd.f32 %v535, %v536
  %v538 = vsel %vm506, %v387, 0.0
  %v539 = vadd.f32 %v537, %v538
  %v540 = vsel %vm506, %v389, 0.0
  %v541 = vadd.f32 %v539, %v540
  %v542 = vsel %vm506, %v392, 0.0
  %v543 = vadd.f32 %v541, %v542
  %v544 = vsel %vm506, %v394, 0.0
  %v545 = vadd.f32 %v543, %v544
  %v546 = vsel %vm506, %v397, 0.0
  %v547 = vadd.f32 %v545, %v546
  %v548 = vsel %vm506, %v399, 0.0
  %v549 = vadd.f32 %v547, %v548
  %v550 = vsel %vm506, %v402, 0.0
  %v551 = vadd.f32 %v549, %v550
  %v552 = vsel %vm506, %v404, 0.0
  %v553 = vadd.f32 %v551, %v552
  %v554 = vsel %vm506, %v407, 0.0
  %v555 = vadd.f32 %v553, %v554
  %v556 = vsel %vm506, %v409, 0.0
  %v557 = vadd.f32 %v555, %v556
  %v558 = vsel %vm506, %v412, 0.0
  %v559 = vadd.f32 %v557, %v558
  %v560 = vsel %vm506, %v414, 0.0
  %v561 = vadd.f32 %v559, %v560
  %v562 = vsel %vm506, %v417, 0.0
  %v563 = vadd.f32 %v561, %v562
  %v564 = vsel %vm506, %v419, 0.0
  %v565 = vadd.f32 %v563, %v564
  %v566 = vsel %vm506, %v422, 0.0
  %v567 = vadd.f32 %v565, %v566
  %v568 = vsel %vm506, %v424, 0.0
  %v569 = vadd.f32 %v567, %v568
  %v570 = vsel %vm506, %v427, 0.0
  %v571 = vadd.f32 %v569, %v570
  %v572 = vsel %vm506, %v429, 0.0
  %v573 = vadd.f32 %v571, %v572
  %v574 = vsel %vm506, %v432, 0.0
  %v575 = vadd.f32 %v573, %v574
  %v576 = vsel %vm506, %v434, 0.0
  %v577 = vadd.f32 %v575, %v576
  %v578 = vsel %vm506, %v437, 0.0
  %v579 = vadd.f32 %v577, %v578
  %v580 = vsel %vm506, %v439, 0.0
  %v581 = vadd.f32 %v579, %v580
  %v582 = vsel %vm506, %v442, 0.0
  %v583 = vadd.f32 %v581, %v582
  %v584 = vsel %vm506, %v444, 0.0
  %v585 = vadd.f32 %v583, %v584
  %v586 = vsel %vm506, %v447, 0.0
  %v587 = vadd.f32 %v585, %v586
  %v588 = vsel %vm506, %v449, 0.0
  %v589 = vadd.f32 %v587, %v588
  %v590 = vsel %vm506, %v452, 0.0
  %v591 = vadd.f32 %v589, %v590
  %v592 = vsel %vm506, %v454, 0.0
  %v593 = vadd.f32 %v591, %v592
  %v594 = vsel %vm506, %v457, 0.0
  %v595 = vadd.f32 %v593, %v594
  %v596 = vsel %vm506, %v459, 0.0
  %v597 = vadd.f32 %v595, %v596
  %v598 = vsel %vm506, %v462, 0.0
  %v599 = vadd.f32 %v597, %v598
  %v600 = vsel %vm506, %v464, 0.0
  %v601 = vadd.f32 %v599, %v600
  %v602 = vsel %vm506, %v467, 0.0
  %v603 = vadd.f32 %v601, %v602
  %v604 = vsel %vm506, %v469, 0.0
  %v605 = vadd.f32 %v603, %v604
  %v606 = vsel %vm506, %v472, 0.0
  %v607 = vadd.f32 %v605, %v606
  %v608 = vsel %vm506, %v474, 0.0
  %v609 = vadd.f32 %v607, %v608
  %v610 = vsel %vm506, %v477, 0.0
  %v611 = vadd.f32 %v609, %v610
  %v612 = vsel %vm506, %v479, 0.0
  %v613 = vadd.f32 %v611, %v612
  %v614 = vsel %vm506, %v482, 0.0
  %v615 = vadd.f32 %v613, %v614
  %v616 = vsel %vm506, %v484, 0.0
  %v617 = vadd.f32 %v615, %v616
  %v618 = vsel %vm506, %v487, 0.0
  %v619 = vadd.f32 %v617, %v618
  %v620 = vsel %vm506, %v489, 0.0
  %v621 = vadd.f32 %v619, %v620
  %v622 = vsel %vm506, %v492, 0.0
  %v623 = vadd.f32 %v621, %v622
  %v624 = vsel %vm506, %v494, 0.0
  %v625 = vadd.f32 %v623, %v624
  %v626 = vsel %vm506, %v497, 0.0
  %v627 = vadd.f32 %v625, %v626
  %v628 = vsel %vm506, %v499, 0.0
  %v629 = vadd.f32 %v627, %v628
  %v630 = vsel %vm506, %v502, 0.0
  %v631 = vadd.f32 %v629, %v630
  %v632 = vsel %vm506, %v504, 0.0
  %v633 = vadd.f32 %v631, %v632
  %v634 = vrot.slane %v633, 4
  %v635 = vadd.f32 %v633, %v634
  %v636 = vrot.slane %v635, 2
  %v637 = vadd.f32 %v635, %v636
  %v638 = vrot.slane %v637, 1
  %v639 = vadd.f32 %v637, %v638
  %v640 = vrcp.pop 512.0
  %v641 = vmul.f32 512.0, %v640
  %v642 = vsub.f32 1.0, %v641
  %v643 = vmul.f32 %v640, %v642
  %v644 = vadd.f32 %v640, %v643
  %vm645 = vweird.f32 %v640
  %v646 = vsel %vm645, %v640, %v644
  %v647 = vmul.f32 %v639, %v646
  %v648 = vsub.f32 %v347, %v647
  %v649 = vsub.f32 %v349, %v647
  %v650 = vsub.f32 %v352, %v647
  %v651 = vsub.f32 %v354, %v647
  %v652 = vsub.f32 %v357, %v647
  %v653 = vsub.f32 %v359, %v647
  %v654 = vsub.f32 %v362, %v647
  %v655 = vsub.f32 %v364, %v647
  %v656 = vsub.f32 %v367, %v647
  %v657 = vsub.f32 %v369, %v647
  %v658 = vsub.f32 %v372, %v647
  %v659 = vsub.f32 %v374, %v647
  %v660 = vsub.f32 %v377, %v647
  %v661 = vsub.f32 %v379, %v647
  %v662 = vsub.f32 %v382, %v647
  %v663 = vsub.f32 %v384, %v647
  %v664 = vsub.f32 %v387, %v647
  %v665 = vsub.f32 %v389, %v647
  %v666 = vsub.f32 %v392, %v647
  %v667 = vsub.f32 %v394, %v647
  %v668 = vsub.f32 %v397, %v647
  %v669 = vsub.f32 %v399, %v647
  %v670 = vsub.f32 %v402, %v647
  %v671 = vsub.f32 %v404, %v647
  %v672 = vsub.f32 %v407, %v647
  %v673 = vsub.f32 %v409, %v647
  %v674 = vsub.f32 %v412, %v647
  %v675 = vsub.f32 %v414, %v647
  %v676 = vsub.f32 %v417, %v647
  %v677 = vsub.f32 %v419, %v647
  %v678 = vsub.f32 %v422, %v647
  %v679 = vsub.f32 %v424, %v647
  %v680 = vsub.f32 %v427, %v647
  %v681 = vsub.f32 %v429, %v647
  %v682 = vsub.f32 %v432, %v647
  %v683 = vsub.f32 %v434, %v647
  %v684 = vsub.f32 %v437, %v647
  %v685 = vsub.f32 %v439, %v647
  %v686 = vsub.f32 %v442, %v647
  %v687 = vsub.f32 %v444, %v647
  %v688 = vsub.f32 %v447, %v647
  %v689 = vsub.f32 %v449, %v647
  %v690 = vsub.f32 %v452, %v647
  %v691 = vsub.f32 %v454, %v647
  %v692 = vsub.f32 %v457, %v647
  %v693 = vsub.f32 %v459, %v647
  %v694 = vsub.f32 %v462, %v647
  %v695 = vsub.f32 %v464, %v647
  %v696 = vsub.f32 %v467, %v647
  %v697 = vsub.f32 %v469, %v647
  %v698 = vsub.f32 %v472, %v647
  %v699 = vsub.f32 %v474, %v647
  %v700 = vsub.f32 %v477, %v647
  %v701 = vsub.f32 %v479, %v647
  %v702 = vsub.f32 %v482, %v647
  %v703 = vsub.f32 %v484, %v647
  %v704 = vsub.f32 %v487, %v647
  %v705 = vsub.f32 %v489, %v647
  %v706 = vsub.f32 %v492, %v647
  %v707 = vsub.f32 %v494, %v647
  %v708 = vsub.f32 %v497, %v647
  %v709 = vsub.f32 %v499, %v647
  %v710 = vsub.f32 %v502, %v647
  %v711 = vsub.f32 %v504, %v647
  %v712 = vmul.f32 %v648, %v648
  %v713 = vmul.f32 %v649, %v649
  %v714 = vmul.f32 %v650, %v650
  %v715 = vmul.f32 %v651, %v651
  %v716 = vmul.f32 %v652, %v652
  %v717 = vmul.f32 %v653, %v653
  %v718 = vmul.f32 %v654, %v654
  %v719 = vmul.f32 %v655, %v655
  %v720 = vmul.f32 %v656, %v656
  %v721 = vmul.f32 %v657, %v657
  %v722 = vmul.f32 %v658, %v658
  %v723 = vmul.f32 %v659, %v659
  %v724 = vmul.f32 %v660, %v660
  %v725 = vmul.f32 %v661, %v661
  %v726 = vmul.f32 %v662, %v662
  %v727 = vmul.f32 %v663, %v663
  %v728 = vmul.f32 %v664, %v664
  %v729 = vmul.f32 %v665, %v665
  %v730 = vmul.f32 %v666, %v666
  %v731 = vmul.f32 %v667, %v667
  %v732 = vmul.f32 %v668, %v668
  %v733 = vmul.f32 %v669, %v669
  %v734 = vmul.f32 %v670, %v670
  %v735 = vmul.f32 %v671, %v671
  %v736 = vmul.f32 %v672, %v672
  %v737 = vmul.f32 %v673, %v673
  %v738 = vmul.f32 %v674, %v674
  %v739 = vmul.f32 %v675, %v675
  %v740 = vmul.f32 %v676, %v676
  %v741 = vmul.f32 %v677, %v677
  %v742 = vmul.f32 %v678, %v678
  %v743 = vmul.f32 %v679, %v679
  %v744 = vmul.f32 %v680, %v680
  %v745 = vmul.f32 %v681, %v681
  %v746 = vmul.f32 %v682, %v682
  %v747 = vmul.f32 %v683, %v683
  %v748 = vmul.f32 %v684, %v684
  %v749 = vmul.f32 %v685, %v685
  %v750 = vmul.f32 %v686, %v686
  %v751 = vmul.f32 %v687, %v687
  %v752 = vmul.f32 %v688, %v688
  %v753 = vmul.f32 %v689, %v689
  %v754 = vmul.f32 %v690, %v690
  %v755 = vmul.f32 %v691, %v691
  %v756 = vmul.f32 %v692, %v692
  %v757 = vmul.f32 %v693, %v693
  %v758 = vmul.f32 %v694, %v694
  %v759 = vmul.f32 %v695, %v695
  %v760 = vmul.f32 %v696, %v696
  %v761 = vmul.f32 %v697, %v697
  %v762 = vmul.f32 %v698, %v698
  %v763 = vmul.f32 %v699, %v699
  %v764 = vmul.f32 %v700, %v700
  %v765 = vmul.f32 %v701, %v701
  %v766 = vmul.f32 %v702, %v702
  %v767 = vmul.f32 %v703, %v703
  %v768 = vmul.f32 %v704, %v704
  %v769 = vmul.f32 %v705, %v705
  %v770 = vmul.f32 %v706, %v706
  %v771 = vmul.f32 %v707, %v707
  %v772 = vmul.f32 %v708, %v708
  %v773 = vmul.f32 %v709, %v709
  %v774 = vmul.f32 %v710, %v710
  %v775 = vmul.f32 %v711, %v711
  %v776 = vsel %vm506, %v712, 0.0
  %v777 = vsel %vm506, %v713, 0.0
  %v778 = vadd.f32 %v776, %v777
  %v779 = vsel %vm506, %v714, 0.0
  %v780 = vadd.f32 %v778, %v779
  %v781 = vsel %vm506, %v715, 0.0
  %v782 = vadd.f32 %v780, %v781
  %v783 = vsel %vm506, %v716, 0.0
  %v784 = vadd.f32 %v782, %v783
  %v785 = vsel %vm506, %v717, 0.0
  %v786 = vadd.f32 %v784, %v785
  %v787 = vsel %vm506, %v718, 0.0
  %v788 = vadd.f32 %v786, %v787
  %v789 = vsel %vm506, %v719, 0.0
  %v790 = vadd.f32 %v788, %v789
  %v791 = vsel %vm506, %v720, 0.0
  %v792 = vadd.f32 %v790, %v791
  %v793 = vsel %vm506, %v721, 0.0
  %v794 = vadd.f32 %v792, %v793
  %v795 = vsel %vm506, %v722, 0.0
  %v796 = vadd.f32 %v794, %v795
  %v797 = vsel %vm506, %v723, 0.0
  %v798 = vadd.f32 %v796, %v797
  %v799 = vsel %vm506, %v724, 0.0
  %v800 = vadd.f32 %v798, %v799
  %v801 = vsel %vm506, %v725, 0.0
  %v802 = vadd.f32 %v800, %v801
  %v803 = vsel %vm506, %v726, 0.0
  %v804 = vadd.f32 %v802, %v803
  %v805 = vsel %vm506, %v727, 0.0
  %v806 = vadd.f32 %v804, %v805
  %v807 = vsel %vm506, %v728, 0.0
  %v808 = vadd.f32 %v806, %v807
  %v809 = vsel %vm506, %v729, 0.0
  %v810 = vadd.f32 %v808, %v809
  %v811 = vsel %vm506, %v730, 0.0
  %v812 = vadd.f32 %v810, %v811
  %v813 = vsel %vm506, %v731, 0.0
  %v814 = vadd.f32 %v812, %v813
  %v815 = vsel %vm506, %v732, 0.0
  %v816 = vadd.f32 %v814, %v815
  %v817 = vsel %vm506, %v733, 0.0
  %v818 = vadd.f32 %v816, %v817
  %v819 = vsel %vm506, %v734, 0.0
  %v820 = vadd.f32 %v818, %v819
  %v821 = vsel %vm506, %v735, 0.0
  %v822 = vadd.f32 %v820, %v821
  %v823 = vsel %vm506, %v736, 0.0
  %v824 = vadd.f32 %v822, %v823
  %v825 = vsel %vm506, %v737, 0.0
  %v826 = vadd.f32 %v824, %v825
  %v827 = vsel %vm506, %v738, 0.0
  %v828 = vadd.f32 %v826, %v827
  %v829 = vsel %vm506, %v739, 0.0
  %v830 = vadd.f32 %v828, %v829
  %v831 = vsel %vm506, %v740, 0.0
  %v832 = vadd.f32 %v830, %v831
  %v833 = vsel %vm506, %v741, 0.0
  %v834 = vadd.f32 %v832, %v833
  %v835 = vsel %vm506, %v742, 0.0
  %v836 = vadd.f32 %v834, %v835
  %v837 = vsel %vm506, %v743, 0.0
  %v838 = vadd.f32 %v836, %v837
  %v839 = vsel %vm506, %v744, 0.0
  %v840 = vadd.f32 %v838, %v839
  %v841 = vsel %vm506, %v745, 0.0
  %v842 = vadd.f32 %v840, %v841
  %v843 = vsel %vm506, %v746, 0.0
  %v844 = vadd.f32 %v842, %v843
  %v845 = vsel %vm506, %v747, 0.0
  %v846 = vadd.f32 %v844, %v845
  %v847 = vsel %vm506, %v748, 0.0
  %v848 = vadd.f32 %v846, %v847
  %v849 = vsel %vm506, %v749, 0.0
  %v850 = vadd.f32 %v848, %v849
  %v851 = vsel %vm506, %v750, 0.0
  %v852 = vadd.f32 %v850, %v851
  %v853 = vsel %vm506, %v751, 0.0
  %v854 = vadd.f32 %v852, %v853
  %v855 = vsel %vm506, %v752, 0.0
  %v856 = vadd.f32 %v854, %v855
  %v857 = vsel %vm506, %v753, 0.0
  %v858 = vadd.f32 %v856, %v857
  %v859 = vsel %vm506, %v754, 0.0
  %v860 = vadd.f32 %v858, %v859
  %v861 = vsel %vm506, %v755, 0.0
  %v862 = vadd.f32 %v860, %v861
  %v863 = vsel %vm506, %v756, 0.0
  %v864 = vadd.f32 %v862, %v863
  %v865 = vsel %vm506, %v757, 0.0
  %v866 = vadd.f32 %v864, %v865
  %v867 = vsel %vm506, %v758, 0.0
  %v868 = vadd.f32 %v866, %v867
  %v869 = vsel %vm506, %v759, 0.0
  %v870 = vadd.f32 %v868, %v869
  %v871 = vsel %vm506, %v760, 0.0
  %v872 = vadd.f32 %v870, %v871
  %v873 = vsel %vm506, %v761, 0.0
  %v874 = vadd.f32 %v872, %v873
  %v875 = vsel %vm506, %v762, 0.0
  %v876 = vadd.f32 %v874, %v875
  %v877 = vsel %vm506, %v763, 0.0
  %v878 = vadd.f32 %v876, %v877
  %v879 = vsel %vm506, %v764, 0.0
  %v880 = vadd.f32 %v878, %v879
  %v881 = vsel %vm506, %v765, 0.0
  %v882 = vadd.f32 %v880, %v881
  %v883 = vsel %vm506, %v766, 0.0
  %v884 = vadd.f32 %v882, %v883
  %v885 = vsel %vm506, %v767, 0.0
  %v886 = vadd.f32 %v884, %v885
  %v887 = vsel %vm506, %v768, 0.0
  %v888 = vadd.f32 %v886, %v887
  %v889 = vsel %vm506, %v769, 0.0
  %v890 = vadd.f32 %v888, %v889
  %v891 = vsel %vm506, %v770, 0.0
  %v892 = vadd.f32 %v890, %v891
  %v893 = vsel %vm506, %v771, 0.0
  %v894 = vadd.f32 %v892, %v893
  %v895 = vsel %vm506, %v772, 0.0
  %v896 = vadd.f32 %v894, %v895
  %v897 = vsel %vm506, %v773, 0.0
  %v898 = vadd.f32 %v896, %v897
  %v899 = vsel %vm506, %v774, 0.0
  %v900 = vadd.f32 %v898, %v899
  %v901 = vsel %vm506, %v775, 0.0
  %v902 = vadd.f32 %v900, %v901
  %v903 = vrot.slane %v902, 4
  %v904 = vadd.f32 %v902, %v903
  %v905 = vrot.slane %v904, 2
  %v906 = vadd.f32 %v904, %v905
  %v907 = vrot.slane %v906, 1
  %v908 = vadd.f32 %v906, %v907
  %v909 = vmul.f32 %v908, %v646
  %v910 = vld [vmem:[%s2] sm:$0x1]
  %v911 = vadd.f32 %v909, 1e-05
  %v912 = vrsqrt.pop %v911
  %v913 = vmul.f32 %v912, %v911
  %v914 = vmul.f32 %v913, %v912
  %v915 = vmul.f32 0.5, %v914
  %v916 = vsub.f32 1.5, %v915
  %v917 = vmul.f32 %v912, %v916
  %vm918 = vweird.f32 %v911
  %vm919 = vweird.f32 %v912
  %vm920 = vmor %vm918, %vm919
  %v921 = vsel %vm920, %v912, %v917
  %v922 = vmul.f32 %v910, %v921
  %v924 = vperm.slane %v922, 0
  %v926 = vmul.f32 %v648, %v924
  %v927 = vmul.f32 %v649, %v924
  %v928 = vmul.f32 %v650, %v924
  %v929 = vmul.f32 %v651, %v924
  %v930 = vmul.f32 %v652, %v924
  %v931 = vmul.f32 %v653, %v924
  %v932 = vmul.f32 %v654, %v924
  %v933 = vmul.f32 %v655, %v924
  %v934 = vmul.f32 %v656, %v924
  %v935 = vmul.f32 %v657, %v924
  %v936 = vmul.f32 %v658, %v924
  %v937 = vmul.f32 %v659, %v924
  %v938 = vmul.f32 %v660, %v924
  %v939 = vmul.f32 %v661, %v924
  %v940 = vmul.f32 %v662, %v924
  %v941 = vmul.f32 %v663, %v924
  %v942 = vmul.f32 %v664, %v924
  %v943 = vmul.f32 %v665, %v924
  %v944 = vmul.f32 %v666, %v924
  %v945 = vmul.f32 %v667, %v924
  %v946 = vmul.f32 %v668, %v924
  %v947 = vmul.f32 %v669, %v924
  %v948 = vmul.f32 %v670, %v924
  %v949 = vmul.f32 %v671, %v924
  %v950 = vmul.f32 %v672, %v924
  %v951 = vmul.f32 %v673, %v924
  %v952 = vmul.f32 %v674, %v924
  %v953 = vmul.f32 %v675, %v924
  %v954 = vmul.f32 %v676, %v924
  %v955 = vmul.f32 %v677, %v924
  %v956 = vmul.f32 %v678, %v924
  %v957 = vmul.f32 %v679, %v924
  %v958 = vmul.f32 %v680, %v924
  %v959 = vmul.f32 %v681, %v924
  %v960 = vmul.f32 %v682, %v924
  %v961 = vmul.f32 %v683, %v924
  %v962 = vmul.f32 %v684, %v924
  %v963 = vmul.f32 %v685, %v924
  %v964 = vmul.f32 %v686, %v924
  %v965 = vmul.f32 %v687, %v924
  %v966 = vmul.f32 %v688, %v924
  %v967 = vmul.f32 %v689, %v924
  %v968 = vmul.f32 %v690, %v924
  %v969 = vmul.f32 %v691, %v924
  %v970 = vmul.f32 %v692, %v924
  %v971 = vmul.f32 %v693, %v924
  %v972 = vmul.f32 %v694, %v924
  %v973 = vmul.f32 %v695, %v924
  %v974 = vmul.f32 %v696, %v924
  %v975 = vmul.f32 %v697, %v924
  %v976 = vmul.f32 %v698, %v924
  %v977 = vmul.f32 %v699, %v924
  %v978 = vmul.f32 %v700, %v924
  %v979 = vmul.f32 %v701, %v924
  %v980 = vmul.f32 %v702, %v924
  %v981 = vmul.f32 %v703, %v924
  %v982 = vmul.f32 %v704, %v924
  %v983 = vmul.f32 %v705, %v924
  %v984 = vmul.f32 %v706, %v924
  %v985 = vmul.f32 %v707, %v924
  %v986 = vmul.f32 %v708, %v924
  %v987 = vmul.f32 %v709, %v924
  %v988 = vmul.f32 %v710, %v924
  %v989 = vmul.f32 %v711, %v924
  %v990 = vld [vmem:[%s3] sm:$0x1]
  %v992 = vperm.slane %v990, 0
  %v994 = vadd.f32 %v926, %v992
  %v995 = vadd.f32 %v927, %v992
  %v996 = vadd.f32 %v928, %v992
  %v997 = vadd.f32 %v929, %v992
  %v998 = vadd.f32 %v930, %v992
  %v999 = vadd.f32 %v931, %v992
  %v1000 = vadd.f32 %v932, %v992
  %v1001 = vadd.f32 %v933, %v992
  %v1002 = vadd.f32 %v934, %v992
  %v1003 = vadd.f32 %v935, %v992
  %v1004 = vadd.f32 %v936, %v992
  %v1005 = vadd.f32 %v937, %v992
  %v1006 = vadd.f32 %v938, %v992
  %v1007 = vadd.f32 %v939, %v992
  %v1008 = vadd.f32 %v940, %v992
  %v1009 = vadd.f32 %v941, %v992
  %v1010 = vadd.f32 %v942, %v992
  %v1011 = vadd.f32 %v943, %v992
  %v1012 = vadd.f32 %v944, %v992
  %v1013 = vadd.f32 %v945, %v992
  %v1014 = vadd.f32 %v946, %v992
  %v1015 = vadd.f32 %v947, %v992
  %v1016 = vadd.f32 %v948, %v992
  %v1017 = vadd.f32 %v949, %v992
  %v1018 = vadd.f32 %v950, %v992
  %v1019 = vadd.f32 %v951, %v992
  %v1020 = vadd.f32 %v952, %v992
  %v1021 = vadd.f32 %v953, %v992
  %v1022 = vadd.f32 %v954, %v992
  %v1023 = vadd.f32 %v955, %v992
  %v1024 = vadd.f32 %v956, %v992
  %v1025 = vadd.f32 %v957, %v992
  %v1026 = vadd.f32 %v958, %v992
  %v1027 = vadd.f32 %v959, %v992
  %v1028 = vadd.f32 %v960, %v992
  %v1029 = vadd.f32 %v961, %v992
  %v1030 = vadd.f32 %v962, %v992
  %v1031 = vadd.f32 %v963, %v992
  %v1032 = vadd.f32 %v964, %v992
  %v1033 = vadd.f32 %v965, %v992
  %v1034 = vadd.f32 %v966, %v992
  %v1035 = vadd.f32 %v967, %v992
  %v1036 = vadd.f32 %v968, %v992
  %v1037 = vadd.f32 %v969, %v992
  %v1038 = vadd.f32 %v970, %v992
  %v1039 = vadd.f32 %v971, %v992
  %v1040 = vadd.f32 %v972, %v992
  %v1041 = vadd.f32 %v973, %v992
  %v1042 = vadd.f32 %v974, %v992
  %v1043 = vadd.f32 %v975, %v992
  %v1044 = vadd.f32 %v976, %v992
  %v1045 = vadd.f32 %v977, %v992
  %v1046 = vadd.f32 %v978, %v992
  %v1047 = vadd.f32 %v979, %v992
  %v1048 = vadd.f32 %v980, %v992
  %v1049 = vadd.f32 %v981, %v992
  %v1050 = vadd.f32 %v982, %v992
  %v1051 = vadd.f32 %v983, %v992
  %v1052 = vadd.f32 %v984, %v992
  %v1053 = vadd.f32 %v985, %v992
  %v1054 = vadd.f32 %v986, %v992
  %v1055 = vadd.f32 %v987, %v992
  %v1056 = vadd.f32 %v988, %v992
  %v1057 = vadd.f32 %v989, %v992
  %vm1058 = vcmp.gt.f32.partialorder %v994, 0.0
  %vm1059 = vcmp.gt.f32.partialorder %v995, 0.0
  %vm1060 = vcmp.gt.f32.partialorder %v996, 0.0
  %vm1061 = vcmp.gt.f32.partialorder %v997, 0.0
  %vm1062 = vcmp.gt.f32.partialorder %v998, 0.0
  %vm1063 = vcmp.gt.f32.partialorder %v999, 0.0
  %vm1064 = vcmp.gt.f32.partialorder %v1000, 0.0
  %vm1065 = vcmp.gt.f32.partialorder %v1001, 0.0
  %vm1066 = vcmp.gt.f32.partialorder %v1002, 0.0
  %vm1067 = vcmp.gt.f32.partialorder %v1003, 0.0
  %vm1068 = vcmp.gt.f32.partialorder %v1004, 0.0
  %vm1069 = vcmp.gt.f32.partialorder %v1005, 0.0
  %vm1070 = vcmp.gt.f32.partialorder %v1006, 0.0
  %vm1071 = vcmp.gt.f32.partialorder %v1007, 0.0
  %vm1072 = vcmp.gt.f32.partialorder %v1008, 0.0
  %vm1073 = vcmp.gt.f32.partialorder %v1009, 0.0
  %vm1074 = vcmp.gt.f32.partialorder %v1010, 0.0
  %vm1075 = vcmp.gt.f32.partialorder %v1011, 0.0
  %vm1076 = vcmp.gt.f32.partialorder %v1012, 0.0
  %vm1077 = vcmp.gt.f32.partialorder %v1013, 0.0
  %vm1078 = vcmp.gt.f32.partialorder %v1014, 0.0
  %vm1079 = vcmp.gt.f32.partialorder %v1015, 0.0
  %vm1080 = vcmp.gt.f32.partialorder %v1016, 0.0
  %vm1081 = vcmp.gt.f32.partialorder %v1017, 0.0
  %vm1082 = vcmp.gt.f32.partialorder %v1018, 0.0
  %vm1083 = vcmp.gt.f32.partialorder %v1019, 0.0
  %vm1084 = vcmp.gt.f32.partialorder %v1020, 0.0
  %vm1085 = vcmp.gt.f32.partialorder %v1021, 0.0
  %vm1086 = vcmp.gt.f32.partialorder %v1022, 0.0
  %vm1087 = vcmp.gt.f32.partialorder %v1023, 0.0
  %vm1088 = vcmp.gt.f32.partialorder %v1024, 0.0
  %vm1089 = vcmp.gt.f32.partialorder %v1025, 0.0
  %vm1090 = vcmp.gt.f32.partialorder %v1026, 0.0
  %vm1091 = vcmp.gt.f32.partialorder %v1027, 0.0
  %vm1092 = vcmp.gt.f32.partialorder %v1028, 0.0
  %vm1093 = vcmp.gt.f32.partialorder %v1029, 0.0
  %vm1094 = vcmp.gt.f32.partialorder %v1030, 0.0
  %vm1095 = vcmp.gt.f32.partialorder %v1031, 0.0
  %vm1096 = vcmp.gt.f32.partialorder %v1032, 0.0
  %vm1097 = vcmp.gt.f32.partialorder %v1033, 0.0
  %vm1098 = vcmp.gt.f32.partialorder %v1034, 0.0
  %vm1099 = vcmp.gt.f32.partialorder %v1035, 0.0
  %vm1100 = vcmp.gt.f32.partialorder %v1036, 0.0
  %vm1101 = vcmp.gt.f32.partialorder %v1037, 0.0
  %vm1102 = vcmp.gt.f32.partialorder %v1038, 0.0
  %vm1103 = vcmp.gt.f32.partialorder %v1039, 0.0
  %vm1104 = vcmp.gt.f32.partialorder %v1040, 0.0
  %vm1105 = vcmp.gt.f32.partialorder %v1041, 0.0
  %vm1106 = vcmp.gt.f32.partialorder %v1042, 0.0
  %vm1107 = vcmp.gt.f32.partialorder %v1043, 0.0
  %vm1108 = vcmp.gt.f32.partialorder %v1044, 0.0
  %vm1109 = vcmp.gt.f32.partialorder %v1045, 0.0
  %vm1110 = vcmp.gt.f32.partialorder %v1046, 0.0
  %vm1111 = vcmp.gt.f32.partialorder %v1047, 0.0
  %vm1112 = vcmp.gt.f32.partialorder %v1048, 0.0
  %vm1113 = vcmp.gt.f32.partialorder %v1049, 0.0
  %vm1114 = vcmp.gt.f32.partialorder %v1050, 0.0
  %vm1115 = vcmp.gt.f32.partialorder %v1051, 0.0
  %vm1116 = vcmp.gt.f32.partialorder %v1052, 0.0
  %vm1117 = vcmp.gt.f32.partialorder %v1053, 0.0
  %vm1118 = vcmp.gt.f32.partialorder %v1054, 0.0
  %vm1119 = vcmp.gt.f32.partialorder %v1055, 0.0
  %vm1120 = vcmp.gt.f32.partialorder %v1056, 0.0
  %vm1121 = vcmp.gt.f32.partialorder %v1057, 0.0
  %v1122 = vmul.f32 %v994, 0.2
  %v1123 = vmul.f32 %v995, 0.2
  %v1124 = vmul.f32 %v996, 0.2
  %v1125 = vmul.f32 %v997, 0.2
  %v1126 = vmul.f32 %v998, 0.2
  %v1127 = vmul.f32 %v999, 0.2
  %v1128 = vmul.f32 %v1000, 0.2
  %v1129 = vmul.f32 %v1001, 0.2
  %v1130 = vmul.f32 %v1002, 0.2
  %v1131 = vmul.f32 %v1003, 0.2
  %v1132 = vmul.f32 %v1004, 0.2
  %v1133 = vmul.f32 %v1005, 0.2
  %v1134 = vmul.f32 %v1006, 0.2
  %v1135 = vmul.f32 %v1007, 0.2
  %v1136 = vmul.f32 %v1008, 0.2
  %v1137 = vmul.f32 %v1009, 0.2
  %v1138 = vmul.f32 %v1010, 0.2
  %v1139 = vmul.f32 %v1011, 0.2
  %v1140 = vmul.f32 %v1012, 0.2
  %v1141 = vmul.f32 %v1013, 0.2
  %v1142 = vmul.f32 %v1014, 0.2
  %v1143 = vmul.f32 %v1015, 0.2
  %v1144 = vmul.f32 %v1016, 0.2
  %v1145 = vmul.f32 %v1017, 0.2
  %v1146 = vmul.f32 %v1018, 0.2
  %v1147 = vmul.f32 %v1019, 0.2
  %v1148 = vmul.f32 %v1020, 0.2
  %v1149 = vmul.f32 %v1021, 0.2
  %v1150 = vmul.f32 %v1022, 0.2
  %v1151 = vmul.f32 %v1023, 0.2
  %v1152 = vmul.f32 %v1024, 0.2
  %v1153 = vmul.f32 %v1025, 0.2
  %v1154 = vmul.f32 %v1026, 0.2
  %v1155 = vmul.f32 %v1027, 0.2
  %v1156 = vmul.f32 %v1028, 0.2
  %v1157 = vmul.f32 %v1029, 0.2
  %v1158 = vmul.f32 %v1030, 0.2
  %v1159 = vmul.f32 %v1031, 0.2
  %v1160 = vmul.f32 %v1032, 0.2
  %v1161 = vmul.f32 %v1033, 0.2
  %v1162 = vmul.f32 %v1034, 0.2
  %v1163 = vmul.f32 %v1035, 0.2
  %v1164 = vmul.f32 %v1036, 0.2
  %v1165 = vmul.f32 %v1037, 0.2
  %v1166 = vmul.f32 %v1038, 0.2
  %v1167 = vmul.f32 %v1039, 0.2
  %v1168 = vmul.f32 %v1040, 0.2
  %v1169 = vmul.f32 %v1041, 0.2
  %v1170 = vmul.f32 %v1042, 0.2
  %v1171 = vmul.f32 %v1043, 0.2
  %v1172 = vmul.f32 %v1044, 0.2
  %v1173 = vmul.f32 %v1045, 0.2
  %v1174 = vmul.f32 %v1046, 0.2
  %v1175 = vmul.f32 %v1047, 0.2
  %v1176 = vmul.f32 %v1048, 0.2
  %v1177 = vmul.f32 %v1049, 0.2
  %v1178 = vmul.f32 %v1050, 0.2
  %v1179 = vmul.f32 %v1051, 0.2
  %v1180 = vmul.f32 %v1052, 0.2
  %v1181 = vmul.f32 %v1053, 0.2
  %v1182 = vmul.f32 %v1054, 0.2
  %v1183 = vmul.f32 %v1055, 0.2
  %v1184 = vmul.f32 %v1056, 0.2
  %v1185 = vmul.f32 %v1057, 0.2
  %v1186 = vsel %vm1058, %v994, %v1122
  %v1187 = vsel %vm1059, %v995, %v1123
  %v1188 = vsel %vm1060, %v996, %v1124
  %v1189 = vsel %vm1061, %v997, %v1125
  %v1190 = vsel %vm1062, %v998, %v1126
  %v1191 = vsel %vm1063, %v999, %v1127
  %v1192 = vsel %vm1064, %v1000, %v1128
  %v1193 = vsel %vm1065, %v1001, %v1129
  %v1194 = vsel %vm1066, %v1002, %v1130
  %v1195 = vsel %vm1067, %v1003, %v1131
  %v1196 = vsel %vm1068, %v1004, %v1132
  %v1197 = vsel %vm1069, %v1005, %v1133
  %v1198 = vsel %vm1070, %v1006, %v1134
  %v1199 = vsel %vm1071, %v1007, %v1135
  %v1200 = vsel %vm1072, %v1008, %v1136
  %v1201 = vsel %vm1073, %v1009, %v1137
  %v1202 = vsel %vm1074, %v1010, %v1138
  %v1203 = vsel %vm1075, %v1011, %v1139
  %v1204 = vsel %vm1076, %v1012, %v1140
  %v1205 = vsel %vm1077, %v1013, %v1141
  %v1206 = vsel %vm1078, %v1014, %v1142
  %v1207 = vsel %vm1079, %v1015, %v1143
  %v1208 = vsel %vm1080, %v1016, %v1144
  %v1209 = vsel %vm1081, %v1017, %v1145
  %v1210 = vsel %vm1082, %v1018, %v1146
  %v1211 = vsel %vm1083, %v1019, %v1147
  %v1212 = vsel %vm1084, %v1020, %v1148
  %v1213 = vsel %vm1085, %v1021, %v1149
  %v1214 = vsel %vm1086, %v1022, %v1150
  %v1215 = vsel %vm1087, %v1023, %v1151
  %v1216 = vsel %vm1088, %v1024, %v1152
  %v1217 = vsel %vm1089, %v1025, %v1153
  %v1218 = vsel %vm1090, %v1026, %v1154
  %v1219 = vsel %vm1091, %v1027, %v1155
  %v1220 = vsel %vm1092, %v1028, %v1156
  %v1221 = vsel %vm1093, %v1029, %v1157
  %v1222 = vsel %vm1094, %v1030, %v1158
  %v1223 = vsel %vm1095, %v1031, %v1159
  %v1224 = vsel %vm1096, %v1032, %v1160
  %v1225 = vsel %vm1097, %v1033, %v1161
  %v1226 = vsel %vm1098, %v1034, %v1162
  %v1227 = vsel %vm1099, %v1035, %v1163
  %v1228 = vsel %vm1100, %v1036, %v1164
  %v1229 = vsel %vm1101, %v1037, %v1165
  %v1230 = vsel %vm1102, %v1038, %v1166
  %v1231 = vsel %vm1103, %v1039, %v1167
  %v1232 = vsel %vm1104, %v1040, %v1168
  %v1233 = vsel %vm1105, %v1041, %v1169
  %v1234 = vsel %vm1106, %v1042, %v1170
  %v1235 = vsel %vm1107, %v1043, %v1171
  %v1236 = vsel %vm1108, %v1044, %v1172
  %v1237 = vsel %vm1109, %v1045, %v1173
  %v1238 = vsel %vm1110, %v1046, %v1174
  %v1239 = vsel %vm1111, %v1047, %v1175
  %v1240 = vsel %vm1112, %v1048, %v1176
  %v1241 = vsel %vm1113, %v1049, %v1177
  %v1242 = vsel %vm1114, %v1050, %v1178
  %v1243 = vsel %vm1115, %v1051, %v1179
  %v1244 = vsel %vm1116, %v1052, %v1180
  %v1245 = vsel %vm1117, %v1053, %v1181
  %v1246 = vsel %vm1118, %v1054, %v1182
  %v1247 = vsel %vm1119, %v1055, %v1183
  %v1248 = vsel %vm1120, %v1056, %v1184
  %v1249 = vsel %vm1121, %v1057, %v1185
  %v1250 = vpack.c.bf16 %v1186, %v1186
  %v1251 = vpack.c.bf16 %v1187, %v1187
  %v1252 = vpack.c.bf16 %v1188, %v1188
  %v1253 = vpack.c.bf16 %v1189, %v1189
  %v1254 = vpack.c.bf16 %v1190, %v1190
  %v1255 = vpack.c.bf16 %v1191, %v1191
  %v1256 = vpack.c.bf16 %v1192, %v1192
  %v1257 = vpack.c.bf16 %v1193, %v1193
  %v1258 = vpack.c.bf16 %v1194, %v1194
  %v1259 = vpack.c.bf16 %v1195, %v1195
  %v1260 = vpack.c.bf16 %v1196, %v1196
  %v1261 = vpack.c.bf16 %v1197, %v1197
  %v1262 = vpack.c.bf16 %v1198, %v1198
  %v1263 = vpack.c.bf16 %v1199, %v1199
  %v1264 = vpack.c.bf16 %v1200, %v1200
  %v1265 = vpack.c.bf16 %v1201, %v1201
  %v1266 = vpack.c.bf16 %v1202, %v1202
  %v1267 = vpack.c.bf16 %v1203, %v1203
  %v1268 = vpack.c.bf16 %v1204, %v1204
  %v1269 = vpack.c.bf16 %v1205, %v1205
  %v1270 = vpack.c.bf16 %v1206, %v1206
  %v1271 = vpack.c.bf16 %v1207, %v1207
  %v1272 = vpack.c.bf16 %v1208, %v1208
  %v1273 = vpack.c.bf16 %v1209, %v1209
  %v1274 = vpack.c.bf16 %v1210, %v1210
  %v1275 = vpack.c.bf16 %v1211, %v1211
  %v1276 = vpack.c.bf16 %v1212, %v1212
  %v1277 = vpack.c.bf16 %v1213, %v1213
  %v1278 = vpack.c.bf16 %v1214, %v1214
  %v1279 = vpack.c.bf16 %v1215, %v1215
  %v1280 = vpack.c.bf16 %v1216, %v1216
  %v1281 = vpack.c.bf16 %v1217, %v1217
  %v1282 = vpack.c.bf16 %v1218, %v1218
  %v1283 = vpack.c.bf16 %v1219, %v1219
  %v1284 = vpack.c.bf16 %v1220, %v1220
  %v1285 = vpack.c.bf16 %v1221, %v1221
  %v1286 = vpack.c.bf16 %v1222, %v1222
  %v1287 = vpack.c.bf16 %v1223, %v1223
  %v1288 = vpack.c.bf16 %v1224, %v1224
  %v1289 = vpack.c.bf16 %v1225, %v1225
  %v1290 = vpack.c.bf16 %v1226, %v1226
  %v1291 = vpack.c.bf16 %v1227, %v1227
  %v1292 = vpack.c.bf16 %v1228, %v1228
  %v1293 = vpack.c.bf16 %v1229, %v1229
  %v1294 = vpack.c.bf16 %v1230, %v1230
  %v1295 = vpack.c.bf16 %v1231, %v1231
  %v1296 = vpack.c.bf16 %v1232, %v1232
  %v1297 = vpack.c.bf16 %v1233, %v1233
  %v1298 = vpack.c.bf16 %v1234, %v1234
  %v1299 = vpack.c.bf16 %v1235, %v1235
  %v1300 = vpack.c.bf16 %v1236, %v1236
  %v1301 = vpack.c.bf16 %v1237, %v1237
  %v1302 = vpack.c.bf16 %v1238, %v1238
  %v1303 = vpack.c.bf16 %v1239, %v1239
  %v1304 = vpack.c.bf16 %v1240, %v1240
  %v1305 = vpack.c.bf16 %v1241, %v1241
  %v1306 = vpack.c.bf16 %v1242, %v1242
  %v1307 = vpack.c.bf16 %v1243, %v1243
  %v1308 = vpack.c.bf16 %v1244, %v1244
  %v1309 = vpack.c.bf16 %v1245, %v1245
  %v1310 = vpack.c.bf16 %v1246, %v1246
  %v1311 = vpack.c.bf16 %v1247, %v1247
  %v1312 = vpack.c.bf16 %v1248, %v1248
  %v1313 = vpack.c.bf16 %v1249, %v1249
  %vm1314 = vcmask 125952
  %1315 = vst.msk [vmem:[%s4] sm:$0xf] %vm1314, %v1250
  %1316 = vst.msk [vmem:[%s4 + $0x4] sm:$0xf] %vm1314, %v1251
  %1317 = vst.msk [vmem:[%s4 + $0x8] sm:$0xf] %vm1314, %v1252
  %1318 = vst.msk [vmem:[%s4 + $0xc] sm:$0xf] %vm1314, %v1253
  %1319 = vst.msk [vmem:[%s4 + $0x10] sm:$0xf] %vm1314, %v1254
  %1320 = vst.msk [vmem:[%s4 + $0x14] sm:$0xf] %vm1314, %v1255
  %1321 = vst.msk [vmem:[%s4 + $0x18] sm:$0xf] %vm1314, %v1256
  %1322 = vst.msk [vmem:[%s4 + $0x1c] sm:$0xf] %vm1314, %v1257
  %1323 = vst.msk [vmem:[%s4 + $0x20] sm:$0xf] %vm1314, %v1258
  %1324 = vst.msk [vmem:[%s4 + $0x24] sm:$0xf] %vm1314, %v1259
  %1325 = vst.msk [vmem:[%s4 + $0x28] sm:$0xf] %vm1314, %v1260
  %1326 = vst.msk [vmem:[%s4 + $0x2c] sm:$0xf] %vm1314, %v1261
  %1327 = vst.msk [vmem:[%s4 + $0x30] sm:$0xf] %vm1314, %v1262
  %1328 = vst.msk [vmem:[%s4 + $0x34] sm:$0xf] %vm1314, %v1263
  %1329 = vst.msk [vmem:[%s4 + $0x38] sm:$0xf] %vm1314, %v1264
  %1330 = vst.msk [vmem:[%s4 + $0x3c] sm:$0xf] %vm1314, %v1265
  %1331 = vst.msk [vmem:[%s4 + $0x40] sm:$0xf] %vm1314, %v1266
  %1332 = vst.msk [vmem:[%s4 + $0x44] sm:$0xf] %vm1314, %v1267
  %1333 = vst.msk [vmem:[%s4 + $0x48] sm:$0xf] %vm1314, %v1268
  %1334 = vst.msk [vmem:[%s4 + $0x4c] sm:$0xf] %vm1314, %v1269
  %1335 = vst.msk [vmem:[%s4 + $0x50] sm:$0xf] %vm1314, %v1270
  %1336 = vst.msk [vmem:[%s4 + $0x54] sm:$0xf] %vm1314, %v1271
  %1337 = vst.msk [vmem:[%s4 + $0x58] sm:$0xf] %vm1314, %v1272
  %1338 = vst.msk [vmem:[%s4 + $0x5c] sm:$0xf] %vm1314, %v1273
  %1339 = vst.msk [vmem:[%s4 + $0x60] sm:$0xf] %vm1314, %v1274
  %1340 = vst.msk [vmem:[%s4 + $0x64] sm:$0xf] %vm1314, %v1275
  %1341 = vst.msk [vmem:[%s4 + $0x68] sm:$0xf] %vm1314, %v1276
  %1342 = vst.msk [vmem:[%s4 + $0x6c] sm:$0xf] %vm1314, %v1277
  %1343 = vst.msk [vmem:[%s4 + $0x70] sm:$0xf] %vm1314, %v1278
  %1344 = vst.msk [vmem:[%s4 + $0x74] sm:$0xf] %vm1314, %v1279
  %1345 = vst.msk [vmem:[%s4 + $0x78] sm:$0xf] %vm1314, %v1280
  %1346 = vst.msk [vmem:[%s4 + $0x7c] sm:$0xf] %vm1314, %v1281
  %1347 = vst.msk [vmem:[%s4 + $0x80] sm:$0xf] %vm1314, %v1282
  %1348 = vst.msk [vmem:[%s4 + $0x84] sm:$0xf] %vm1314, %v1283
  %1349 = vst.msk [vmem:[%s4 + $0x88] sm:$0xf] %vm1314, %v1284
  %1350 = vst.msk [vmem:[%s4 + $0x8c] sm:$0xf] %vm1314, %v1285
  %1351 = vst.msk [vmem:[%s4 + $0x90] sm:$0xf] %vm1314, %v1286
  %1352 = vst.msk [vmem:[%s4 + $0x94] sm:$0xf] %vm1314, %v1287
  %1353 = vst.msk [vmem:[%s4 + $0x98] sm:$0xf] %vm1314, %v1288
  %1354 = vst.msk [vmem:[%s4 + $0x9c] sm:$0xf] %vm1314, %v1289
  %1355 = vst.msk [vmem:[%s4 + $0xa0] sm:$0xf] %vm1314, %v1290
  %1356 = vst.msk [vmem:[%s4 + $0xa4] sm:$0xf] %vm1314, %v1291
  %1357 = vst.msk [vmem:[%s4 + $0xa8] sm:$0xf] %vm1314, %v1292
  %1358 = vst.msk [vmem:[%s4 + $0xac] sm:$0xf] %vm1314, %v1293
  %1359 = vst.msk [vmem:[%s4 + $0xb0] sm:$0xf] %vm1314, %v1294
  %1360 = vst.msk [vmem:[%s4 + $0xb4] sm:$0xf] %vm1314, %v1295
  %1361 = vst.msk [vmem:[%s4 + $0xb8] sm:$0xf] %vm1314, %v1296
  %1362 = vst.msk [vmem:[%s4 + $0xbc] sm:$0xf] %vm1314, %v1297
  %1363 = vst.msk [vmem:[%s4 + $0xc0] sm:$0xf] %vm1314, %v1298
  %1364 = vst.msk [vmem:[%s4 + $0xc4] sm:$0xf] %vm1314, %v1299
  %1365 = vst.msk [vmem:[%s4 + $0xc8] sm:$0xf] %vm1314, %v1300
  %1366 = vst.msk [vmem:[%s4 + $0xcc] sm:$0xf] %vm1314, %v1301
  %1367 = vst.msk [vmem:[%s4 + $0xd0] sm:$0xf] %vm1314, %v1302
  %1368 = vst.msk [vmem:[%s4 + $0xd4] sm:$0xf] %vm1314, %v1303
  %1369 = vst.msk [vmem:[%s4 + $0xd8] sm:$0xf] %vm1314, %v1304
  %1370 = vst.msk [vmem:[%s4 + $0xdc] sm:$0xf] %vm1314, %v1305
  %1371 = vst.msk [vmem:[%s4 + $0xe0] sm:$0xf] %vm1314, %v1306
  %1372 = vst.msk [vmem:[%s4 + $0xe4] sm:$0xf] %vm1314, %v1307
  %1373 = vst.msk [vmem:[%s4 + $0xe8] sm:$0xf] %vm1314, %v1308
  %1374 = vst.msk [vmem:[%s4 + $0xec] sm:$0xf] %vm1314, %v1309
  %1375 = vst.msk [vmem:[%s4 + $0xf0] sm:$0xf] %vm1314, %v1310
  %1376 = vst.msk [vmem:[%s4 + $0xf4] sm:$0xf] %vm1314, %v1311
  %1377 = vst.msk [vmem:[%s4 + $0xf8] sm:$0xf] %vm1314, %v1312
  %1378 = vst.msk [vmem:[%s4 + $0xfc] sm:$0xf] %vm1314, %v1313
  // Predicated region
  $region18: #{discriminator_forward.5} parent=0 // pred_check
    _
  $region19: #{discriminator_forward.5} parent=0 // pred_check_branch
    %1380 = sbr.rel (0) target = $region21
  $region20: #{discriminator_forward.5} parent=0 // pred_region
    _
  $region21: #{discriminator_forward.5} parent=0 // pred_fallthru
    _
  // Predicated region
  $region22: #{discriminator_forward.5} parent=0 // pred_check
    _
  $region23: #{discriminator_forward.5} parent=0 // pred_check_branch
    %1382 = sbr.rel (0) target = $region25
  $region24: #{discriminator_forward.5} parent=0 // pred_region
    _
  $region25: #{discriminator_forward.5} parent=0 // pred_fallthru
    _

// kernel: discriminator_forward.6
$region0: #{discriminator_forward.6}
  #allocation0 [shape = 'u32[]', space=smem, size = 0x4, offset = 0x4, fixed_abs, tag = 'smem constant byte address 0x4 - core index']
  #allocation1 [shape = 'u32[72,128]{1,0:T(1,128)}', space=vmem, size = 0x9000, scoped, tag = 'internal scratch']
  %s0 = inlined_call_operand.vmem [shape: bf16[128,256], index: 0, kind: input, shape index: {}]
  %s1 = inlined_call_operand.vmem [shape: bf16[256,32], index: 1, kind: input, shape index: {}]
  %s2 = inlined_call_operand.vmem [shape: f32[1,32], index: 2, kind: input, shape index: {}]
  %s3 = inlined_call_operand.vmem [shape: f32[1,32], index: 3, kind: input, shape index: {}]
  %s4 = inlined_call_operand.vmem [shape: bf16[128,32], index: 4, kind: output, shape index: {}]
  %s5 = sld [smem:[#allocation0]]
  $region26: #{discriminator_forward.6} parent=0
    _
  %s7 = ssub.s32 1, %s5
  %s8 = scalar_select 0, %s7, %s5
  // Predicated region
  $region2: #{discriminator_forward.6} parent=0 // pred_check
    _
  $region3: #{discriminator_forward.6} parent=0 // pred_check_branch
    %10 = sbr.rel (0) target = $region5
  $region4: #{discriminator_forward.6} parent=0 // pred_region
    _
  $region5: #{discriminator_forward.6} parent=0 // pred_fallthru
    _
  // Predicated region
  $region6: #{discriminator_forward.6} parent=0 // pred_check
    _
  $region7: #{discriminator_forward.6} parent=0 // pred_check_branch
    %12 = sbr.rel (0) target = $region9
  $region8: #{discriminator_forward.6} parent=0 // pred_region
    _
  $region9: #{discriminator_forward.6} parent=0 // pred_fallthru
    _
  // Predicated region
  $region10: #{discriminator_forward.6} parent=0 // pred_check
    _
  $region11: #{discriminator_forward.6} parent=0 // pred_check_branch
    %14 = sbr.rel (0) target = $region13
  $region12: #{discriminator_forward.6} parent=0 // pred_region
    _
  $region13: #{discriminator_forward.6} parent=0 // pred_fallthru
    _
  // Predicated region
  $region14: #{discriminator_forward.6} parent=0 // pred_check
    _
  $region15: #{discriminator_forward.6} parent=0 // pred_check_branch
    %16 = sbr.rel (0) target = $region17
  $region16: #{discriminator_forward.6} parent=0 // pred_region
    _
  $region17: #{discriminator_forward.6} parent=0 // pred_fallthru
    _
  %v17 = vld [vmem:[%s0] sm:$0xff]
  %v18 = vld [vmem:[%s0 + $0x8] sm:$0xff]
  %v19 = vld [vmem:[%s0 + $0x10] sm:$0xff]
  %v20 = vld [vmem:[%s0 + $0x18] sm:$0xff]
  %v21 = vld [vmem:[%s0 + $0x20] sm:$0xff]
  %v22 = vld [vmem:[%s0 + $0x28] sm:$0xff]
  %v23 = vld [vmem:[%s0 + $0x30] sm:$0xff]
  %v24 = vld [vmem:[%s0 + $0x38] sm:$0xff]
  %v25 = vld [vmem:[%s0 + $0x40] sm:$0xff]
  %v26 = vld [vmem:[%s0 + $0x48] sm:$0xff]
  %v27 = vld [vmem:[%s0 + $0x50] sm:$0xff]
  %v28 = vld [vmem:[%s0 + $0x58] sm:$0xff]
  %v29 = vld [vmem:[%s0 + $0x60] sm:$0xff]
  %v30 = vld [vmem:[%s0 + $0x68] sm:$0xff]
  %v31 = vld [vmem:[%s0 + $0x70] sm:$0xff]
  %v32 = vld [vmem:[%s0 + $0x78] sm:$0xff]
  %v33 = vld [vmem:[%s1] sm:$0xf]
  %v34 = vld [vmem:[%s1 + $0x4] sm:$0xf]
  %v35 = vld [vmem:[%s1 + $0x8] sm:$0xf]
  %v36 = vld [vmem:[%s1 + $0xc] sm:$0xf]
  %v37 = vld [vmem:[%s1 + $0x10] sm:$0xf]
  %v38 = vld [vmem:[%s1 + $0x14] sm:$0xf]
  %v39 = vld [vmem:[%s1 + $0x18] sm:$0xf]
  %v40 = vld [vmem:[%s1 + $0x1c] sm:$0xf]
  %v41 = vld [vmem:[%s1 + $0x20] sm:$0xf]
  %v42 = vld [vmem:[%s1 + $0x24] sm:$0xf]
  %v43 = vld [vmem:[%s1 + $0x28] sm:$0xf]
  %v44 = vld [vmem:[%s1 + $0x2c] sm:$0xf]
  %v45 = vld [vmem:[%s1 + $0x30] sm:$0xf]
  %v46 = vld [vmem:[%s1 + $0x34] sm:$0xf]
  %v47 = vld [vmem:[%s1 + $0x38] sm:$0xf]
  %v48 = vld [vmem:[%s1 + $0x3c] sm:$0xf]
  %v49 = vld [vmem:[%s1 + $0x40] sm:$0xf]
  %v50 = vld [vmem:[%s1 + $0x44] sm:$0xf]
  %v51 = vld [vmem:[%s1 + $0x48] sm:$0xf]
  %v52 = vld [vmem:[%s1 + $0x4c] sm:$0xf]
  %v53 = vld [vmem:[%s1 + $0x50] sm:$0xf]
  %v54 = vld [vmem:[%s1 + $0x54] sm:$0xf]
  %v55 = vld [vmem:[%s1 + $0x58] sm:$0xf]
  %v56 = vld [vmem:[%s1 + $0x5c] sm:$0xf]
  %v57 = vld [vmem:[%s1 + $0x60] sm:$0xf]
  %v58 = vld [vmem:[%s1 + $0x64] sm:$0xf]
  %v59 = vld [vmem:[%s1 + $0x68] sm:$0xf]
  %v60 = vld [vmem:[%s1 + $0x6c] sm:$0xf]
  %v61 = vld [vmem:[%s1 + $0x70] sm:$0xf]
  %v62 = vld [vmem:[%s1 + $0x74] sm:$0xf]
  %v63 = vld [vmem:[%s1 + $0x78] sm:$0xf]
  %v64 = vld [vmem:[%s1 + $0x7c] sm:$0xf]
  %v81 = vunpack.c.l.b16 %v17
  %v82 = vunpack.c.h.b16 %v17
  %v83 = vunpack.c.l.b16 %v18
  %v84 = vunpack.c.h.b16 %v18
  %v85 = vunpack.c.l.b16 %v19
  %v86 = vunpack.c.h.b16 %v19
  %v87 = vunpack.c.l.b16 %v20
  %v88 = vunpack.c.h.b16 %v20
  %v89 = vunpack.c.l.b16 %v21
  %v90 = vunpack.c.h.b16 %v21
  %v91 = vunpack.c.l.b16 %v22
  %v92 = vunpack.c.h.b16 %v22
  %v93 = vunpack.c.l.b16 %v23
  %v94 = vunpack.c.h.b16 %v23
  %v95 = vunpack.c.l.b16 %v24
  %v96 = vunpack.c.h.b16 %v24
  %v97 = vunpack.c.l.b16 %v25
  %v98 = vunpack.c.h.b16 %v25
  %v99 = vunpack.c.l.b16 %v26
  %v100 = vunpack.c.h.b16 %v26
  %v101 = vunpack.c.l.b16 %v27
  %v102 = vunpack.c.h.b16 %v27
  %v103 = vunpack.c.l.b16 %v28
  %v104 = vunpack.c.h.b16 %v28
  %v105 = vunpack.c.l.b16 %v29
  %v106 = vunpack.c.h.b16 %v29
  %v107 = vunpack.c.l.b16 %v30
  %v108 = vunpack.c.h.b16 %v30
  %v109 = vunpack.c.l.b16 %v31
  %v110 = vunpack.c.h.b16 %v31
  %v111 = vunpack.c.l.b16 %v32
  %v112 = vunpack.c.h.b16 %v32
  %v113 = vpack.c.b16 %v83, %v81
  %v114 = vpack.c.b16 %v84, %v82
  %v115 = vpack.c.b16 %v87, %v85
  %v116 = vpack.c.b16 %v88, %v86
  %v117 = vpack.c.b16 %v91, %v89
  %v118 = vpack.c.b16 %v92, %v90
  %v119 = vpack.c.b16 %v95, %v93
  %v120 = vpack.c.b16 %v96, %v94
  %v121 = vpack.c.b16 %v99, %v97
  %v122 = vpack.c.b16 %v100, %v98
  %v123 = vpack.c.b16 %v103, %v101
  %v124 = vpack.c.b16 %v104, %v102
  %v125 = vpack.c.b16 %v107, %v105
  %v126 = vpack.c.b16 %v108, %v106
  %v127 = vpack.c.b16 %v111, %v109
  %v128 = vpack.c.b16 %v112, %v110
  %v177 = vunpack.c.l.b16 %v33
  %v178 = vunpack.c.l.b16 %v34
  %v179 = vunpack.c.l.b16 %v35
  %v180 = vunpack.c.l.b16 %v36
  %v181 = vunpack.c.l.b16 %v37
  %v182 = vunpack.c.l.b16 %v38
  %v183 = vunpack.c.l.b16 %v39
  %v184 = vunpack.c.l.b16 %v40
  %v185 = vunpack.c.l.b16 %v41
  %v186 = vunpack.c.l.b16 %v42
  %v187 = vunpack.c.l.b16 %v43
  %v188 = vunpack.c.l.b16 %v44
  %v189 = vunpack.c.l.b16 %v45
  %v190 = vunpack.c.l.b16 %v46
  %v191 = vunpack.c.l.b16 %v47
  %v192 = vunpack.c.l.b16 %v48
  %v193 = vunpack.c.l.b16 %v49
  %v194 = vunpack.c.l.b16 %v50
  %v195 = vunpack.c.l.b16 %v51
  %v196 = vunpack.c.l.b16 %v52
  %v197 = vunpack.c.l.b16 %v53
  %v198 = vunpack.c.l.b16 %v54
  %v199 = vunpack.c.l.b16 %v55
  %v200 = vunpack.c.l.b16 %v56
  %v201 = vunpack.c.l.b16 %v57
  %v202 = vunpack.c.l.b16 %v58
  %v203 = vunpack.c.l.b16 %v59
  %v204 = vunpack.c.l.b16 %v60
  %v205 = vunpack.c.l.b16 %v61
  %v206 = vunpack.c.l.b16 %v62
  %v207 = vunpack.c.l.b16 %v63
  %v208 = vunpack.c.l.b16 %v64
  %v209 = vpack.c.b16 %v178, %v177
  %v210 = vpack.c.b16 %v180, %v179
  %v211 = vpack.c.b16 %v182, %v181
  %v212 = vpack.c.b16 %v184, %v183
  %v213 = vpack.c.b16 %v186, %v185
  %v214 = vpack.c.b16 %v188, %v187
  %v215 = vpack.c.b16 %v190, %v189
  %v216 = vpack.c.b16 %v192, %v191
  %v217 = vpack.c.b16 %v194, %v193
  %v218 = vpack.c.b16 %v196, %v195
  %v219 = vpack.c.b16 %v198, %v197
  %v220 = vpack.c.b16 %v200, %v199
  %v221 = vpack.c.b16 %v202, %v201
  %v222 = vpack.c.b16 %v204, %v203
  %v223 = vpack.c.b16 %v206, %v205
  %v224 = vpack.c.b16 %v208, %v207
  %241 = vmatpush.bf16.msra.mxu0 %v216
  %242 = vmatpush.bf16.msra.mxu0 %v215
  %243 = vmatpush.bf16.msra.mxu0 %v214
  %244 = vmatpush.bf16.msra.mxu0 %v213
  %245 = vmatpush.bf16.msra.mxu0 %v212
  %246 = vmatpush.bf16.msra.mxu0 %v211
  %247 = vmatpush.bf16.msra.mxu0 %v210
  %248 = vmatpush.bf16.msra.mxu0 %v209
  %249 = vmatmul.bf16.gmra.mxu0 %v113
  %v250 = vpop.f32.mrf.mxu0
  %v251 = vadd.f32 0.0, %v250
  %v252 = vpop.f32.mrf.mxu0
  %v253 = vadd.f32 0.0, %v252
  %254 = vmatmul.bf16.gmra.mxu0 %v115
  %v255 = vpop.f32.mrf.mxu0
  %v256 = vadd.f32 0.0, %v255
  %v257 = vpop.f32.mrf.mxu0
  %v258 = vadd.f32 0.0, %v257
  %259 = vmatmul.bf16.gmra.mxu0 %v117
  %v260 = vpop.f32.mrf.mxu0
  %v261 = vadd.f32 0.0, %v260
  %v262 = vpop.f32.mrf.mxu0
  %v263 = vadd.f32 0.0, %v262
  %264 = vmatmul.bf16.gmra.mxu0 %v119
  %v265 = vpop.f32.mrf.mxu0
  %v266 = vadd.f32 0.0, %v265
  %v267 = vpop.f32.mrf.mxu0
  %v268 = vadd.f32 0.0, %v267
  %269 = vmatmul.bf16.gmra.mxu0 %v121
  %v270 = vpop.f32.mrf.mxu0
  %v271 = vadd.f32 0.0, %v270
  %v272 = vpop.f32.mrf.mxu0
  %v273 = vadd.f32 0.0, %v272
  %274 = vmatmul.bf16.gmra.mxu0 %v123
  %v275 = vpop.f32.mrf.mxu0
  %v276 = vadd.f32 0.0, %v275
  %v277 = vpop.f32.mrf.mxu0
  %v278 = vadd.f32 0.0, %v277
  %279 = vmatmul.bf16.gmra.mxu0 %v125
  %v280 = vpop.f32.mrf.mxu0
  %v281 = vadd.f32 0.0, %v280
  %v282 = vpop.f32.mrf.mxu0
  %v283 = vadd.f32 0.0, %v282
  %284 = vmatmul.bf16.gmra.mxu0 %v127
  %v285 = vpop.f32.mrf.mxu0
  %v286 = vadd.f32 0.0, %v285
  %v287 = vpop.f32.mrf.mxu0
  %v288 = vadd.f32 0.0, %v287
  %289 = vdwg.mxu0
  %290 = vmatpush.bf16.msra.mxu0 %v224
  %291 = vmatpush.bf16.msra.mxu0 %v223
  %292 = vmatpush.bf16.msra.mxu0 %v222
  %293 = vmatpush.bf16.msra.mxu0 %v221
  %294 = vmatpush.bf16.msra.mxu0 %v220
  %295 = vmatpush.bf16.msra.mxu0 %v219
  %296 = vmatpush.bf16.msra.mxu0 %v218
  %297 = vmatpush.bf16.msra.mxu0 %v217
  %298 = vmatmul.bf16.gmra.mxu0 %v114
  %v299 = vpop.f32.mrf.mxu0
  %v300 = vadd.f32 %v251, %v299
  %v301 = vpop.f32.mrf.mxu0
  %v302 = vadd.f32 %v253, %v301
  %303 = vmatmul.bf16.gmra.mxu0 %v116
  %v304 = vpop.f32.mrf.mxu0
  %v305 = vadd.f32 %v256, %v304
  %v306 = vpop.f32.mrf.mxu0
  %v307 = vadd.f32 %v258, %v306
  %308 = vmatmul.bf16.gmra.mxu0 %v118
  %v309 = vpop.f32.mrf.mxu0
  %v310 = vadd.f32 %v261, %v309
  %v311 = vpop.f32.mrf.mxu0
  %v312 = vadd.f32 %v263, %v311
  %313 = vmatmul.bf16.gmra.mxu0 %v120
  %v314 = vpop.f32.mrf.mxu0
  %v315 = vadd.f32 %v266, %v314
  %v316 = vpop.f32.mrf.mxu0
  %v317 = vadd.f32 %v268, %v316
  %318 = vmatmul.bf16.gmra.mxu0 %v122
  %v319 = vpop.f32.mrf.mxu0
  %v320 = vadd.f32 %v271, %v319
  %v321 = vpop.f32.mrf.mxu0
  %v322 = vadd.f32 %v273, %v321
  %323 = vmatmul.bf16.gmra.mxu0 %v124
  %v324 = vpop.f32.mrf.mxu0
  %v325 = vadd.f32 %v276, %v324
  %v326 = vpop.f32.mrf.mxu0
  %v327 = vadd.f32 %v278, %v326
  %328 = vmatmul.bf16.gmra.mxu0 %v126
  %v329 = vpop.f32.mrf.mxu0
  %v330 = vadd.f32 %v281, %v329
  %v331 = vpop.f32.mrf.mxu0
  %v332 = vadd.f32 %v283, %v331
  %333 = vmatmul.bf16.gmra.mxu0 %v128
  %v334 = vpop.f32.mrf.mxu0
  %v335 = vadd.f32 %v286, %v334
  %v336 = vpop.f32.mrf.mxu0
  %v337 = vadd.f32 %v288, %v336
  %338 = vdwg.mxu0
  %vm339 = vcmask 261120
  %v340 = vsel %vm339, %v300, 0.0
  %v341 = vsel %vm339, %v302, 0.0
  %v342 = vadd.f32 %v340, %v341
  %v343 = vsel %vm339, %v305, 0.0
  %v344 = vadd.f32 %v342, %v343
  %v345 = vsel %vm339, %v307, 0.0
  %v346 = vadd.f32 %v344, %v345
  %v347 = vsel %vm339, %v310, 0.0
  %v348 = vadd.f32 %v346, %v347
  %v349 = vsel %vm339, %v312, 0.0
  %v350 = vadd.f32 %v348, %v349
  %v351 = vsel %vm339, %v315, 0.0
  %v352 = vadd.f32 %v350, %v351
  %v353 = vsel %vm339, %v317, 0.0
  %v354 = vadd.f32 %v352, %v353
  %v355 = vsel %vm339, %v320, 0.0
  %v356 = vadd.f32 %v354, %v355
  %v357 = vsel %vm339, %v322, 0.0
  %v358 = vadd.f32 %v356, %v357
  %v359 = vsel %vm339, %v325, 0.0
  %v360 = vadd.f32 %v358, %v359
  %v361 = vsel %vm339, %v327, 0.0
  %v362 = vadd.f32 %v360, %v361
  %v363 = vsel %vm339, %v330, 0.0
  %v364 = vadd.f32 %v362, %v363
  %v365 = vsel %vm339, %v332, 0.0
  %v366 = vadd.f32 %v364, %v365
  %v367 = vsel %vm339, %v335, 0.0
  %v368 = vadd.f32 %v366, %v367
  %v369 = vsel %vm339, %v337, 0.0
  %v370 = vadd.f32 %v368, %v369
  %v371 = vrot.slane %v370, 4
  %v372 = vadd.f32 %v370, %v371
  %v373 = vrot.slane %v372, 2
  %v374 = vadd.f32 %v372, %v373
  %v375 = vrot.slane %v374, 1
  %v376 = vadd.f32 %v374, %v375
  %v377 = vrcp.pop 128.0
  %v378 = vmul.f32 128.0, %v377
  %v379 = vsub.f32 1.0, %v378
  %v380 = vmul.f32 %v377, %v379
  %v381 = vadd.f32 %v377, %v380
  %vm382 = vweird.f32 %v377
  %v383 = vsel %vm382, %v377, %v381
  %v384 = vmul.f32 %v376, %v383
  %v385 = vsub.f32 %v300, %v384
  %v386 = vsub.f32 %v302, %v384
  %v387 = vsub.f32 %v305, %v384
  %v388 = vsub.f32 %v307, %v384
  %v389 = vsub.f32 %v310, %v384
  %v390 = vsub.f32 %v312, %v384
  %v391 = vsub.f32 %v315, %v384
  %v392 = vsub.f32 %v317, %v384
  %v393 = vsub.f32 %v320, %v384
  %v394 = vsub.f32 %v322, %v384
  %v395 = vsub.f32 %v325, %v384
  %v396 = vsub.f32 %v327, %v384
  %v397 = vsub.f32 %v330, %v384
  %v398 = vsub.f32 %v332, %v384
  %v399 = vsub.f32 %v335, %v384
  %v400 = vsub.f32 %v337, %v384
  %v401 = vmul.f32 %v385, %v385
  %v402 = vmul.f32 %v386, %v386
  %v403 = vmul.f32 %v387, %v387
  %v404 = vmul.f32 %v388, %v388
  %v405 = vmul.f32 %v389, %v389
  %v406 = vmul.f32 %v390, %v390
  %v407 = vmul.f32 %v391, %v391
  %v408 = vmul.f32 %v392, %v392
  %v409 = vmul.f32 %v393, %v393
  %v410 = vmul.f32 %v394, %v394
  %v411 = vmul.f32 %v395, %v395
  %v412 = vmul.f32 %v396, %v396
  %v413 = vmul.f32 %v397, %v397
  %v414 = vmul.f32 %v398, %v398
  %v415 = vmul.f32 %v399, %v399
  %v416 = vmul.f32 %v400, %v400
  %v417 = vsel %vm339, %v401, 0.0
  %v418 = vsel %vm339, %v402, 0.0
  %v419 = vadd.f32 %v417, %v418
  %v420 = vsel %vm339, %v403, 0.0
  %v421 = vadd.f32 %v419, %v420
  %v422 = vsel %vm339, %v404, 0.0
  %v423 = vadd.f32 %v421, %v422
  %v424 = vsel %vm339, %v405, 0.0
  %v425 = vadd.f32 %v423, %v424
  %v426 = vsel %vm339, %v406, 0.0
  %v427 = vadd.f32 %v425, %v426
  %v428 = vsel %vm339, %v407, 0.0
  %v429 = vadd.f32 %v427, %v428
  %v430 = vsel %vm339, %v408, 0.0
  %v431 = vadd.f32 %v429, %v430
  %v432 = vsel %vm339, %v409, 0.0
  %v433 = vadd.f32 %v431, %v432
  %v434 = vsel %vm339, %v410, 0.0
  %v435 = vadd.f32 %v433, %v434
  %v436 = vsel %vm339, %v411, 0.0
  %v437 = vadd.f32 %v435, %v436
  %v438 = vsel %vm339, %v412, 0.0
  %v439 = vadd.f32 %v437, %v438
  %v440 = vsel %vm339, %v413, 0.0
  %v441 = vadd.f32 %v439, %v440
  %v442 = vsel %vm339, %v414, 0.0
  %v443 = vadd.f32 %v441, %v442
  %v444 = vsel %vm339, %v415, 0.0
  %v445 = vadd.f32 %v443, %v444
  %v446 = vsel %vm339, %v416, 0.0
  %v447 = vadd.f32 %v445, %v446
  %v448 = vrot.slane %v447, 4
  %v449 = vadd.f32 %v447, %v448
  %v450 = vrot.slane %v449, 2
  %v451 = vadd.f32 %v449, %v450
  %v452 = vrot.slane %v451, 1
  %v453 = vadd.f32 %v451, %v452
  %v454 = vmul.f32 %v453, %v383
  %v455 = vld [vmem:[%s2] sm:$0x1]
  %v456 = vadd.f32 %v454, 1e-05
  %v457 = vrsqrt.pop %v456
  %v458 = vmul.f32 %v457, %v456
  %v459 = vmul.f32 %v458, %v457
  %v460 = vmul.f32 0.5, %v459
  %v461 = vsub.f32 1.5, %v460
  %v462 = vmul.f32 %v457, %v461
  %vm463 = vweird.f32 %v456
  %vm464 = vweird.f32 %v457
  %vm465 = vmor %vm463, %vm464
  %v466 = vsel %vm465, %v457, %v462
  %v467 = vmul.f32 %v455, %v466
  %v469 = vperm.slane %v467, 0
  %v471 = vmul.f32 %v385, %v469
  %v472 = vmul.f32 %v386, %v469
  %v473 = vmul.f32 %v387, %v469
  %v474 = vmul.f32 %v388, %v469
  %v475 = vmul.f32 %v389, %v469
  %v476 = vmul.f32 %v390, %v469
  %v477 = vmul.f32 %v391, %v469
  %v478 = vmul.f32 %v392, %v469
  %v479 = vmul.f32 %v393, %v469
  %v480 = vmul.f32 %v394, %v469
  %v481 = vmul.f32 %v395, %v469
  %v482 = vmul.f32 %v396, %v469
  %v483 = vmul.f32 %v397, %v469
  %v484 = vmul.f32 %v398, %v469
  %v485 = vmul.f32 %v399, %v469
  %v486 = vmul.f32 %v400, %v469
  %v487 = vld [vmem:[%s3] sm:$0x1]
  %v489 = vperm.slane %v487, 0
  %v491 = vadd.f32 %v471, %v489
  %v492 = vadd.f32 %v472, %v489
  %v493 = vadd.f32 %v473, %v489
  %v494 = vadd.f32 %v474, %v489
  %v495 = vadd.f32 %v475, %v489
  %v496 = vadd.f32 %v476, %v489
  %v497 = vadd.f32 %v477, %v489
  %v498 = vadd.f32 %v478, %v489
  %v499 = vadd.f32 %v479, %v489
  %v500 = vadd.f32 %v480, %v489
  %v501 = vadd.f32 %v481, %v489
  %v502 = vadd.f32 %v482, %v489
  %v503 = vadd.f32 %v483, %v489
  %v504 = vadd.f32 %v484, %v489
  %v505 = vadd.f32 %v485, %v489
  %v506 = vadd.f32 %v486, %v489
  %vm507 = vcmp.gt.f32.partialorder %v491, 0.0
  %vm508 = vcmp.gt.f32.partialorder %v492, 0.0
  %vm509 = vcmp.gt.f32.partialorder %v493, 0.0
  %vm510 = vcmp.gt.f32.partialorder %v494, 0.0
  %vm511 = vcmp.gt.f32.partialorder %v495, 0.0
  %vm512 = vcmp.gt.f32.partialorder %v496, 0.0
  %vm513 = vcmp.gt.f32.partialorder %v497, 0.0
  %vm514 = vcmp.gt.f32.partialorder %v498, 0.0
  %vm515 = vcmp.gt.f32.partialorder %v499, 0.0
  %vm516 = vcmp.gt.f32.partialorder %v500, 0.0
  %vm517 = vcmp.gt.f32.partialorder %v501, 0.0
  %vm518 = vcmp.gt.f32.partialorder %v502, 0.0
  %vm519 = vcmp.gt.f32.partialorder %v503, 0.0
  %vm520 = vcmp.gt.f32.partialorder %v504, 0.0
  %vm521 = vcmp.gt.f32.partialorder %v505, 0.0
  %vm522 = vcmp.gt.f32.partialorder %v506, 0.0
  %v523 = vmul.f32 %v491, 0.2
  %v524 = vmul.f32 %v492, 0.2
  %v525 = vmul.f32 %v493, 0.2
  %v526 = vmul.f32 %v494, 0.2
  %v527 = vmul.f32 %v495, 0.2
  %v528 = vmul.f32 %v496, 0.2
  %v529 = vmul.f32 %v497, 0.2
  %v530 = vmul.f32 %v498, 0.2
  %v531 = vmul.f32 %v499, 0.2
  %v532 = vmul.f32 %v500, 0.2
  %v533 = vmul.f32 %v501, 0.2
  %v534 = vmul.f32 %v502, 0.2
  %v535 = vmul.f32 %v503, 0.2
  %v536 = vmul.f32 %v504, 0.2
  %v537 = vmul.f32 %v505, 0.2
  %v538 = vmul.f32 %v506, 0.2
  %v539 = vsel %vm507, %v491, %v523
  %v540 = vsel %vm508, %v492, %v524
  %v541 = vsel %vm509, %v493, %v525
  %v542 = vsel %vm510, %v494, %v526
  %v543 = vsel %vm511, %v495, %v527
  %v544 = vsel %vm512, %v496, %v528
  %v545 = vsel %vm513, %v497, %v529
  %v546 = vsel %vm514, %v498, %v530
  %v547 = vsel %vm515, %v499, %v531
  %v548 = vsel %vm516, %v500, %v532
  %v549 = vsel %vm517, %v501, %v533
  %v550 = vsel %vm518, %v502, %v534
  %v551 = vsel %vm519, %v503, %v535
  %v552 = vsel %vm520, %v504, %v536
  %v553 = vsel %vm521, %v505, %v537
  %v554 = vsel %vm522, %v506, %v538
  %v555 = vpack.c.bf16 %v539, %v539
  %v556 = vpack.c.bf16 %v540, %v540
  %v557 = vpack.c.bf16 %v541, %v541
  %v558 = vpack.c.bf16 %v542, %v542
  %v559 = vpack.c.bf16 %v543, %v543
  %v560 = vpack.c.bf16 %v544, %v544
  %v561 = vpack.c.bf16 %v545, %v545
  %v562 = vpack.c.bf16 %v546, %v546
  %v563 = vpack.c.bf16 %v547, %v547
  %v564 = vpack.c.bf16 %v548, %v548
  %v565 = vpack.c.bf16 %v549, %v549
  %v566 = vpack.c.bf16 %v550, %v550
  %v567 = vpack.c.bf16 %v551, %v551
  %v568 = vpack.c.bf16 %v552, %v552
  %v569 = vpack.c.bf16 %v553, %v553
  %v570 = vpack.c.bf16 %v554, %v554
  %vm571 = vcmask 257024
  %572 = vst.msk [vmem:[%s4] sm:$0xf] %vm571, %v555
  %573 = vst.msk [vmem:[%s4 + $0x4] sm:$0xf] %vm571, %v556
  %574 = vst.msk [vmem:[%s4 + $0x8] sm:$0xf] %vm571, %v557
  %575 = vst.msk [vmem:[%s4 + $0xc] sm:$0xf] %vm571, %v558
  %576 = vst.msk [vmem:[%s4 + $0x10] sm:$0xf] %vm571, %v559
  %577 = vst.msk [vmem:[%s4 + $0x14] sm:$0xf] %vm571, %v560
  %578 = vst.msk [vmem:[%s4 + $0x18] sm:$0xf] %vm571, %v561
  %579 = vst.msk [vmem:[%s4 + $0x1c] sm:$0xf] %vm571, %v562
  %580 = vst.msk [vmem:[%s4 + $0x20] sm:$0xf] %vm571, %v563
  %581 = vst.msk [vmem:[%s4 + $0x24] sm:$0xf] %vm571, %v564
  %582 = vst.msk [vmem:[%s4 + $0x28] sm:$0xf] %vm571, %v565
  %583 = vst.msk [vmem:[%s4 + $0x2c] sm:$0xf] %vm571, %v566
  %584 = vst.msk [vmem:[%s4 + $0x30] sm:$0xf] %vm571, %v567
  %585 = vst.msk [vmem:[%s4 + $0x34] sm:$0xf] %vm571, %v568
  %586 = vst.msk [vmem:[%s4 + $0x38] sm:$0xf] %vm571, %v569
  %587 = vst.msk [vmem:[%s4 + $0x3c] sm:$0xf] %vm571, %v570
  // Predicated region
  $region18: #{discriminator_forward.6} parent=0 // pred_check
    _
  $region19: #{discriminator_forward.6} parent=0 // pred_check_branch
    %589 = sbr.rel (0) target = $region21
  $region20: #{discriminator_forward.6} parent=0 // pred_region
    _
  $region21: #{discriminator_forward.6} parent=0 // pred_fallthru
    _
  // Predicated region
  $region22: #{discriminator_forward.6} parent=0 // pred_check
    _
  $region23: #{discriminator_forward.6} parent=0 // pred_check_branch
    %591 = sbr.rel (0) target = $region25
  $region24: #{discriminator_forward.6} parent=0 // pred_region
    _
  $region25: #{discriminator_forward.6} parent=0 // pred_fallthru
    _

// kernel: discriminator_forward.7
$region0: #{discriminator_forward.7}
  #allocation0 [shape = 'u32[]', space=smem, size = 0x4, offset = 0x4, fixed_abs, tag = 'smem constant byte address 0x4 - core index']
  #allocation1 [shape = 'u32[72,128]{1,0:T(1,128)}', space=vmem, size = 0x9000, scoped, tag = 'internal scratch']
  #allocation2 [shape = 'f32[1,1]{1,0:T(1,128)S(1)}', space=vmem, size = 0x200, scoped, tag = 'scoped memory for discriminator_forward.7']
  %s0 = inlined_call_operand.vmem [shape: bf16[32,512], index: 0, kind: input, shape index: {}]
  %s1 = inlined_call_operand.vmem [shape: bf16[512,64], index: 1, kind: input, shape index: {}]
  %s2 = inlined_call_operand.vmem [shape: f32[1,64], index: 2, kind: input, shape index: {}]
  %s3 = inlined_call_operand.vmem [shape: f32[1,64], index: 3, kind: input, shape index: {}]
  %s4 = inlined_call_operand.vmem [shape: f32[16,64], index: 4, kind: input, shape index: {}]
  %s5 = inlined_call_operand.<no memory space> [shape: f32[1,1], index: 5, kind: input, shape index: {}]
  %s6 = inlined_call_operand.vmem [shape: f32[2,1], index: 6, kind: output, shape index: {}]
  %s7 = sld [smem:[#allocation0]]
  $region34: #{discriminator_forward.7} parent=0
    _
  %s9 = ssub.s32 1, %s7
  %s10 = scalar_select 0, %s9, %s7
  %v11 = vstv %s5
  %12 = vst [vmem:[#allocation2] sm:$0x1] %v11
  // Predicated region
  $region2: #{discriminator_forward.7} parent=0 // pred_check
    _
  $region3: #{discriminator_forward.7} parent=0 // pred_check_branch
    %14 = sbr.rel (0) target = $region5
  $region4: #{discriminator_forward.7} parent=0 // pred_region
    _
  $region5: #{discriminator_forward.7} parent=0 // pred_fallthru
    _
  // Predicated region
  $region6: #{discriminator_forward.7} parent=0 // pred_check
    _
  $region7: #{discriminator_forward.7} parent=0 // pred_check_branch
    %16 = sbr.rel (0) target = $region9
  $region8: #{discriminator_forward.7} parent=0 // pred_region
    _
  $region9: #{discriminator_forward.7} parent=0 // pred_fallthru
    _
  // Predicated region
  $region10: #{discriminator_forward.7} parent=0 // pred_check
    _
  $region11: #{discriminator_forward.7} parent=0 // pred_check_branch
    %18 = sbr.rel (0) target = $region13
  $region12: #{discriminator_forward.7} parent=0 // pred_region
    _
  $region13: #{discriminator_forward.7} parent=0 // pred_fallthru
    _
  // Predicated region
  $region14: #{discriminator_forward.7} parent=0 // pred_check
    _
  $region15: #{discriminator_forward.7} parent=0 // pred_check_branch
    %20 = sbr.rel (0) target = $region17
  $region16: #{discriminator_forward.7} parent=0 // pred_region
    _
  $region17: #{discriminator_forward.7} parent=0 // pred_fallthru
    _
  // Predicated region
  $region18: #{discriminator_forward.7} parent=0 // pred_check
    _
  $region19: #{discriminator_forward.7} parent=0 // pred_check_branch
    %22 = sbr.rel (0) target = $region21
  $region20: #{discriminator_forward.7} parent=0 // pred_region
    _
  $region21: #{discriminator_forward.7} parent=0 // pred_fallthru
    _
  // Predicated region
  $region22: #{discriminator_forward.7} parent=0 // pred_check
    _
  $region23: #{discriminator_forward.7} parent=0 // pred_check_branch
    %24 = sbr.rel (0) target = $region25
  $region24: #{discriminator_forward.7} parent=0 // pred_region
    _
  $region25: #{discriminator_forward.7} parent=0 // pred_fallthru
    _
  %v25 = vld [vmem:[%s0] sm:$0xff]
  %v26 = vld [vmem:[%s0 + $0x8] sm:$0xff]
  %v27 = vld [vmem:[%s0 + $0x10] sm:$0xff]
  %v28 = vld [vmem:[%s0 + $0x18] sm:$0xff]
  %v29 = vld [vmem:[%s0 + $0x20] sm:$0xff]
  %v30 = vld [vmem:[%s0 + $0x28] sm:$0xff]
  %v31 = vld [vmem:[%s0 + $0x30] sm:$0xff]
  %v32 = vld [vmem:[%s0 + $0x38] sm:$0xff]
  %v33 = vld [vmem:[%s1] sm:$0xf]
  %v34 = vld [vmem:[%s1 + $0x4] sm:$0xf]
  %v35 = vld [vmem:[%s1 + $0x8] sm:$0xf]
  %v36 = vld [vmem:[%s1 + $0xc] sm:$0xf]
  %v37 = vld [vmem:[%s1 + $0x10] sm:$0xf]
  %v38 = vld [vmem:[%s1 + $0x14] sm:$0xf]
  %v39 = vld [vmem:[%s1 + $0x18] sm:$0xf]
  %v40 = vld [vmem:[%s1 + $0x1c] sm:$0xf]
  %v41 = vld [vmem:[%s1 + $0x20] sm:$0xf]
  %v42 = vld [vmem:[%s1 + $0x24] sm:$0xf]
  %v43 = vld [vmem:[%s1 + $0x28] sm:$0xf]
  %v44 = vld [vmem:[%s1 + $0x2c] sm:$0xf]
  %v45 = vld [vmem:[%s1 + $0x30] sm:$0xf]
  %v46 = vld [vmem:[%s1 + $0x34] sm:$0xf]
  %v47 = vld [vmem:[%s1 + $0x38] sm:$0xf]
  %v48 = vld [vmem:[%s1 + $0x3c] sm:$0xf]
  %v49 = vld [vmem:[%s1 + $0x40] sm:$0xf]
  %v50 = vld [vmem:[%s1 + $0x44] sm:$0xf]
  %v51 = vld [vmem:[%s1 + $0x48] sm:$0xf]
  %v52 = vld [vmem:[%s1 + $0x4c] sm:$0xf]
  %v53 = vld [vmem:[%s1 + $0x50] sm:$0xf]
  %v54 = vld [vmem:[%s1 + $0x54] sm:$0xf]
  %v55 = vld [vmem:[%s1 + $0x58] sm:$0xf]
  %v56 = vld [vmem:[%s1 + $0x5c] sm:$0xf]
  %v57 = vld [vmem:[%s1 + $0x60] sm:$0xf]
  %v58 = vld [vmem:[%s1 + $0x64] sm:$0xf]
  %v59 = vld [vmem:[%s1 + $0x68] sm:$0xf]
  %v60 = vld [vmem:[%s1 + $0x6c] sm:$0xf]
  %v61 = vld [vmem:[%s1 + $0x70] sm:$0xf]
  %v62 = vld [vmem:[%s1 + $0x74] sm:$0xf]
  %v63 = vld [vmem:[%s1 + $0x78] sm:$0xf]
  %v64 = vld [vmem:[%s1 + $0x7c] sm:$0xf]
  %v65 = vld [vmem:[%s1 + $0x80] sm:$0xf]
  %v66 = vld [vmem:[%s1 + $0x84] sm:$0xf]
  %v67 = vld [vmem:[%s1 + $0x88] sm:$0xf]
  %v68 = vld [vmem:[%s1 + $0x8c] sm:$0xf]
  %v69 = vld [vmem:[%s1 + $0x90] sm:$0xf]
  %v70 = vld [vmem:[%s1 + $0x94] sm:$0xf]
  %v71 = vld [vmem:[%s1 + $0x98] sm:$0xf]
  %v72 = vld [vmem:[%s1 + $0x9c] sm:$0xf]
  %v73 = vld [vmem:[%s1 + $0xa0] sm:$0xf]
  %v74 = vld [vmem:[%s1 + $0xa4] sm:$0xf]
  %v75 = vld [vmem:[%s1 + $0xa8] sm:$0xf]
  %v76 = vld [vmem:[%s1 + $0xac] sm:$0xf]
  %v77 = vld [vmem:[%s1 + $0xb0] sm:$0xf]
  %v78 = vld [vmem:[%s1 + $0xb4] sm:$0xf]
  %v79 = vld [vmem:[%s1 + $0xb8] sm:$0xf]
  %v80 = vld [vmem:[%s1 + $0xbc] sm:$0xf]
  %v81 = vld [vmem:[%s1 + $0xc0] sm:$0xf]
  %v82 = vld [vmem:[%s1 + $0xc4] sm:$0xf]
  %v83 = vld [vmem:[%s1 + $0xc8] sm:$0xf]
  %v84 = vld [vmem:[%s1 + $0xcc] sm:$0xf]
  %v85 = vld [vmem:[%s1 + $0xd0] sm:$0xf]
  %v86 = vld [vmem:[%s1 + $0xd4] sm:$0xf]
  %v87 = vld [vmem:[%s1 + $0xd8] sm:$0xf]
  %v88 = vld [vmem:[%s1 + $0xdc] sm:$0xf]
  %v89 = vld [vmem:[%s1 + $0xe0] sm:$0xf]
  %v90 = vld [vmem:[%s1 + $0xe4] sm:$0xf]
  %v91 = vld [vmem:[%s1 + $0xe8] sm:$0xf]
  %v92 = vld [vmem:[%s1 + $0xec] sm:$0xf]
  %v93 = vld [vmem:[%s1 + $0xf0] sm:$0xf]
  %v94 = vld [vmem:[%s1 + $0xf4] sm:$0xf]
  %v95 = vld [vmem:[%s1 + $0xf8] sm:$0xf]
  %v96 = vld [vmem:[%s1 + $0xfc] sm:$0xf]
  %v105 = vunpack.c.l.b16 %v25
  %v106 = vunpack.c.h.b16 %v25
  %v107 = vunpack.c.l.b16 %v26
  %v108 = vunpack.c.h.b16 %v26
  %v109 = vunpack.c.l.b16 %v27
  %v110 = vunpack.c.h.b16 %v27
  %v111 = vunpack.c.l.b16 %v28
  %v112 = vunpack.c.h.b16 %v28
  %v113 = vunpack.c.l.b16 %v29
  %v114 = vunpack.c.h.b16 %v29
  %v115 = vunpack.c.l.b16 %v30
  %v116 = vunpack.c.h.b16 %v30
  %v117 = vunpack.c.l.b16 %v31
  %v118 = vunpack.c.h.b16 %v31
  %v119 = vunpack.c.l.b16 %v32
  %v120 = vunpack.c.h.b16 %v32
  %v121 = vpack.c.b16 %v109, %v105
  %v122 = vpack.c.b16 %v110, %v106
  %v123 = vpack.c.b16 %v111, %v107
  %v124 = vpack.c.b16 %v112, %v108
  %v125 = vpack.c.b16 %v117, %v113
  %v126 = vpack.c.b16 %v118, %v114
  %v127 = vpack.c.b16 %v119, %v115
  %v128 = vpack.c.b16 %v120, %v116
  %v201 = vunpack.c.l.b16 %v33
  %v202 = vunpack.c.l.b16 %v34
  %v203 = vunpack.c.l.b16 %v35
  %v204 = vunpack.c.l.b16 %v36
  %v205 = vunpack.c.l.b16 %v37
  %v206 = vunpack.c.l.b16 %v38
  %v207 = vunpack.c.l.b16 %v39
  %v208 = vunpack.c.l.b16 %v40
  %v209 = vunpack.c.l.b16 %v41
  %v210 = vunpack.c.l.b16 %v42
  %v211 = vunpack.c.l.b16 %v43
  %v212 = vunpack.c.l.b16 %v44
  %v213 = vunpack.c.l.b16 %v45
  %v214 = vunpack.c.l.b16 %v46
  %v215 = vunpack.c.l.b16 %v47
  %v216 = vunpack.c.l.b16 %v48
  %v217 = vunpack.c.l.b16 %v49
  %v218 = vunpack.c.l.b16 %v50
  %v219 = vunpack.c.l.b16 %v51
  %v220 = vunpack.c.l.b16 %v52
  %v221 = vunpack.c.l.b16 %v53
  %v222 = vunpack.c.l.b16 %v54
  %v223 = vunpack.c.l.b16 %v55
  %v224 = vunpack.c.l.b16 %v56
  %v225 = vunpack.c.l.b16 %v57
  %v226 = vunpack.c.l.b16 %v58
  %v227 = vunpack.c.l.b16 %v59
  %v228 = vunpack.c.l.b16 %v60
  %v229 = vunpack.c.l.b16 %v61
  %v230 = vunpack.c.l.b16 %v62
  %v231 = vunpack.c.l.b16 %v63
  %v232 = vunpack.c.l.b16 %v64
  %v233 = vunpack.c.l.b16 %v65
  %v234 = vunpack.c.l.b16 %v66
  %v235 = vunpack.c.l.b16 %v67
  %v236 = vunpack.c.l.b16 %v68
  %v237 = vunpack.c.l.b16 %v69
  %v238 = vunpack.c.l.b16 %v70
  %v239 = vunpack.c.l.b16 %v71
  %v240 = vunpack.c.l.b16 %v72
  %v241 = vunpack.c.l.b16 %v73
  %v242 = vunpack.c.l.b16 %v74
  %v243 = vunpack.c.l.b16 %v75
  %v244 = vunpack.c.l.b16 %v76
  %v245 = vunpack.c.l.b16 %v77
  %v246 = vunpack.c.l.b16 %v78
  %v247 = vunpack.c.l.b16 %v79
  %v248 = vunpack.c.l.b16 %v80
  %v249 = vunpack.c.l.b16 %v81
  %v250 = vunpack.c.l.b16 %v82
  %v251 = vunpack.c.l.b16 %v83
  %v252 = vunpack.c.l.b16 %v84
  %v253 = vunpack.c.l.b16 %v85
  %v254 = vunpack.c.l.b16 %v86
  %v255 = vunpack.c.l.b16 %v87
  %v256 = vunpack.c.l.b16 %v88
  %v257 = vunpack.c.l.b16 %v89
  %v258 = vunpack.c.l.b16 %v90
  %v259 = vunpack.c.l.b16 %v91
  %v260 = vunpack.c.l.b16 %v92
  %v261 = vunpack.c.l.b16 %v93
  %v262 = vunpack.c.l.b16 %v94
  %v263 = vunpack.c.l.b16 %v95
  %v264 = vunpack.c.l.b16 %v96
  %v265 = vpack.c.b16 %v202, %v201
  %v266 = vpack.c.b16 %v204, %v203
  %v267 = vpack.c.b16 %v206, %v205
  %v268 = vpack.c.b16 %v208, %v207
  %v269 = vpack.c.b16 %v210, %v209
  %v270 = vpack.c.b16 %v212, %v211
  %v271 = vpack.c.b16 %v214, %v213
  %v272 = vpack.c.b16 %v216, %v215
  %v273 = vpack.c.b16 %v218, %v217
  %v274 = vpack.c.b16 %v220, %v219
  %v275 = vpack.c.b16 %v222, %v221
  %v276 = vpack.c.b16 %v224, %v223
  %v277 = vpack.c.b16 %v226, %v225
  %v278 = vpack.c.b16 %v228, %v227
  %v279 = vpack.c.b16 %v230, %v229
  %v280 = vpack.c.b16 %v232, %v231
  %v281 = vpack.c.b16 %v234, %v233
  %v282 = vpack.c.b16 %v236, %v235
  %v283 = vpack.c.b16 %v238, %v237
  %v284 = vpack.c.b16 %v240, %v239
  %v285 = vpack.c.b16 %v242, %v241
  %v286 = vpack.c.b16 %v244, %v243
  %v287 = vpack.c.b16 %v246, %v245
  %v288 = vpack.c.b16 %v248, %v247
  %v289 = vpack.c.b16 %v250, %v249
  %v290 = vpack.c.b16 %v252, %v251
  %v291 = vpack.c.b16 %v254, %v253
  %v292 = vpack.c.b16 %v256, %v255
  %v293 = vpack.c.b16 %v258, %v257
  %v294 = vpack.c.b16 %v260, %v259
  %v295 = vpack.c.b16 %v262, %v261
  %v296 = vpack.c.b16 %v264, %v263
  %329 = vmatpush.bf16.msra.mxu0 %v272
  %330 = vmatpush.bf16.msra.mxu0 %v271
  %331 = vmatpush.bf16.msra.mxu0 %v270
  %332 = vmatpush.bf16.msra.mxu0 %v269
  %333 = vmatpush.bf16.msra.mxu0 %v268
  %334 = vmatpush.bf16.msra.mxu0 %v267
  %335 = vmatpush.bf16.msra.mxu0 %v266
  %336 = vmatpush.bf16.msra.mxu0 %v265
  %337 = vmatmul.bf16.gmra.mxu0 %v121
  %v338 = vpop.f32.mrf.mxu0
  %v339 = vadd.f32 0.0, %v338
  %v340 = vpop.f32.mrf.mxu0
  %v341 = vadd.f32 0.0, %v340
  %342 = vmatmul.bf16.gmra.mxu0 %v125
  %v343 = vpop.f32.mrf.mxu0
  %v344 = vadd.f32 0.0, %v343
  %v345 = vpop.f32.mrf.mxu0
  %v346 = vadd.f32 0.0, %v345
  %347 = vdwg.mxu0
  %348 = vmatpush.bf16.msra.mxu0 %v280
  %349 = vmatpush.bf16.msra.mxu0 %v279
  %350 = vmatpush.bf16.msra.mxu0 %v278
  %351 = vmatpush.bf16.msra.mxu0 %v277
  %352 = vmatpush.bf16.msra.mxu0 %v276
  %353 = vmatpush.bf16.msra.mxu0 %v275
  %354 = vmatpush.bf16.msra.mxu0 %v274
  %355 = vmatpush.bf16.msra.mxu0 %v273
  %356 = vmatmul.bf16.gmra.mxu0 %v122
  %v357 = vpop.f32.mrf.mxu0
  %v358 = vadd.f32 %v339, %v357
  %v359 = vpop.f32.mrf.mxu0
  %v360 = vadd.f32 %v341, %v359
  %361 = vmatmul.bf16.gmra.mxu0 %v126
  %v362 = vpop.f32.mrf.mxu0
  %v363 = vadd.f32 %v344, %v362
  %v364 = vpop.f32.mrf.mxu0
  %v365 = vadd.f32 %v346, %v364
  %366 = vdwg.mxu0
  %367 = vmatpush.bf16.msra.mxu0 %v288
  %368 = vmatpush.bf16.msra.mxu0 %v287
  %369 = vmatpush.bf16.msra.mxu0 %v286
  %370 = vmatpush.bf16.msra.mxu0 %v285
  %371 = vmatpush.bf16.msra.mxu0 %v284
  %372 = vmatpush.bf16.msra.mxu0 %v283
  %373 = vmatpush.bf16.msra.mxu0 %v282
  %374 = vmatpush.bf16.msra.mxu0 %v281
  %375 = vmatmul.bf16.gmra.mxu0 %v123
  %v376 = vpop.f32.mrf.mxu0
  %v377 = vadd.f32 %v358, %v376
  %v378 = vpop.f32.mrf.mxu0
  %v379 = vadd.f32 %v360, %v378
  %380 = vmatmul.bf16.gmra.mxu0 %v127
  %v381 = vpop.f32.mrf.mxu0
  %v382 = vadd.f32 %v363, %v381
  %v383 = vpop.f32.mrf.mxu0
  %v384 = vadd.f32 %v365, %v383
  %385 = vdwg.mxu0
  %386 = vmatpush.bf16.msra.mxu0 %v296
  %387 = vmatpush.bf16.msra.mxu0 %v295
  %388 = vmatpush.bf16.msra.mxu0 %v294
  %389 = vmatpush.bf16.msra.mxu0 %v293
  %390 = vmatpush.bf16.msra.mxu0 %v292
  %391 = vmatpush.bf16.msra.mxu0 %v291
  %392 = vmatpush.bf16.msra.mxu0 %v290
  %393 = vmatpush.bf16.msra.mxu0 %v289
  %394 = vmatmul.bf16.gmra.mxu0 %v124
  %v395 = vpop.f32.mrf.mxu0
  %v396 = vadd.f32 %v377, %v395
  %v397 = vpop.f32.mrf.mxu0
  %v398 = vadd.f32 %v379, %v397
  %399 = vmatmul.bf16.gmra.mxu0 %v128
  %v400 = vpop.f32.mrf.mxu0
  %v401 = vadd.f32 %v382, %v400
  %v402 = vpop.f32.mrf.mxu0
  %v403 = vadd.f32 %v384, %v402
  %404 = vdwg.mxu0
  %vm405 = vcmask 523264
  %v406 = vsel %vm405, %v396, 0.0
  %v407 = vsel %vm405, %v398, 0.0
  %v408 = vadd.f32 %v406, %v407
  %v409 = vsel %vm405, %v401, 0.0
  %v410 = vadd.f32 %v408, %v409
  %v411 = vsel %vm405, %v403, 0.0
  %v412 = vadd.f32 %v410, %v411
  %v413 = vrot.slane %v412, 4
  %v414 = vadd.f32 %v412, %v413
  %v415 = vrot.slane %v414, 2
  %v416 = vadd.f32 %v414, %v415
  %v417 = vrot.slane %v416, 1
  %v418 = vadd.f32 %v416, %v417
  %v419 = vrcp.pop 32.0
  %v420 = vmul.f32 32.0, %v419
  %v421 = vsub.f32 1.0, %v420
  %v422 = vmul.f32 %v419, %v421
  %v423 = vadd.f32 %v419, %v422
  %vm424 = vweird.f32 %v419
  %v425 = vsel %vm424, %v419, %v423
  %v426 = vmul.f32 %v418, %v425
  %v427 = vsub.f32 %v396, %v426
  %v428 = vsub.f32 %v398, %v426
  %v429 = vsub.f32 %v401, %v426
  %v430 = vsub.f32 %v403, %v426
  %v431 = vmul.f32 %v427, %v427
  %v432 = vmul.f32 %v428, %v428
  %v433 = vmul.f32 %v429, %v429
  %v434 = vmul.f32 %v430, %v430
  %v435 = vsel %vm405, %v431, 0.0
  %v436 = vsel %vm405, %v432, 0.0
  %v437 = vadd.f32 %v435, %v436
  %v438 = vsel %vm405, %v433, 0.0
  %v439 = vadd.f32 %v437, %v438
  %v440 = vsel %vm405, %v434, 0.0
  %v441 = vadd.f32 %v439, %v440
  %v442 = vrot.slane %v441, 4
  %v443 = vadd.f32 %v441, %v442
  %v444 = vrot.slane %v443, 2
  %v445 = vadd.f32 %v443, %v444
  %v446 = vrot.slane %v445, 1
  %v447 = vadd.f32 %v445, %v446
  %v448 = vmul.f32 %v447, %v425
  %v449 = vld [vmem:[%s2] sm:$0x1]
  %v450 = vadd.f32 %v448, 1e-05
  %v451 = vrsqrt.pop %v450
  %v452 = vmul.f32 %v451, %v450
  %v453 = vmul.f32 %v452, %v451
  %v454 = vmul.f32 0.5, %v453
  %v455 = vsub.f32 1.5, %v454
  %v456 = vmul.f32 %v451, %v455
  %vm457 = vweird.f32 %v450
  %vm458 = vweird.f32 %v451
  %vm459 = vmor %vm457, %vm458
  %v460 = vsel %vm459, %v451, %v456
  %v461 = vmul.f32 %v449, %v460
  %v463 = vperm.slane %v461, 0
  %v465 = vmul.f32 %v427, %v463
  %v466 = vmul.f32 %v428, %v463
  %v467 = vmul.f32 %v429, %v463
  %v468 = vmul.f32 %v430, %v463
  %v469 = vld [vmem:[%s3] sm:$0x1]
  %v471 = vperm.slane %v469, 0
  %v473 = vadd.f32 %v465, %v471
  %v474 = vadd.f32 %v466, %v471
  %v475 = vadd.f32 %v467, %v471
  %v476 = vadd.f32 %v468, %v471
  %vm477 = vcmp.gt.f32.partialorder %v473, 0.0
  %vm478 = vcmp.gt.f32.partialorder %v474, 0.0
  %vm479 = vcmp.gt.f32.partialorder %v475, 0.0
  %vm480 = vcmp.gt.f32.partialorder %v476, 0.0
  %v481 = vmul.f32 %v473, 0.2
  %v482 = vmul.f32 %v474, 0.2
  %v483 = vmul.f32 %v475, 0.2
  %v484 = vmul.f32 %v476, 0.2
  %v485 = vsel %vm477, %v473, %v481
  %v486 = vsel %vm478, %v474, %v482
  %v487 = vsel %vm479, %v475, %v483
  %v488 = vsel %vm480, %v476, %v484
  %v489 = vld [vmem:[%s4] sm:$0xff]
  %v490 = vld [vmem:[%s4 + $0x8] sm:$0xff]
  %v491 = vmul.f32 %v485, %v489
  %v492 = vmul.f32 %v486, %v490
  %v493 = vmul.f32 %v487, %v489
  %v494 = vmul.f32 %v488, %v490
  %v495 = vsel %vm405, %v491, 0.0
  %v496 = vsel %vm405, %v492, 0.0
  %v497 = vadd.f32 %v495, %v496
  %v498 = vrot.slane %v497, 4
  %v499 = vadd.f32 %v497, %v498
  %v500 = vrot.slane %v499, 2
  %v501 = vadd.f32 %v499, %v500
  %v502 = vrot.slane %v501, 1
  %v503 = vadd.f32 %v501, %v502
  %v504 = vsel %vm405, %v493, 0.0
  %v505 = vsel %vm405, %v494, 0.0
  %v506 = vadd.f32 %v504, %v505
  %v507 = vrot.slane %v506, 4
  %v508 = vadd.f32 %v506, %v507
  %v509 = vrot.slane %v508, 2
  %v510 = vadd.f32 %v508, %v509
  %v511 = vrot.slane %v510, 1
  %v512 = vadd.f32 %v510, %v511
  %vm515 = vcmask 1041409
  %v516 = vsel %vm515, %v512, %v503
  %vm518 = vcmask 517120
  %v519 = vsel %vm518, %v516, 0.0
  %520 = vadd.xlane.f32.xlu0 %v519
  %v521 = vpop.xlane.xlu0 %520
  %v522 = vld [vmem:[#allocation2] sm:$0x1]
  %v524 = vperm.slane %v522, 0
  %v526 = vadd.f32 %v521, %v524
  %v527 = vsub.f32 0.0, %v526
  %v528 = vmul.f32 %v527, 1.442695
  %v529 = vpow.pop %v528
  %v530 = vadd.f32 %v529, 1.0
  %v531 = vrcp.pop %v530
  %v532 = vmul.f32 %v530, %v531
  %v533 = vsub.f32 1.0, %v532
  %v534 = vmul.f32 %v531, %v533
  %v535 = vadd.f32 %v531, %v534
  %vm536 = vweird.f32 %v530
  %vm537 = vweird.f32 %v531
  %vm538 = vmor %vm536, %vm537
  %v539 = vsel %vm538, %v531, %v535
  %v540 = vand.u32 2147483647, %v530
  %vm541 = vcmp.eq.f32.partialorder %v540, 8.507059e+37
  %v542 = vand.u32 %v530, 2147483648
  %v543 = vor.u32 1.1754944e-38, %v542
  %v544 = vsel %vm541, %v543, %v539
  %v545 = vmul.f32 1.0, %v544
  %vm546 = vcmask 1024
  %547 = vst.msk [vmem:[%s6] sm:$0x3] %vm546, %v545
  // Predicated region
  $region26: #{discriminator_forward.7} parent=0 // pred_check
    _
  $region27: #{discriminator_forward.7} parent=0 // pred_check_branch
    %549 = sbr.rel (0) target = $region29
  $region28: #{discriminator_forward.7} parent=0 // pred_region
    _
  $region29: #{discriminator_forward.7} parent=0 // pred_fallthru
    _
  // Predicated region
  $region30: #{discriminator_forward.7} parent=0 // pred_check
    _
  $region31: #{discriminator_forward.7} parent=0 // pred_check_branch
    %551 = sbr.rel (0) target = $region33
  $region32: #{discriminator_forward.7} parent=0 // pred_region
    _
  $region33: #{discriminator_forward.7} parent=0 // pred_fallthru
    _

</llo_original>
